<compile_context>
chip_gen: v5e
topology: v5e:2x2
jax: 0.10.0
libtpu: 0.0.40
codegen_flags: <defaults>
</compile_context>

<pallas_src>
import jax
import jax.numpy as jnp
from jax.experimental import pallas as pl
from jax.experimental.pallas import tpu as pltpu

# ---------------- model hyper-parameters (small, consistent with the module) --
DIM = 32                      # conformer dim
DIM_HEAD = 16
HEADS = 2
INNER = DIM_HEAD * HEADS      # 32
DEPTH = 2
FF_MULT = 4
FF_DIM = DIM * FF_MULT        # 128
CONV_EXPANSION = 2
CONV_INNER = DIM * CONV_EXPANSION   # 64
CONV_KERNEL = 7
NUM_QUANT = 4                 # num_quantizers (grouped_quantizers = 1)
CODEBOOK = 16
NUM_CODES_WITH_MASK = CODEBOOK + 1
LOGIT_DIM = 10
ROPE_THETA = 10000.0

QKVM_COLS = 4 * INNER         # q(32) | k(32) | v(32) | mix replicated(32) = 128 (lane dense)
HEAD_LOGIT_COLS = NUM_QUANT * LOGIT_DIM   # 40 real output columns
OUT_COLS = 128                # kernel output padded to lane-dense 128

LN_EPS = 1e-5                 # nn.LayerNorm default
CHAN_LN_EPS = 1e-6            # ChanLayerNorm f32 path: var.clamp(min=1e-6).rsqrt()


def calc_same_padding(kernel_size):
    pad = kernel_size // 2
    return (pad, pad - (kernel_size + 1) % 2)


PAD_L, PAD_R = calc_same_padding(CONV_KERNEL)   # (3, 3)

# Per-layer parameters, stacked along a leading DEPTH axis and passed to the
# fused kernel as individual (full-block, VMEM-resident) refs.
LAYER_PARAM_SPECS = (
    ("ff1_ln_g", (1, DIM)), ("ff1_ln_b", (1, DIM)),
    ("ff1_w1", (DIM, FF_DIM)), ("ff1_b1", (1, FF_DIM)),
    ("ff1_w2", (FF_DIM, DIM)), ("ff1_b2", (1, DIM)),
    ("attn_ln_g", (1, DIM)), ("attn_ln_b", (1, DIM)),
    ("qkvm_w", (DIM, QKVM_COLS)),
    ("to_out_w", (INNER, DIM)), ("to_out_b", (1, DIM)),
    ("conv_ln_g", (1, DIM)), ("conv_ln_b", (1, DIM)),
    ("pw1_w", (DIM, 2 * CONV_INNER)), ("pw1_b", (1, 2 * CONV_INNER)),
    ("ds_w", (CONV_KERNEL, CONV_INNER)), ("ds_b", (1, CONV_INNER)),
    ("chan_ln_g", (1, CONV_INNER)),
    ("pw2_w", (CONV_INNER, DIM)), ("pw2_b", (1, DIM)),
    ("ff2_ln_g", (1, DIM)), ("ff2_ln_b", (1, DIM)),
    ("ff2_w1", (DIM, FF_DIM)), ("ff2_b1", (1, FF_DIM)),
    ("ff2_w2", (FF_DIM, DIM)), ("ff2_b2", (1, DIM)),
    ("post_ln_g", (1, DIM)), ("post_ln_b", (1, DIM)),
)
LAYER_PARAM_NAMES = tuple(n for n, _ in LAYER_PARAM_SPECS)


# =========================== the fused Pallas kernel =========================

def _logit_head_kernel(x_ref, cos_ref, sin_ref, shift_ref, *refs):
    n_lp = len(LAYER_PARAM_NAMES)
    layer_refs = dict(zip(LAYER_PARAM_NAMES, refs[:n_lp]))
    fused_w_ref = refs[n_lp]
    fused_b_ref = refs[n_lp + 1]
    out_ref = refs[n_lp + 2]

    x = x_ref[0].astype(jnp.float32)            # (N, DIM) for this batch element
    cos = cos_ref[...].astype(jnp.float32)      # (N, DIM_HEAD), loaded once, reused everywhere
    sin = sin_ref[...].astype(jnp.float32)
    scale = DIM_HEAD ** -0.5

    def layer_norm(v, g, b):
        mu = jnp.mean(v, axis=-1, keepdims=True)
        var = jnp.mean(jnp.square(v - mu), axis=-1, keepdims=True)
        return (v - mu) * jax.lax.rsqrt(var + LN_EPS) * g + b

    def swish(v):
        return v * jax.nn.sigmoid(v)

    def rope(t):
        # t * cos + rotate_half(t) * sin ; rotate_half = cat(-t2, t1)
        # (kept as proven lane-slice concat; pltpu.roll on a 16-lane axis is riskier to lower)
        half = t.shape[-1] // 2
        rot = jnp.concatenate([-t[:, half:], t[:, :half]], axis=-1)
        return t * cos + rot * sin

    value_residual = [None] * HEADS             # per-head v of the first layer

    for li in range(DEPTH):
        def lp(name, _li=li):                   # load each weight at point of use
            return layer_refs[name][_li]

        # ---------- ff1: x = x + 0.5 * FF(LN(x)) ----------
        h = layer_norm(x, lp("ff1_ln_g"), lp("ff1_ln_b"))
        h = swish(jnp.dot(h, lp("ff1_w1"), preferred_element_type=jnp.float32) + lp("ff1_b1"))
        h = jnp.dot(h, lp("ff1_w2"), preferred_element_type=jnp.float32) + lp("ff1_b2")
        x = x + 0.5 * h

        # ---------- attention: x = x + Attn(LN(x)) ----------
        xa = layer_norm(x, lp("attn_ln_g"), lp("attn_ln_b"))
        # single MXU push for q | k | v | value-residual-mix (lane-dense 128 cols)
        qkvm = jnp.dot(xa, lp("qkvm_w"), preferred_element_type=jnp.float32)   # (N, 128)
        to_out_w = lp("to_out_w")                                              # (INNER, DIM)
        attn_out = lp("to_out_b")                                              # (1, DIM) broadcast
        for hh in range(HEADS):
            c0 = hh * DIM_HEAD
            qh = qkvm[:, c0:c0 + DIM_HEAD]
            kh = qkvm[:, INNER + c0:INNER + c0 + DIM_HEAD]
            vh = qkvm[:, 2 * INNER + c0:2 * INNER + c0 + DIM_HEAD]
            if li == 0:
                value_residual[hh] = vh                      # first layer's v is the residual
            else:
                # v <- lerp(v, value_residual, sigmoid(mix)); mix columns were
                # pre-replicated across the 16 head lanes in the packed weight.
                mix = jax.nn.sigmoid(qkvm[:, 3 * INNER + c0:3 * INNER + c0 + DIM_HEAD])
                vh = vh + mix * (value_residual[hh] - vh)
            qh, kh = rope(qh), rope(kh)
            s = jnp.dot(qh, kh.T, preferred_element_type=jnp.float32) * scale
            s = s - jnp.max(s, axis=-1, keepdims=True)
            p = jnp.exp(s)
            p = p * pl.reciprocal(jnp.sum(p, axis=-1, keepdims=True), approx=True)
            oh = jnp.dot(p, vh, preferred_element_type=jnp.float32)            # (N, DIM_HEAD)
            attn_out = attn_out + jnp.dot(oh, to_out_w[c0:c0 + DIM_HEAD, :],
                                          preferred_element_type=jnp.float32)
        x = x + attn_out

        # ---------- conformer conv module: x = x + Conv(x) ----------
        xc = layer_norm(x, lp("conv_ln_g"), lp("conv_ln_b"))
        y = jnp.dot(xc, lp("pw1_w"), preferred_element_type=jnp.float32) + lp("pw1_b")  # (N, 128)
        y = y[:, :CONV_INNER] * jax.nn.sigmoid(y[:, CONV_INNER:])                       # GLU
        # depthwise conv (kernel 7, same padding) via precomputed shift matrices on the MXU
        dsw = lp("ds_w")                                                                # (K, C)
        acc = None
        for kk in range(CONV_KERNEL):
            shifted = jnp.dot(shift_ref[kk], y, preferred_element_type=jnp.float32)
            term = shifted * dsw[kk, :][None, :]
            acc = term if acc is None else acc + term
        y = swish(acc + lp("ds_b"))
        # ChanLayerNorm (f32 path): (y - mean) * clamp(var, 1e-6)^-1/2 * gamma
        mu = jnp.mean(y, axis=-1, keepdims=True)
        var = jnp.mean(jnp.square(y - mu), axis=-1, keepdims=True)
        y = (y - mu) * jax.lax.rsqrt(jnp.maximum(var, CHAN_LN_EPS)) * lp("chan_ln_g")
        y = jnp.dot(y, lp("pw2_w"), preferred_element_type=jnp.float32) + lp("pw2_b")
        x = x + y

        # ---------- ff2: x = x + 0.5 * FF(LN(x)) ----------
        h = layer_norm(x, lp("ff2_ln_g"), lp("ff2_ln_b"))
        h = swish(jnp.dot(h, lp("ff2_w1"), preferred_element_type=jnp.float32) + lp("ff2_b1"))
        h = jnp.dot(h, lp("ff2_w2"), preferred_element_type=jnp.float32) + lp("ff2_b2")
        x = x + 0.5 * h

        # ---------- post norm ----------
        x = layer_norm(x, lp("post_ln_g"), lp("post_ln_b"))

    # ---- fused heads (dim -> dim*q) + LogitHead.to_logits, padded to 128 lanes ----
    out = jnp.dot(x, fused_w_ref[...], preferred_element_type=jnp.float32) + fused_b_ref[...]
    out_ref[0] = out.astype(out_ref.dtype)


def fused_conformer_logits(x_emb, cos, sin, shift_mats, stacked, fused_w, fused_b):
    B, N, _ = x_emb.shape

    def full_spec(shape):
        rank = len(shape)
        return pl.BlockSpec(shape, lambda bb, _rank=rank: (0,) * _rank)

    in_specs = [pl.BlockSpec((1, N, DIM), lambda bb: (bb, 0, 0)),
                full_spec((N, DIM_HEAD)),            # cos
                full_spec((N, DIM_HEAD)),            # sin
                full_spec((CONV_KERNEL, N, N))]      # depthwise-conv shift matrices
    in_specs += [full_spec((DEPTH,) + shape) for _, shape in LAYER_PARAM_SPECS]
    in_specs += [full_spec((DIM, OUT_COLS)), full_spec((1, OUT_COLS))]

    ordered = [stacked[name] for name in LAYER_PARAM_NAMES]

    # NOTE: total weight working set is ~250 KB f32 (double buffered) -- far below
    # even v7x's 32 MiB scoped-VMEM default, so no vmem_limit_bytes override needed.
    return pl.pallas_call(
        _logit_head_kernel,
        grid=(B,),
        in_specs=in_specs,
        out_specs=pl.BlockSpec((1, N, OUT_COLS), lambda bb: (bb, 0, 0)),
        out_shape=jax.ShapeDtypeStruct((B, N, OUT_COLS), jnp.float32),
        compiler_params=pltpu.CompilerParams(dimension_semantics=("parallel",)),
    )(x_emb, cos, sin, shift_mats, *ordered, fused_w, fused_b)


# =========================== wrapper-side packing (plain JAX) ================

def rotary_cos_sin(n, dh, theta=ROPE_THETA):
    inv_freq = 1.0 / (theta ** (jnp.arange(0, dh, 2, dtype=jnp.float32) / dh))
    t = jnp.arange(n, dtype=jnp.float32)
    freqs = jnp.einsum("i,j->ij", t, inv_freq)
    freqs = jnp.concatenate([freqs, freqs], axis=-1)    # (n, dh)
    return jnp.cos(freqs), jnp.sin(freqs)


def make_shift_matrices(n):
    # shift_mats[k] @ y == (y zero-padded by (PAD_L, PAD_R) rows)[k : k + n]
    rows = jnp.arange(n)[:, None]
    cols = jnp.arange(n)[None, :]
    return jnp.stack(
        [(cols == rows + (k - PAD_L)).astype(jnp.float32) for k in range(CONV_KERNEL)],
        axis=0)                                          # (K, n, n)


def pack_params(params):
    """Concatenate attention projections, replicate mix columns, stack over layers."""
    per_layer = []
    for lp in params["layers"]:
        if lp["to_mix_w"] is not None:
            mix_cols = jnp.repeat(lp["to_mix_w"], DIM_HEAD, axis=1)   # (DIM, HEADS*DIM_HEAD)
        else:
            mix_cols = jnp.zeros((DIM, INNER), jnp.float32)           # unused in layer 0
        qkvm_w = jnp.concatenate([lp["to_q_w"], lp["to_kv_w"], mix_cols], axis=1)  # (DIM, 128)
        per_layer.append({
            "ff1_ln_g": lp["ff1_ln_g"].reshape(1, DIM), "ff1_ln_b": lp["ff1_ln_b"].reshape(1, DIM),
            "ff1_w1": lp["ff1_w1"], "ff1_b1": lp["ff1_b1"].reshape(1, FF_DIM),
            "ff1_w2": lp["ff1_w2"], "ff1_b2": lp["ff1_b2"].reshape(1, DIM),
            "attn_ln_g": lp["attn_ln_g"].reshape(1, DIM), "attn_ln_b": lp["attn_ln_b"].reshape(1, DIM),
            "qkvm_w": qkvm_w,
            "to_out_w": lp["to_out_w"], "to_out_b": lp["to_out_b"].reshape(1, DIM),
            "conv_ln_g": lp["conv_ln_g"].reshape(1, DIM), "conv_ln_b": lp["conv_ln_b"].reshape(1, DIM),
            "pw1_w": lp["conv_pw1_w"], "pw1_b": lp["conv_pw1_b"].reshape(1, 2 * CONV_INNER),
            "ds_w": lp["ds_w"], "ds_b": lp["ds_b"].reshape(1, CONV_INNER),
            "chan_ln_g": lp["chan_ln_g"].reshape(1, CONV_INNER),
            "pw2_w": lp["conv_pw2_w"], "pw2_b": lp["conv_pw2_b"].reshape(1, DIM),
            "ff2_ln_g": lp["ff2_ln_g"].reshape(1, DIM), "ff2_ln_b": lp["ff2_ln_b"].reshape(1, DIM),
            "ff2_w1": lp["ff2_w1"], "ff2_b1": lp["ff2_b1"].reshape(1, FF_DIM),
            "ff2_w2": lp["ff2_w2"], "ff2_b2": lp["ff2_b2"].reshape(1, DIM),
            "post_ln_g": lp["post_ln_g"].reshape(1, DIM), "post_ln_b": lp["post_ln_b"].reshape(1, DIM),
        })
    return {name: jnp.stack([r[name] for r in per_layer], axis=0) for name in LAYER_PARAM_NAMES}


def fuse_heads_logit(heads_w, heads_b, logit_w, logit_b):
    """Fold heads (dim -> dim*q, '(h d)' column order) and to_logits (dim -> L) into one matmul."""
    hw = heads_w.reshape(DIM, NUM_QUANT, DIM)
    w = jnp.einsum("dqe,el->dql", hw, logit_w).reshape(DIM, HEAD_LOGIT_COLS)
    b = (heads_b.reshape(NUM_QUANT, DIM) @ logit_w + logit_b).reshape(HEAD_LOGIT_COLS)
    w_pad = jnp.zeros((DIM, OUT_COLS), jnp.float32).at[:, :HEAD_LOGIT_COLS].set(w)
    b_pad = jnp.zeros((1, OUT_COLS), jnp.float32).at[:, :HEAD_LOGIT_COLS].set(b)
    return w_pad, b_pad


def logit_head_forward(tokens, params):
    b = tokens.shape[0]
    n = tokens.shape[1] // NUM_QUANT
    ids = tokens.reshape(b, n, NUM_QUANT) + params["quantizer_offsets"]
    # TODO(synk): embedding gather + per-quantizer sum kept in plain JAX glue
    # (tiny data-dependent gather; a DMA-gather kernel is not worth it here).
    x = params["code_embeds"][ids].sum(axis=2)                      # (b, n, DIM)

    cos, sin = rotary_cos_sin(n, DIM_HEAD)
    shift_mats = make_shift_matrices(n)
    stacked = pack_params(params)
    fused_w, fused_b = fuse_heads_logit(params["heads_w"], params["heads_b"],
                                        params["logit_w"], params["logit_b"])

    out = fused_conformer_logits(x, cos, sin, shift_mats, stacked, fused_w, fused_b)  # (b, n, 128)
    logits = out[:, :, :HEAD_LOGIT_COLS].reshape(b, n, NUM_QUANT, LOGIT_DIM)
    return logits.reshape(b, n * NUM_QUANT, LOGIT_DIM)


# =========================== deterministic parameter init ====================

def init_params(key):
    keys = iter(jax.random.split(key, 128))
    nrm = lambda shape, s=0.02: s * jax.random.normal(next(keys), shape, jnp.float32)

    layers = []
    for li in range(DEPTH):
        is_first = li == 0
        lp = dict(
            ff1_ln_g=jnp.ones(DIM), ff1_ln_b=jnp.zeros(DIM),
            ff1_w1=nrm((DIM, FF_DIM)), ff1_b1=nrm((FF_DIM,)),
            ff1_w2=nrm((FF_DIM, DIM)), ff1_b2=nrm((DIM,)),
            attn_ln_g=jnp.ones(DIM), attn_ln_b=jnp.zeros(DIM),
            to_q_w=nrm((DIM, INNER)),
            to_kv_w=nrm((DIM, 2 * INNER)),
            to_out_w=nrm((INNER, DIM)), to_out_b=nrm((DIM,)),
            to_mix_w=None if is_first else nrm((DIM, HEADS)),
            conv_ln_g=jnp.ones(DIM), conv_ln_b=jnp.zeros(DIM),
            conv_pw1_w=nrm((DIM, 2 * CONV_INNER)), conv_pw1_b=nrm((2 * CONV_INNER,)),
            ds_w=nrm((CONV_KERNEL, CONV_INNER)), ds_b=nrm((CONV_INNER,)),
            chan_ln_g=jnp.ones(CONV_INNER),
            conv_pw2_w=nrm((CONV_INNER, DIM)), conv_pw2_b=nrm((DIM,)),
            ff2_ln_g=jnp.ones(DIM), ff2_ln_b=jnp.zeros(DIM),
            ff2_w1=nrm((DIM, FF_DIM)), ff2_b1=nrm((FF_DIM,)),
            ff2_w2=nrm((FF_DIM, DIM)), ff2_b2=nrm((DIM,)),
            post_ln_g=jnp.ones(DIM), post_ln_b=jnp.zeros(DIM),
        )
        layers.append(lp)

    return dict(
        code_embeds=nrm((NUM_CODES_WITH_MASK * NUM_QUANT, DIM)),
        quantizer_offsets=jnp.arange(NUM_QUANT, dtype=jnp.int32) * NUM_CODES_WITH_MASK,
        layers=layers,
        heads_w=nrm((DIM, DIM * NUM_QUANT)), heads_b=nrm((DIM * NUM_QUANT,)),
        logit_w=nrm((DIM, LOGIT_DIM)), logit_b=nrm((LOGIT_DIM,)),
    )


# =========================== main ============================================

if __name__ == "__main__":
    key = jax.random.PRNGKey(0)
    kp, kx = jax.random.split(key)
    params = init_params(kp)

    B, N_TOK = 2, 8                                   # conformer sequence length = 8
    tokens = jax.random.randint(kx, (B, N_TOK * NUM_QUANT), 0,
                                NUM_CODES_WITH_MASK, dtype=jnp.int32)

    fwd = jax.jit(logit_head_forward)
    logits = fwd(tokens, params)
    jax.block_until_ready(logits)
    assert logits.shape == (B, N_TOK * NUM_QUANT, LOGIT_DIM), logits.shape
    assert jnp.all(jnp.isfinite(logits))
    print("KERNEL_OK")
</pallas_src>

<mosaic_0001>
module attributes {stable_mosaic.version = 11 : i64} {
  func.func @_logit_head_kernel(%arg0: i32, %arg1: memref<1x8x32xf32, #tpu.memory_space<vmem>>, %arg2: memref<8x16xf32, #tpu.memory_space<vmem>>, %arg3: memref<8x16xf32, #tpu.memory_space<vmem>>, %arg4: memref<7x8x8xf32, #tpu.memory_space<vmem>>, %arg5: memref<2x1x32xf32, #tpu.memory_space<vmem>>, %arg6: memref<2x1x32xf32, #tpu.memory_space<vmem>>, %arg7: memref<2x32x128xf32, #tpu.memory_space<vmem>>, %arg8: memref<2x1x128xf32, #tpu.memory_space<vmem>>, %arg9: memref<2x128x32xf32, #tpu.memory_space<vmem>>, %arg10: memref<2x1x32xf32, #tpu.memory_space<vmem>>, %arg11: memref<2x1x32xf32, #tpu.memory_space<vmem>>, %arg12: memref<2x1x32xf32, #tpu.memory_space<vmem>>, %arg13: memref<2x32x128xf32, #tpu.memory_space<vmem>>, %arg14: memref<2x32x32xf32, #tpu.memory_space<vmem>>, %arg15: memref<2x1x32xf32, #tpu.memory_space<vmem>>, %arg16: memref<2x1x32xf32, #tpu.memory_space<vmem>>, %arg17: memref<2x1x32xf32, #tpu.memory_space<vmem>>, %arg18: memref<2x32x128xf32, #tpu.memory_space<vmem>>, %arg19: memref<2x1x128xf32, #tpu.memory_space<vmem>>, %arg20: memref<2x7x64xf32, #tpu.memory_space<vmem>>, %arg21: memref<2x1x64xf32, #tpu.memory_space<vmem>>, %arg22: memref<2x1x64xf32, #tpu.memory_space<vmem>>, %arg23: memref<2x64x32xf32, #tpu.memory_space<vmem>>, %arg24: memref<2x1x32xf32, #tpu.memory_space<vmem>>, %arg25: memref<2x1x32xf32, #tpu.memory_space<vmem>>, %arg26: memref<2x1x32xf32, #tpu.memory_space<vmem>>, %arg27: memref<2x32x128xf32, #tpu.memory_space<vmem>>, %arg28: memref<2x1x128xf32, #tpu.memory_space<vmem>>, %arg29: memref<2x128x32xf32, #tpu.memory_space<vmem>>, %arg30: memref<2x1x32xf32, #tpu.memory_space<vmem>>, %arg31: memref<2x1x32xf32, #tpu.memory_space<vmem>>, %arg32: memref<2x1x32xf32, #tpu.memory_space<vmem>>, %arg33: memref<32x128xf32, #tpu.memory_space<vmem>>, %arg34: memref<1x128xf32, #tpu.memory_space<vmem>>, %arg35: memref<1x8x128xf32, #tpu.memory_space<vmem>>) attributes {dimension_semantics = [#tpu.dimension_semantics<parallel>], iteration_bounds = array<i64: 2>, scalar_prefetch = 0 : i64, scratch_operands = 0 : i64, tpu.core_type = #tpu.core_type<tc>, window_params = [{transform_indices = @transform_0, window_bounds = array<i64: 1, 8, 32>}, {pipeline_mode = #tpu.pipeline_mode<synchronous>, transform_indices = @transform_1, window_bounds = array<i64: 8, 16>}, {pipeline_mode = #tpu.pipeline_mode<synchronous>, transform_indices = @transform_2, window_bounds = array<i64: 8, 16>}, {pipeline_mode = #tpu.pipeline_mode<synchronous>, transform_indices = @transform_3, window_bounds = array<i64: 7, 8, 8>}, {pipeline_mode = #tpu.pipeline_mode<synchronous>, transform_indices = @transform_4, window_bounds = array<i64: 2, 1, 32>}, {pipeline_mode = #tpu.pipeline_mode<synchronous>, transform_indices = @transform_5, window_bounds = array<i64: 2, 1, 32>}, {pipeline_mode = #tpu.pipeline_mode<synchronous>, transform_indices = @transform_6, window_bounds = array<i64: 2, 32, 128>}, {pipeline_mode = #tpu.pipeline_mode<synchronous>, transform_indices = @transform_7, window_bounds = array<i64: 2, 1, 128>}, {pipeline_mode = #tpu.pipeline_mode<synchronous>, transform_indices = @transform_8, window_bounds = array<i64: 2, 128, 32>}, {pipeline_mode = #tpu.pipeline_mode<synchronous>, transform_indices = @transform_9, window_bounds = array<i64: 2, 1, 32>}, {pipeline_mode = #tpu.pipeline_mode<synchronous>, transform_indices = @transform_10, window_bounds = array<i64: 2, 1, 32>}, {pipeline_mode = #tpu.pipeline_mode<synchronous>, transform_indices = @transform_11, window_bounds = array<i64: 2, 1, 32>}, {pipeline_mode = #tpu.pipeline_mode<synchronous>, transform_indices = @transform_12, window_bounds = array<i64: 2, 32, 128>}, {pipeline_mode = #tpu.pipeline_mode<synchronous>, transform_indices = @transform_13, window_bounds = array<i64: 2, 32, 32>}, {pipeline_mode = #tpu.pipeline_mode<synchronous>, transform_indices = @transform_14, window_bounds = array<i64: 2, 1, 32>}, {pipeline_mode = #tpu.pipeline_mode<synchronous>, transform_indices = @transform_15, window_bounds = array<i64: 2, 1, 32>}, {pipeline_mode = #tpu.pipeline_mode<synchronous>, transform_indices = @transform_16, window_bounds = array<i64: 2, 1, 32>}, {pipeline_mode = #tpu.pipeline_mode<synchronous>, transform_indices = @transform_17, window_bounds = array<i64: 2, 32, 128>}, {pipeline_mode = #tpu.pipeline_mode<synchronous>, transform_indices = @transform_18, window_bounds = array<i64: 2, 1, 128>}, {pipeline_mode = #tpu.pipeline_mode<synchronous>, transform_indices = @transform_19, window_bounds = array<i64: 2, 7, 64>}, {pipeline_mode = #tpu.pipeline_mode<synchronous>, transform_indices = @transform_20, window_bounds = array<i64: 2, 1, 64>}, {pipeline_mode = #tpu.pipeline_mode<synchronous>, transform_indices = @transform_21, window_bounds = array<i64: 2, 1, 64>}, {pipeline_mode = #tpu.pipeline_mode<synchronous>, transform_indices = @transform_22, window_bounds = array<i64: 2, 64, 32>}, {pipeline_mode = #tpu.pipeline_mode<synchronous>, transform_indices = @transform_23, window_bounds = array<i64: 2, 1, 32>}, {pipeline_mode = #tpu.pipeline_mode<synchronous>, transform_indices = @transform_24, window_bounds = array<i64: 2, 1, 32>}, {pipeline_mode = #tpu.pipeline_mode<synchronous>, transform_indices = @transform_25, window_bounds = array<i64: 2, 1, 32>}, {pipeline_mode = #tpu.pipeline_mode<synchronous>, transform_indices = @transform_26, window_bounds = array<i64: 2, 32, 128>}, {pipeline_mode = #tpu.pipeline_mode<synchronous>, transform_indices = @transform_27, window_bounds = array<i64: 2, 1, 128>}, {pipeline_mode = #tpu.pipeline_mode<synchronous>, transform_indices = @transform_28, window_bounds = array<i64: 2, 128, 32>}, {pipeline_mode = #tpu.pipeline_mode<synchronous>, transform_indices = @transform_29, window_bounds = array<i64: 2, 1, 32>}, {pipeline_mode = #tpu.pipeline_mode<synchronous>, transform_indices = @transform_30, window_bounds = array<i64: 2, 1, 32>}, {pipeline_mode = #tpu.pipeline_mode<synchronous>, transform_indices = @transform_31, window_bounds = array<i64: 2, 1, 32>}, {pipeline_mode = #tpu.pipeline_mode<synchronous>, transform_indices = @transform_32, window_bounds = array<i64: 32, 128>}, {pipeline_mode = #tpu.pipeline_mode<synchronous>, transform_indices = @transform_33, window_bounds = array<i64: 1, 128>}, {transform_indices = @transform_34, window_bounds = array<i64: 1, 8, 128>}]} {
    %c0 = arith.constant 0 : index
    %c0_0 = arith.constant 0 : index
    %c0_1 = arith.constant 0 : index
    %0 = vector.load %arg1[%c0, %c0_0, %c0_1] : memref<1x8x32xf32, #tpu.memory_space<vmem>>, vector<1x8x32xf32>
    %1 = vector.shape_cast %0 : vector<1x8x32xf32> to vector<8x32xf32>
    %c0_2 = arith.constant 0 : index
    %c0_3 = arith.constant 0 : index
    %2 = vector.load %arg2[%c0_2, %c0_3] : memref<8x16xf32, #tpu.memory_space<vmem>>, vector<8x16xf32>
    %c0_4 = arith.constant 0 : index
    %c0_5 = arith.constant 0 : index
    %3 = vector.load %arg3[%c0_4, %c0_5] : memref<8x16xf32, #tpu.memory_space<vmem>>, vector<8x16xf32>
    %c0_6 = arith.constant 0 : index
    %c0_7 = arith.constant 0 : index
    %c0_8 = arith.constant 0 : index
    %4 = vector.load %arg5[%c0_6, %c0_7, %c0_8] : memref<2x1x32xf32, #tpu.memory_space<vmem>>, vector<1x1x32xf32>
    %5 = vector.shape_cast %4 : vector<1x1x32xf32> to vector<1x32xf32>
    %c0_9 = arith.constant 0 : index
    %c0_10 = arith.constant 0 : index
    %c0_11 = arith.constant 0 : index
    %6 = vector.load %arg6[%c0_9, %c0_10, %c0_11] : memref<2x1x32xf32, #tpu.memory_space<vmem>>, vector<1x1x32xf32>
    %7 = vector.shape_cast %6 : vector<1x1x32xf32> to vector<1x32xf32>
    %cst = arith.constant dense<0.000000e+00> : vector<8xf32>
    %8 = vector.multi_reduction <add>, %1, %cst [1] : vector<8x32xf32> to vector<8xf32>
    %9 = vector.shape_cast %8 : vector<8xf32> to vector<8x1xf32>
    %cst_12 = arith.constant 3.200000e+01 : f32
    %10 = vector.broadcast %cst_12 : f32 to vector<8x1xf32>
    %11 = arith.divf %9, %10 : vector<8x1xf32>
    %12 = vector.broadcast %11 : vector<8x1xf32> to vector<8x32xf32>
    %13 = arith.subf %1, %12 : vector<8x32xf32>
    %14 = arith.mulf %13, %13 : vector<8x32xf32>
    %cst_13 = arith.constant dense<0.000000e+00> : vector<8xf32>
    %15 = vector.multi_reduction <add>, %14, %cst_13 [1] : vector<8x32xf32> to vector<8xf32>
    %16 = vector.shape_cast %15 : vector<8xf32> to vector<8x1xf32>
    %cst_14 = arith.constant 3.200000e+01 : f32
    %17 = vector.broadcast %cst_14 : f32 to vector<8x1xf32>
    %18 = arith.divf %16, %17 : vector<8x1xf32>
    %19 = vector.broadcast %11 : vector<8x1xf32> to vector<8x32xf32>
    %20 = arith.subf %1, %19 : vector<8x32xf32>
    %cst_15 = arith.constant 9.99999974E-6 : f32
    %21 = vector.broadcast %cst_15 : f32 to vector<8x1xf32>
    %22 = arith.addf %18, %21 : vector<8x1xf32>
    %23 = math.rsqrt %22 : vector<8x1xf32>
    %24 = vector.broadcast %23 : vector<8x1xf32> to vector<8x32xf32>
    %25 = arith.mulf %20, %24 : vector<8x32xf32>
    %26 = vector.broadcast %5 : vector<1x32xf32> to vector<8x32xf32>
    %27 = arith.mulf %25, %26 : vector<8x32xf32>
    %28 = vector.broadcast %7 : vector<1x32xf32> to vector<8x32xf32>
    %29 = arith.addf %27, %28 : vector<8x32xf32>
    %c0_16 = arith.constant 0 : index
    %c0_17 = arith.constant 0 : index
    %c0_18 = arith.constant 0 : index
    %30 = vector.load %arg7[%c0_16, %c0_17, %c0_18] : memref<2x32x128xf32, #tpu.memory_space<vmem>>, vector<1x32x128xf32>
    %31 = vector.shape_cast %30 : vector<1x32x128xf32> to vector<32x128xf32>
    %cst_19 = arith.constant dense<0.000000e+00> : vector<8x128xf32>
    %32 = tpu.matmul %29, %31, %cst_19 {dimension_numbers = #tpu.dot_dimension_numbers<[1], [0], [0], [1], [0, 0, 1, 1], [], []>} : vector<8x32xf32>, vector<32x128xf32>, vector<8x128xf32> -> vector<8x128xf32>
    %c0_20 = arith.constant 0 : index
    %c0_21 = arith.constant 0 : index
    %c0_22 = arith.constant 0 : index
    %33 = vector.load %arg8[%c0_20, %c0_21, %c0_22] : memref<2x1x128xf32, #tpu.memory_space<vmem>>, vector<1x1x128xf32>
    %34 = vector.shape_cast %33 : vector<1x1x128xf32> to vector<1x128xf32>
    %35 = vector.broadcast %34 : vector<1x128xf32> to vector<8x128xf32>
    %36 = arith.addf %32, %35 : vector<8x128xf32>
    %37 = arith.negf %36 : vector<8x128xf32>
    %38 = math.exp %37 : vector<8x128xf32>
    %cst_23 = arith.constant 1.000000e+00 : f32
    %39 = vector.broadcast %cst_23 : f32 to vector<8x128xf32>
    %40 = arith.addf %39, %38 : vector<8x128xf32>
    %41 = arith.divf %39, %40 : vector<8x128xf32>
    %42 = arith.mulf %36, %41 : vector<8x128xf32>
    %c0_24 = arith.constant 0 : index
    %c0_25 = arith.constant 0 : index
    %c0_26 = arith.constant 0 : index
    %43 = vector.load %arg9[%c0_24, %c0_25, %c0_26] : memref<2x128x32xf32, #tpu.memory_space<vmem>>, vector<1x128x32xf32>
    %44 = vector.shape_cast %43 : vector<1x128x32xf32> to vector<128x32xf32>
    %cst_27 = arith.constant dense<0.000000e+00> : vector<8x32xf32>
    %45 = tpu.matmul %42, %44, %cst_27 {dimension_numbers = #tpu.dot_dimension_numbers<[1], [0], [0], [1], [0, 0, 1, 1], [], []>} : vector<8x128xf32>, vector<128x32xf32>, vector<8x32xf32> -> vector<8x32xf32>
    %c0_28 = arith.constant 0 : index
    %c0_29 = arith.constant 0 : index
    %c0_30 = arith.constant 0 : index
    %46 = vector.load %arg10[%c0_28, %c0_29, %c0_30] : memref<2x1x32xf32, #tpu.memory_space<vmem>>, vector<1x1x32xf32>
    %47 = vector.shape_cast %46 : vector<1x1x32xf32> to vector<1x32xf32>
    %48 = vector.broadcast %47 : vector<1x32xf32> to vector<8x32xf32>
    %49 = arith.addf %45, %48 : vector<8x32xf32>
    %cst_31 = arith.constant 5.000000e-01 : f32
    %50 = vector.broadcast %cst_31 : f32 to vector<8x32xf32>
    %51 = arith.mulf %50, %49 : vector<8x32xf32>
    %52 = arith.addf %1, %51 : vector<8x32xf32>
    %c0_32 = arith.constant 0 : index
    %c0_33 = arith.constant 0 : index
    %c0_34 = arith.constant 0 : index
    %53 = vector.load %arg11[%c0_32, %c0_33, %c0_34] : memref<2x1x32xf32, #tpu.memory_space<vmem>>, vector<1x1x32xf32>
    %54 = vector.shape_cast %53 : vector<1x1x32xf32> to vector<1x32xf32>
    %c0_35 = arith.constant 0 : index
    %c0_36 = arith.constant 0 : index
    %c0_37 = arith.constant 0 : index
    %55 = vector.load %arg12[%c0_35, %c0_36, %c0_37] : memref<2x1x32xf32, #tpu.memory_space<vmem>>, vector<1x1x32xf32>
    %56 = vector.shape_cast %55 : vector<1x1x32xf32> to vector<1x32xf32>
    %cst_38 = arith.constant dense<0.000000e+00> : vector<8xf32>
    %57 = vector.multi_reduction <add>, %52, %cst_38 [1] : vector<8x32xf32> to vector<8xf32>
    %58 = vector.shape_cast %57 : vector<8xf32> to vector<8x1xf32>
    %cst_39 = arith.constant 3.200000e+01 : f32
    %59 = vector.broadcast %cst_39 : f32 to vector<8x1xf32>
    %60 = arith.divf %58, %59 : vector<8x1xf32>
    %61 = vector.broadcast %60 : vector<8x1xf32> to vector<8x32xf32>
    %62 = arith.subf %52, %61 : vector<8x32xf32>
    %63 = arith.mulf %62, %62 : vector<8x32xf32>
    %cst_40 = arith.constant dense<0.000000e+00> : vector<8xf32>
    %64 = vector.multi_reduction <add>, %63, %cst_40 [1] : vector<8x32xf32> to vector<8xf32>
    %65 = vector.shape_cast %64 : vector<8xf32> to vector<8x1xf32>
    %cst_41 = arith.constant 3.200000e+01 : f32
    %66 = vector.broadcast %cst_41 : f32 to vector<8x1xf32>
    %67 = arith.divf %65, %66 : vector<8x1xf32>
    %68 = vector.broadcast %60 : vector<8x1xf32> to vector<8x32xf32>
    %69 = arith.subf %52, %68 : vector<8x32xf32>
    %cst_42 = arith.constant 9.99999974E-6 : f32
    %70 = vector.broadcast %cst_42 : f32 to vector<8x1xf32>
    %71 = arith.addf %67, %70 : vector<8x1xf32>
    %72 = math.rsqrt %71 : vector<8x1xf32>
    %73 = vector.broadcast %72 : vector<8x1xf32> to vector<8x32xf32>
    %74 = arith.mulf %69, %73 : vector<8x32xf32>
    %75 = vector.broadcast %54 : vector<1x32xf32> to vector<8x32xf32>
    %76 = arith.mulf %74, %75 : vector<8x32xf32>
    %77 = vector.broadcast %56 : vector<1x32xf32> to vector<8x32xf32>
    %78 = arith.addf %76, %77 : vector<8x32xf32>
    %c0_43 = arith.constant 0 : index
    %c0_44 = arith.constant 0 : index
    %c0_45 = arith.constant 0 : index
    %79 = vector.load %arg13[%c0_43, %c0_44, %c0_45] : memref<2x32x128xf32, #tpu.memory_space<vmem>>, vector<1x32x128xf32>
    %80 = vector.shape_cast %79 : vector<1x32x128xf32> to vector<32x128xf32>
    %cst_46 = arith.constant dense<0.000000e+00> : vector<8x128xf32>
    %81 = tpu.matmul %78, %80, %cst_46 {dimension_numbers = #tpu.dot_dimension_numbers<[1], [0], [0], [1], [0, 0, 1, 1], [], []>} : vector<8x32xf32>, vector<32x128xf32>, vector<8x128xf32> -> vector<8x128xf32>
    %c0_47 = arith.constant 0 : index
    %c0_48 = arith.constant 0 : index
    %c0_49 = arith.constant 0 : index
    %82 = vector.load %arg14[%c0_47, %c0_48, %c0_49] : memref<2x32x32xf32, #tpu.memory_space<vmem>>, vector<1x32x32xf32>
    %83 = vector.shape_cast %82 : vector<1x32x32xf32> to vector<32x32xf32>
    %c0_50 = arith.constant 0 : index
    %c0_51 = arith.constant 0 : index
    %c0_52 = arith.constant 0 : index
    %84 = vector.load %arg15[%c0_50, %c0_51, %c0_52] : memref<2x1x32xf32, #tpu.memory_space<vmem>>, vector<1x1x32xf32>
    %85 = vector.shape_cast %84 : vector<1x1x32xf32> to vector<1x32xf32>
    %86 = vector.extract_strided_slice %81 {offsets = [0, 0], sizes = [8, 16], strides = [1, 1]} : vector<8x128xf32> to vector<8x16xf32>
    %87 = vector.extract_strided_slice %81 {offsets = [0, 32], sizes = [8, 16], strides = [1, 1]} : vector<8x128xf32> to vector<8x16xf32>
    %88 = vector.extract_strided_slice %81 {offsets = [0, 64], sizes = [8, 16], strides = [1, 1]} : vector<8x128xf32> to vector<8x16xf32>
    %89 = vector.extract_strided_slice %86 {offsets = [0, 8], sizes = [8, 8], strides = [1, 1]} : vector<8x16xf32> to vector<8x8xf32>
    %cst_53 = arith.constant 0.000000e+00 : f32
    %90 = vector.broadcast %cst_53 : f32 to vector<8x8xf32>
    %91 = arith.subf %90, %89 : vector<8x8xf32>
    %92 = vector.extract_strided_slice %86 {offsets = [0, 0], sizes = [8, 8], strides = [1, 1]} : vector<8x16xf32> to vector<8x8xf32>
    %93 = tpu.concatenate %91, %92 in 1 : vector<8x8xf32>, vector<8x8xf32> -> vector<8x16xf32>
    %94 = arith.mulf %86, %2 : vector<8x16xf32>
    %95 = arith.mulf %93, %3 : vector<8x16xf32>
    %96 = arith.addf %94, %95 : vector<8x16xf32>
    %97 = vector.extract_strided_slice %87 {offsets = [0, 8], sizes = [8, 8], strides = [1, 1]} : vector<8x16xf32> to vector<8x8xf32>
    %cst_54 = arith.constant 0.000000e+00 : f32
    %98 = vector.broadcast %cst_54 : f32 to vector<8x8xf32>
    %99 = arith.subf %98, %97 : vector<8x8xf32>
    %100 = vector.extract_strided_slice %87 {offsets = [0, 0], sizes = [8, 8], strides = [1, 1]} : vector<8x16xf32> to vector<8x8xf32>
    %101 = tpu.concatenate %99, %100 in 1 : vector<8x8xf32>, vector<8x8xf32> -> vector<8x16xf32>
    %102 = arith.mulf %87, %2 : vector<8x16xf32>
    %103 = arith.mulf %101, %3 : vector<8x16xf32>
    %104 = arith.addf %102, %103 : vector<8x16xf32>
    %105 = tpu.transpose %104, [1, 0] : vector<8x16xf32> -> vector<16x8xf32>
    %cst_55 = arith.constant dense<0.000000e+00> : vector<8x8xf32>
    %106 = tpu.matmul %96, %105, %cst_55 {dimension_numbers = #tpu.dot_dimension_numbers<[1], [0], [0], [1], [0, 0, 1, 1], [], []>} : vector<8x16xf32>, vector<16x8xf32>, vector<8x8xf32> -> vector<8x8xf32>
    %cst_56 = arith.constant 2.500000e-01 : f32
    %107 = vector.broadcast %cst_56 : f32 to vector<8x8xf32>
    %108 = arith.mulf %106, %107 : vector<8x8xf32>
    %cst_57 = arith.constant dense<0xFF800000> : vector<8xf32>
    %109 = vector.multi_reduction <maximumf>, %108, %cst_57 [1] : vector<8x8xf32> to vector<8xf32>
    %110 = vector.shape_cast %109 : vector<8xf32> to vector<8x1xf32>
    %111 = vector.broadcast %110 : vector<8x1xf32> to vector<8x8xf32>
    %112 = arith.subf %108, %111 : vector<8x8xf32>
    %113 = math.exp %112 : vector<8x8xf32>
    %cst_58 = arith.constant dense<0.000000e+00> : vector<8xf32>
    %114 = vector.multi_reduction <add>, %113, %cst_58 [1] : vector<8x8xf32> to vector<8xf32>
    %115 = vector.shape_cast %114 : vector<8xf32> to vector<8x1xf32>
    %116 = tpu.reciprocal %115 {approx = true} : vector<8x1xf32> -> vector<8x1xf32>
    %117 = vector.broadcast %116 : vector<8x1xf32> to vector<8x8xf32>
    %118 = arith.mulf %113, %117 : vector<8x8xf32>
    %cst_59 = arith.constant dense<0.000000e+00> : vector<8x16xf32>
    %119 = tpu.matmul %118, %88, %cst_59 {dimension_numbers = #tpu.dot_dimension_numbers<[1], [0], [0], [1], [0, 0, 1, 1], [], []>} : vector<8x8xf32>, vector<8x16xf32>, vector<8x16xf32> -> vector<8x16xf32>
    %120 = vector.extract_strided_slice %83 {offsets = [0, 0], sizes = [16, 32], strides = [1, 1]} : vector<32x32xf32> to vector<16x32xf32>
    %cst_60 = arith.constant dense<0.000000e+00> : vector<8x32xf32>
    %121 = tpu.matmul %119, %120, %cst_60 {dimension_numbers = #tpu.dot_dimension_numbers<[1], [0], [0], [1], [0, 0, 1, 1], [], []>} : vector<8x16xf32>, vector<16x32xf32>, vector<8x32xf32> -> vector<8x32xf32>
    %122 = vector.broadcast %85 : vector<1x32xf32> to vector<8x32xf32>
    %123 = arith.addf %122, %121 : vector<8x32xf32>
    %124 = vector.extract_strided_slice %81 {offsets = [0, 16], sizes = [8, 16], strides = [1, 1]} : vector<8x128xf32> to vector<8x16xf32>
    %125 = vector.extract_strided_slice %81 {offsets = [0, 48], sizes = [8, 16], strides = [1, 1]} : vector<8x128xf32> to vector<8x16xf32>
    %126 = vector.extract_strided_slice %81 {offsets = [0, 80], sizes = [8, 16], strides = [1, 1]} : vector<8x128xf32> to vector<8x16xf32>
    %127 = vector.extract_strided_slice %124 {offsets = [0, 8], sizes = [8, 8], strides = [1, 1]} : vector<8x16xf32> to vector<8x8xf32>
    %cst_61 = arith.constant 0.000000e+00 : f32
    %128 = vector.broadcast %cst_61 : f32 to vector<8x8xf32>
    %129 = arith.subf %128, %127 : vector<8x8xf32>
    %130 = vector.extract_strided_slice %124 {offsets = [0, 0], sizes = [8, 8], strides = [1, 1]} : vector<8x16xf32> to vector<8x8xf32>
    %131 = tpu.concatenate %129, %130 in 1 : vector<8x8xf32>, vector<8x8xf32> -> vector<8x16xf32>
    %132 = arith.mulf %124, %2 : vector<8x16xf32>
    %133 = arith.mulf %131, %3 : vector<8x16xf32>
    %134 = arith.addf %132, %133 : vector<8x16xf32>
    %135 = vector.extract_strided_slice %125 {offsets = [0, 8], sizes = [8, 8], strides = [1, 1]} : vector<8x16xf32> to vector<8x8xf32>
    %cst_62 = arith.constant 0.000000e+00 : f32
    %136 = vector.broadcast %cst_62 : f32 to vector<8x8xf32>
    %137 = arith.subf %136, %135 : vector<8x8xf32>
    %138 = vector.extract_strided_slice %125 {offsets = [0, 0], sizes = [8, 8], strides = [1, 1]} : vector<8x16xf32> to vector<8x8xf32>
    %139 = tpu.concatenate %137, %138 in 1 : vector<8x8xf32>, vector<8x8xf32> -> vector<8x16xf32>
    %140 = arith.mulf %125, %2 : vector<8x16xf32>
    %141 = arith.mulf %139, %3 : vector<8x16xf32>
    %142 = arith.addf %140, %141 : vector<8x16xf32>
    %143 = tpu.transpose %142, [1, 0] : vector<8x16xf32> -> vector<16x8xf32>
    %cst_63 = arith.constant dense<0.000000e+00> : vector<8x8xf32>
    %144 = tpu.matmul %134, %143, %cst_63 {dimension_numbers = #tpu.dot_dimension_numbers<[1], [0], [0], [1], [0, 0, 1, 1], [], []>} : vector<8x16xf32>, vector<16x8xf32>, vector<8x8xf32> -> vector<8x8xf32>
    %cst_64 = arith.constant 2.500000e-01 : f32
    %145 = vector.broadcast %cst_64 : f32 to vector<8x8xf32>
    %146 = arith.mulf %144, %145 : vector<8x8xf32>
    %cst_65 = arith.constant dense<0xFF800000> : vector<8xf32>
    %147 = vector.multi_reduction <maximumf>, %146, %cst_65 [1] : vector<8x8xf32> to vector<8xf32>
    %148 = vector.shape_cast %147 : vector<8xf32> to vector<8x1xf32>
    %149 = vector.broadcast %148 : vector<8x1xf32> to vector<8x8xf32>
    %150 = arith.subf %146, %149 : vector<8x8xf32>
    %151 = math.exp %150 : vector<8x8xf32>
    %cst_66 = arith.constant dense<0.000000e+00> : vector<8xf32>
    %152 = vector.multi_reduction <add>, %151, %cst_66 [1] : vector<8x8xf32> to vector<8xf32>
    %153 = vector.shape_cast %152 : vector<8xf32> to vector<8x1xf32>
    %154 = tpu.reciprocal %153 {approx = true} : vector<8x1xf32> -> vector<8x1xf32>
    %155 = vector.broadcast %154 : vector<8x1xf32> to vector<8x8xf32>
    %156 = arith.mulf %151, %155 : vector<8x8xf32>
    %cst_67 = arith.constant dense<0.000000e+00> : vector<8x16xf32>
    %157 = tpu.matmul %156, %126, %cst_67 {dimension_numbers = #tpu.dot_dimension_numbers<[1], [0], [0], [1], [0, 0, 1, 1], [], []>} : vector<8x8xf32>, vector<8x16xf32>, vector<8x16xf32> -> vector<8x16xf32>
    %158 = vector.extract_strided_slice %83 {offsets = [16, 0], sizes = [16, 32], strides = [1, 1]} : vector<32x32xf32> to vector<16x32xf32>
    %cst_68 = arith.constant dense<0.000000e+00> : vector<8x32xf32>
    %159 = tpu.matmul %157, %158, %cst_68 {dimension_numbers = #tpu.dot_dimension_numbers<[1], [0], [0], [1], [0, 0, 1, 1], [], []>} : vector<8x16xf32>, vector<16x32xf32>, vector<8x32xf32> -> vector<8x32xf32>
    %160 = arith.addf %123, %159 : vector<8x32xf32>
    %161 = arith.addf %52, %160 : vector<8x32xf32>
    %c0_69 = arith.constant 0 : index
    %c0_70 = arith.constant 0 : index
    %c0_71 = arith.constant 0 : index
    %162 = vector.load %arg16[%c0_69, %c0_70, %c0_71] : memref<2x1x32xf32, #tpu.memory_space<vmem>>, vector<1x1x32xf32>
    %163 = vector.shape_cast %162 : vector<1x1x32xf32> to vector<1x32xf32>
    %c0_72 = arith.constant 0 : index
    %c0_73 = arith.constant 0 : index
    %c0_74 = arith.constant 0 : index
    %164 = vector.load %arg17[%c0_72, %c0_73, %c0_74] : memref<2x1x32xf32, #tpu.memory_space<vmem>>, vector<1x1x32xf32>
    %165 = vector.shape_cast %164 : vector<1x1x32xf32> to vector<1x32xf32>
    %cst_75 = arith.constant dense<0.000000e+00> : vector<8xf32>
    %166 = vector.multi_reduction <add>, %161, %cst_75 [1] : vector<8x32xf32> to vector<8xf32>
    %167 = vector.shape_cast %166 : vector<8xf32> to vector<8x1xf32>
    %cst_76 = arith.constant 3.200000e+01 : f32
    %168 = vector.broadcast %cst_76 : f32 to vector<8x1xf32>
    %169 = arith.divf %167, %168 : vector<8x1xf32>
    %170 = vector.broadcast %169 : vector<8x1xf32> to vector<8x32xf32>
    %171 = arith.subf %161, %170 : vector<8x32xf32>
    %172 = arith.mulf %171, %171 : vector<8x32xf32>
    %cst_77 = arith.constant dense<0.000000e+00> : vector<8xf32>
    %173 = vector.multi_reduction <add>, %172, %cst_77 [1] : vector<8x32xf32> to vector<8xf32>
    %174 = vector.shape_cast %173 : vector<8xf32> to vector<8x1xf32>
    %cst_78 = arith.constant 3.200000e+01 : f32
    %175 = vector.broadcast %cst_78 : f32 to vector<8x1xf32>
    %176 = arith.divf %174, %175 : vector<8x1xf32>
    %177 = vector.broadcast %169 : vector<8x1xf32> to vector<8x32xf32>
    %178 = arith.subf %161, %177 : vector<8x32xf32>
    %cst_79 = arith.constant 9.99999974E-6 : f32
    %179 = vector.broadcast %cst_79 : f32 to vector<8x1xf32>
    %180 = arith.addf %176, %179 : vector<8x1xf32>
    %181 = math.rsqrt %180 : vector<8x1xf32>
    %182 = vector.broadcast %181 : vector<8x1xf32> to vector<8x32xf32>
    %183 = arith.mulf %178, %182 : vector<8x32xf32>
    %184 = vector.broadcast %163 : vector<1x32xf32> to vector<8x32xf32>
    %185 = arith.mulf %183, %184 : vector<8x32xf32>
    %186 = vector.broadcast %165 : vector<1x32xf32> to vector<8x32xf32>
    %187 = arith.addf %185, %186 : vector<8x32xf32>
    %c0_80 = arith.constant 0 : index
    %c0_81 = arith.constant 0 : index
    %c0_82 = arith.constant 0 : index
    %188 = vector.load %arg18[%c0_80, %c0_81, %c0_82] : memref<2x32x128xf32, #tpu.memory_space<vmem>>, vector<1x32x128xf32>
    %189 = vector.shape_cast %188 : vector<1x32x128xf32> to vector<32x128xf32>
    %cst_83 = arith.constant dense<0.000000e+00> : vector<8x128xf32>
    %190 = tpu.matmul %187, %189, %cst_83 {dimension_numbers = #tpu.dot_dimension_numbers<[1], [0], [0], [1], [0, 0, 1, 1], [], []>} : vector<8x32xf32>, vector<32x128xf32>, vector<8x128xf32> -> vector<8x128xf32>
    %c0_84 = arith.constant 0 : index
    %c0_85 = arith.constant 0 : index
    %c0_86 = arith.constant 0 : index
    %191 = vector.load %arg19[%c0_84, %c0_85, %c0_86] : memref<2x1x128xf32, #tpu.memory_space<vmem>>, vector<1x1x128xf32>
    %192 = vector.shape_cast %191 : vector<1x1x128xf32> to vector<1x128xf32>
    %193 = vector.broadcast %192 : vector<1x128xf32> to vector<8x128xf32>
    %194 = arith.addf %190, %193 : vector<8x128xf32>
    %195 = vector.extract_strided_slice %194 {offsets = [0, 0], sizes = [8, 64], strides = [1, 1]} : vector<8x128xf32> to vector<8x64xf32>
    %196 = vector.extract_strided_slice %194 {offsets = [0, 64], sizes = [8, 64], strides = [1, 1]} : vector<8x128xf32> to vector<8x64xf32>
    %197 = arith.negf %196 : vector<8x64xf32>
    %198 = math.exp %197 : vector<8x64xf32>
    %cst_87 = arith.constant 1.000000e+00 : f32
    %199 = vector.broadcast %cst_87 : f32 to vector<8x64xf32>
    %200 = arith.addf %199, %198 : vector<8x64xf32>
    %201 = arith.divf %199, %200 : vector<8x64xf32>
    %202 = arith.mulf %195, %201 : vector<8x64xf32>
    %c0_88 = arith.constant 0 : index
    %c0_89 = arith.constant 0 : index
    %c0_90 = arith.constant 0 : index
    %203 = vector.load %arg20[%c0_88, %c0_89, %c0_90] : memref<2x7x64xf32, #tpu.memory_space<vmem>>, vector<1x7x64xf32>
    %204 = vector.shape_cast %203 : vector<1x7x64xf32> to vector<7x64xf32>
    %c0_91 = arith.constant 0 : index
    %c0_92 = arith.constant 0 : index
    %c0_93 = arith.constant 0 : index
    %205 = vector.load %arg4[%c0_91, %c0_92, %c0_93] : memref<7x8x8xf32, #tpu.memory_space<vmem>>, vector<1x8x8xf32>
    %206 = vector.shape_cast %205 : vector<1x8x8xf32> to vector<8x8xf32>
    %cst_94 = arith.constant dense<0.000000e+00> : vector<8x64xf32>
    %207 = tpu.matmul %206, %202, %cst_94 {dimension_numbers = #tpu.dot_dimension_numbers<[1], [0], [0], [1], [0, 0, 1, 1], [], []>} : vector<8x8xf32>, vector<8x64xf32>, vector<8x64xf32> -> vector<8x64xf32>
    %208 = vector.extract_strided_slice %204 {offsets = [0, 0], sizes = [1, 64], strides = [1, 1]} : vector<7x64xf32> to vector<1x64xf32>
    %209 = vector.shape_cast %208 : vector<1x64xf32> to vector<64xf32>
    %210 = vector.shape_cast %209 : vector<64xf32> to vector<1x64xf32>
    %211 = vector.broadcast %210 : vector<1x64xf32> to vector<8x64xf32>
    %212 = arith.mulf %207, %211 : vector<8x64xf32>
    %c1 = arith.constant 1 : index
    %c0_95 = arith.constant 0 : index
    %c0_96 = arith.constant 0 : index
    %213 = vector.load %arg4[%c1, %c0_95, %c0_96] : memref<7x8x8xf32, #tpu.memory_space<vmem>>, vector<1x8x8xf32>
    %214 = vector.shape_cast %213 : vector<1x8x8xf32> to vector<8x8xf32>
    %cst_97 = arith.constant dense<0.000000e+00> : vector<8x64xf32>
    %215 = tpu.matmul %214, %202, %cst_97 {dimension_numbers = #tpu.dot_dimension_numbers<[1], [0], [0], [1], [0, 0, 1, 1], [], []>} : vector<8x8xf32>, vector<8x64xf32>, vector<8x64xf32> -> vector<8x64xf32>
    %216 = vector.extract_strided_slice %204 {offsets = [1, 0], sizes = [1, 64], strides = [1, 1]} : vector<7x64xf32> to vector<1x64xf32>
    %217 = vector.shape_cast %216 : vector<1x64xf32> to vector<64xf32>
    %218 = vector.shape_cast %217 : vector<64xf32> to vector<1x64xf32>
    %219 = vector.broadcast %218 : vector<1x64xf32> to vector<8x64xf32>
    %220 = arith.mulf %215, %219 : vector<8x64xf32>
    %221 = arith.addf %212, %220 : vector<8x64xf32>
    %c2 = arith.constant 2 : index
    %c0_98 = arith.constant 0 : index
    %c0_99 = arith.constant 0 : index
    %222 = vector.load %arg4[%c2, %c0_98, %c0_99] : memref<7x8x8xf32, #tpu.memory_space<vmem>>, vector<1x8x8xf32>
    %223 = vector.shape_cast %222 : vector<1x8x8xf32> to vector<8x8xf32>
    %cst_100 = arith.constant dense<0.000000e+00> : vector<8x64xf32>
    %224 = tpu.matmul %223, %202, %cst_100 {dimension_numbers = #tpu.dot_dimension_numbers<[1], [0], [0], [1], [0, 0, 1, 1], [], []>} : vector<8x8xf32>, vector<8x64xf32>, vector<8x64xf32> -> vector<8x64xf32>
    %225 = vector.extract_strided_slice %204 {offsets = [2, 0], sizes = [1, 64], strides = [1, 1]} : vector<7x64xf32> to vector<1x64xf32>
    %226 = vector.shape_cast %225 : vector<1x64xf32> to vector<64xf32>
    %227 = vector.shape_cast %226 : vector<64xf32> to vector<1x64xf32>
    %228 = vector.broadcast %227 : vector<1x64xf32> to vector<8x64xf32>
    %229 = arith.mulf %224, %228 : vector<8x64xf32>
    %230 = arith.addf %221, %229 : vector<8x64xf32>
    %c3 = arith.constant 3 : index
    %c0_101 = arith.constant 0 : index
    %c0_102 = arith.constant 0 : index
    %231 = vector.load %arg4[%c3, %c0_101, %c0_102] : memref<7x8x8xf32, #tpu.memory_space<vmem>>, vector<1x8x8xf32>
    %232 = vector.shape_cast %231 : vector<1x8x8xf32> to vector<8x8xf32>
    %cst_103 = arith.constant dense<0.000000e+00> : vector<8x64xf32>
    %233 = tpu.matmul %232, %202, %cst_103 {dimension_numbers = #tpu.dot_dimension_numbers<[1], [0], [0], [1], [0, 0, 1, 1], [], []>} : vector<8x8xf32>, vector<8x64xf32>, vector<8x64xf32> -> vector<8x64xf32>
    %234 = vector.extract_strided_slice %204 {offsets = [3, 0], sizes = [1, 64], strides = [1, 1]} : vector<7x64xf32> to vector<1x64xf32>
    %235 = vector.shape_cast %234 : vector<1x64xf32> to vector<64xf32>
    %236 = vector.shape_cast %235 : vector<64xf32> to vector<1x64xf32>
    %237 = vector.broadcast %236 : vector<1x64xf32> to vector<8x64xf32>
    %238 = arith.mulf %233, %237 : vector<8x64xf32>
    %239 = arith.addf %230, %238 : vector<8x64xf32>
    %c4 = arith.constant 4 : index
    %c0_104 = arith.constant 0 : index
    %c0_105 = arith.constant 0 : index
    %240 = vector.load %arg4[%c4, %c0_104, %c0_105] : memref<7x8x8xf32, #tpu.memory_space<vmem>>, vector<1x8x8xf32>
    %241 = vector.shape_cast %240 : vector<1x8x8xf32> to vector<8x8xf32>
    %cst_106 = arith.constant dense<0.000000e+00> : vector<8x64xf32>
    %242 = tpu.matmul %241, %202, %cst_106 {dimension_numbers = #tpu.dot_dimension_numbers<[1], [0], [0], [1], [0, 0, 1, 1], [], []>} : vector<8x8xf32>, vector<8x64xf32>, vector<8x64xf32> -> vector<8x64xf32>
    %243 = vector.extract_strided_slice %204 {offsets = [4, 0], sizes = [1, 64], strides = [1, 1]} : vector<7x64xf32> to vector<1x64xf32>
    %244 = vector.shape_cast %243 : vector<1x64xf32> to vector<64xf32>
    %245 = vector.shape_cast %244 : vector<64xf32> to vector<1x64xf32>
    %246 = vector.broadcast %245 : vector<1x64xf32> to vector<8x64xf32>
    %247 = arith.mulf %242, %246 : vector<8x64xf32>
    %248 = arith.addf %239, %247 : vector<8x64xf32>
    %c5 = arith.constant 5 : index
    %c0_107 = arith.constant 0 : index
    %c0_108 = arith.constant 0 : index
    %249 = vector.load %arg4[%c5, %c0_107, %c0_108] : memref<7x8x8xf32, #tpu.memory_space<vmem>>, vector<1x8x8xf32>
    %250 = vector.shape_cast %249 : vector<1x8x8xf32> to vector<8x8xf32>
    %cst_109 = arith.constant dense<0.000000e+00> : vector<8x64xf32>
    %251 = tpu.matmul %250, %202, %cst_109 {dimension_numbers = #tpu.dot_dimension_numbers<[1], [0], [0], [1], [0, 0, 1, 1], [], []>} : vector<8x8xf32>, vector<8x64xf32>, vector<8x64xf32> -> vector<8x64xf32>
    %252 = vector.extract_strided_slice %204 {offsets = [5, 0], sizes = [1, 64], strides = [1, 1]} : vector<7x64xf32> to vector<1x64xf32>
    %253 = vector.shape_cast %252 : vector<1x64xf32> to vector<64xf32>
    %254 = vector.shape_cast %253 : vector<64xf32> to vector<1x64xf32>
    %255 = vector.broadcast %254 : vector<1x64xf32> to vector<8x64xf32>
    %256 = arith.mulf %251, %255 : vector<8x64xf32>
    %257 = arith.addf %248, %256 : vector<8x64xf32>
    %c6 = arith.constant 6 : index
    %c0_110 = arith.constant 0 : index
    %c0_111 = arith.constant 0 : index
    %258 = vector.load %arg4[%c6, %c0_110, %c0_111] : memref<7x8x8xf32, #tpu.memory_space<vmem>>, vector<1x8x8xf32>
    %259 = vector.shape_cast %258 : vector<1x8x8xf32> to vector<8x8xf32>
    %cst_112 = arith.constant dense<0.000000e+00> : vector<8x64xf32>
    %260 = tpu.matmul %259, %202, %cst_112 {dimension_numbers = #tpu.dot_dimension_numbers<[1], [0], [0], [1], [0, 0, 1, 1], [], []>} : vector<8x8xf32>, vector<8x64xf32>, vector<8x64xf32> -> vector<8x64xf32>
    %261 = vector.extract_strided_slice %204 {offsets = [6, 0], sizes = [1, 64], strides = [1, 1]} : vector<7x64xf32> to vector<1x64xf32>
    %262 = vector.shape_cast %261 : vector<1x64xf32> to vector<64xf32>
    %263 = vector.shape_cast %262 : vector<64xf32> to vector<1x64xf32>
    %264 = vector.broadcast %263 : vector<1x64xf32> to vector<8x64xf32>
    %265 = arith.mulf %260, %264 : vector<8x64xf32>
    %266 = arith.addf %257, %265 : vector<8x64xf32>
    %c0_113 = arith.constant 0 : index
    %c0_114 = arith.constant 0 : index
    %c0_115 = arith.constant 0 : index
    %267 = vector.load %arg21[%c0_113, %c0_114, %c0_115] : memref<2x1x64xf32, #tpu.memory_space<vmem>>, vector<1x1x64xf32>
    %268 = vector.shape_cast %267 : vector<1x1x64xf32> to vector<1x64xf32>
    %269 = vector.broadcast %268 : vector<1x64xf32> to vector<8x64xf32>
    %270 = arith.addf %266, %269 : vector<8x64xf32>
    %271 = arith.negf %270 : vector<8x64xf32>
    %272 = math.exp %271 : vector<8x64xf32>
    %cst_116 = arith.constant 1.000000e+00 : f32
    %273 = vector.broadcast %cst_116 : f32 to vector<8x64xf32>
    %274 = arith.addf %273, %272 : vector<8x64xf32>
    %275 = arith.divf %273, %274 : vector<8x64xf32>
    %276 = arith.mulf %270, %275 : vector<8x64xf32>
    %cst_117 = arith.constant dense<0.000000e+00> : vector<8xf32>
    %277 = vector.multi_reduction <add>, %276, %cst_117 [1] : vector<8x64xf32> to vector<8xf32>
    %278 = vector.shape_cast %277 : vector<8xf32> to vector<8x1xf32>
    %cst_118 = arith.constant 6.400000e+01 : f32
    %279 = vector.broadcast %cst_118 : f32 to vector<8x1xf32>
    %280 = arith.divf %278, %279 : vector<8x1xf32>
    %281 = vector.broadcast %280 : vector<8x1xf32> to vector<8x64xf32>
    %282 = arith.subf %276, %281 : vector<8x64xf32>
    %283 = arith.mulf %282, %282 : vector<8x64xf32>
    %cst_119 = arith.constant dense<0.000000e+00> : vector<8xf32>
    %284 = vector.multi_reduction <add>, %283, %cst_119 [1] : vector<8x64xf32> to vector<8xf32>
    %285 = vector.shape_cast %284 : vector<8xf32> to vector<8x1xf32>
    %cst_120 = arith.constant 6.400000e+01 : f32
    %286 = vector.broadcast %cst_120 : f32 to vector<8x1xf32>
    %287 = arith.divf %285, %286 : vector<8x1xf32>
    %288 = vector.broadcast %280 : vector<8x1xf32> to vector<8x64xf32>
    %289 = arith.subf %276, %288 : vector<8x64xf32>
    %cst_121 = arith.constant 9.99999997E-7 : f32
    %290 = vector.broadcast %cst_121 : f32 to vector<8x1xf32>
    %291 = arith.maximumf %287, %290 : vector<8x1xf32>
    %292 = math.rsqrt %291 : vector<8x1xf32>
    %293 = vector.broadcast %292 : vector<8x1xf32> to vector<8x64xf32>
    %294 = arith.mulf %289, %293 : vector<8x64xf32>
    %c0_122 = arith.constant 0 : index
    %c0_123 = arith.constant 0 : index
    %c0_124 = arith.constant 0 : index
    %295 = vector.load %arg22[%c0_122, %c0_123, %c0_124] : memref<2x1x64xf32, #tpu.memory_space<vmem>>, vector<1x1x64xf32>
    %296 = vector.shape_cast %295 : vector<1x1x64xf32> to vector<1x64xf32>
    %297 = vector.broadcast %296 : vector<1x64xf32> to vector<8x64xf32>
    %298 = arith.mulf %294, %297 : vector<8x64xf32>
    %c0_125 = arith.constant 0 : index
    %c0_126 = arith.constant 0 : index
    %c0_127 = arith.constant 0 : index
    %299 = vector.load %arg23[%c0_125, %c0_126, %c0_127] : memref<2x64x32xf32, #tpu.memory_space<vmem>>, vector<1x64x32xf32>
    %300 = vector.shape_cast %299 : vector<1x64x32xf32> to vector<64x32xf32>
    %cst_128 = arith.constant dense<0.000000e+00> : vector<8x32xf32>
    %301 = tpu.matmul %298, %300, %cst_128 {dimension_numbers = #tpu.dot_dimension_numbers<[1], [0], [0], [1], [0, 0, 1, 1], [], []>} : vector<8x64xf32>, vector<64x32xf32>, vector<8x32xf32> -> vector<8x32xf32>
    %c0_129 = arith.constant 0 : index
    %c0_130 = arith.constant 0 : index
    %c0_131 = arith.constant 0 : index
    %302 = vector.load %arg24[%c0_129, %c0_130, %c0_131] : memref<2x1x32xf32, #tpu.memory_space<vmem>>, vector<1x1x32xf32>
    %303 = vector.shape_cast %302 : vector<1x1x32xf32> to vector<1x32xf32>
    %304 = vector.broadcast %303 : vector<1x32xf32> to vector<8x32xf32>
    %305 = arith.addf %301, %304 : vector<8x32xf32>
    %306 = arith.addf %161, %305 : vector<8x32xf32>
    %c0_132 = arith.constant 0 : index
    %c0_133 = arith.constant 0 : index
    %c0_134 = arith.constant 0 : index
    %307 = vector.load %arg25[%c0_132, %c0_133, %c0_134] : memref<2x1x32xf32, #tpu.memory_space<vmem>>, vector<1x1x32xf32>
    %308 = vector.shape_cast %307 : vector<1x1x32xf32> to vector<1x32xf32>
    %c0_135 = arith.constant 0 : index
    %c0_136 = arith.constant 0 : index
    %c0_137 = arith.constant 0 : index
    %309 = vector.load %arg26[%c0_135, %c0_136, %c0_137] : memref<2x1x32xf32, #tpu.memory_space<vmem>>, vector<1x1x32xf32>
    %310 = vector.shape_cast %309 : vector<1x1x32xf32> to vector<1x32xf32>
    %cst_138 = arith.constant dense<0.000000e+00> : vector<8xf32>
    %311 = vector.multi_reduction <add>, %306, %cst_138 [1] : vector<8x32xf32> to vector<8xf32>
    %312 = vector.shape_cast %311 : vector<8xf32> to vector<8x1xf32>
    %cst_139 = arith.constant 3.200000e+01 : f32
    %313 = vector.broadcast %cst_139 : f32 to vector<8x1xf32>
    %314 = arith.divf %312, %313 : vector<8x1xf32>
    %315 = vector.broadcast %314 : vector<8x1xf32> to vector<8x32xf32>
    %316 = arith.subf %306, %315 : vector<8x32xf32>
    %317 = arith.mulf %316, %316 : vector<8x32xf32>
    %cst_140 = arith.constant dense<0.000000e+00> : vector<8xf32>
    %318 = vector.multi_reduction <add>, %317, %cst_140 [1] : vector<8x32xf32> to vector<8xf32>
    %319 = vector.shape_cast %318 : vector<8xf32> to vector<8x1xf32>
    %cst_141 = arith.constant 3.200000e+01 : f32
    %320 = vector.broadcast %cst_141 : f32 to vector<8x1xf32>
    %321 = arith.divf %319, %320 : vector<8x1xf32>
    %322 = vector.broadcast %314 : vector<8x1xf32> to vector<8x32xf32>
    %323 = arith.subf %306, %322 : vector<8x32xf32>
    %cst_142 = arith.constant 9.99999974E-6 : f32
    %324 = vector.broadcast %cst_142 : f32 to vector<8x1xf32>
    %325 = arith.addf %321, %324 : vector<8x1xf32>
    %326 = math.rsqrt %325 : vector<8x1xf32>
    %327 = vector.broadcast %326 : vector<8x1xf32> to vector<8x32xf32>
    %328 = arith.mulf %323, %327 : vector<8x32xf32>
    %329 = vector.broadcast %308 : vector<1x32xf32> to vector<8x32xf32>
    %330 = arith.mulf %328, %329 : vector<8x32xf32>
    %331 = vector.broadcast %310 : vector<1x32xf32> to vector<8x32xf32>
    %332 = arith.addf %330, %331 : vector<8x32xf32>
    %c0_143 = arith.constant 0 : index
    %c0_144 = arith.constant 0 : index
    %c0_145 = arith.constant 0 : index
    %333 = vector.load %arg27[%c0_143, %c0_144, %c0_145] : memref<2x32x128xf32, #tpu.memory_space<vmem>>, vector<1x32x128xf32>
    %334 = vector.shape_cast %333 : vector<1x32x128xf32> to vector<32x128xf32>
    %cst_146 = arith.constant dense<0.000000e+00> : vector<8x128xf32>
    %335 = tpu.matmul %332, %334, %cst_146 {dimension_numbers = #tpu.dot_dimension_numbers<[1], [0], [0], [1], [0, 0, 1, 1], [], []>} : vector<8x32xf32>, vector<32x128xf32>, vector<8x128xf32> -> vector<8x128xf32>
    %c0_147 = arith.constant 0 : index
    %c0_148 = arith.constant 0 : index
    %c0_149 = arith.constant 0 : index
    %336 = vector.load %arg28[%c0_147, %c0_148, %c0_149] : memref<2x1x128xf32, #tpu.memory_space<vmem>>, vector<1x1x128xf32>
    %337 = vector.shape_cast %336 : vector<1x1x128xf32> to vector<1x128xf32>
    %338 = vector.broadcast %337 : vector<1x128xf32> to vector<8x128xf32>
    %339 = arith.addf %335, %338 : vector<8x128xf32>
    %340 = arith.negf %339 : vector<8x128xf32>
    %341 = math.exp %340 : vector<8x128xf32>
    %cst_150 = arith.constant 1.000000e+00 : f32
    %342 = vector.broadcast %cst_150 : f32 to vector<8x128xf32>
    %343 = arith.addf %342, %341 : vector<8x128xf32>
    %344 = arith.divf %342, %343 : vector<8x128xf32>
    %345 = arith.mulf %339, %344 : vector<8x128xf32>
    %c0_151 = arith.constant 0 : index
    %c0_152 = arith.constant 0 : index
    %c0_153 = arith.constant 0 : index
    %346 = vector.load %arg29[%c0_151, %c0_152, %c0_153] : memref<2x128x32xf32, #tpu.memory_space<vmem>>, vector<1x128x32xf32>
    %347 = vector.shape_cast %346 : vector<1x128x32xf32> to vector<128x32xf32>
    %cst_154 = arith.constant dense<0.000000e+00> : vector<8x32xf32>
    %348 = tpu.matmul %345, %347, %cst_154 {dimension_numbers = #tpu.dot_dimension_numbers<[1], [0], [0], [1], [0, 0, 1, 1], [], []>} : vector<8x128xf32>, vector<128x32xf32>, vector<8x32xf32> -> vector<8x32xf32>
    %c0_155 = arith.constant 0 : index
    %c0_156 = arith.constant 0 : index
    %c0_157 = arith.constant 0 : index
    %349 = vector.load %arg30[%c0_155, %c0_156, %c0_157] : memref<2x1x32xf32, #tpu.memory_space<vmem>>, vector<1x1x32xf32>
    %350 = vector.shape_cast %349 : vector<1x1x32xf32> to vector<1x32xf32>
    %351 = vector.broadcast %350 : vector<1x32xf32> to vector<8x32xf32>
    %352 = arith.addf %348, %351 : vector<8x32xf32>
    %cst_158 = arith.constant 5.000000e-01 : f32
    %353 = vector.broadcast %cst_158 : f32 to vector<8x32xf32>
    %354 = arith.mulf %353, %352 : vector<8x32xf32>
    %355 = arith.addf %306, %354 : vector<8x32xf32>
    %c0_159 = arith.constant 0 : index
    %c0_160 = arith.constant 0 : index
    %c0_161 = arith.constant 0 : index
    %356 = vector.load %arg31[%c0_159, %c0_160, %c0_161] : memref<2x1x32xf32, #tpu.memory_space<vmem>>, vector<1x1x32xf32>
    %357 = vector.shape_cast %356 : vector<1x1x32xf32> to vector<1x32xf32>
    %c0_162 = arith.constant 0 : index
    %c0_163 = arith.constant 0 : index
    %c0_164 = arith.constant 0 : index
    %358 = vector.load %arg32[%c0_162, %c0_163, %c0_164] : memref<2x1x32xf32, #tpu.memory_space<vmem>>, vector<1x1x32xf32>
    %359 = vector.shape_cast %358 : vector<1x1x32xf32> to vector<1x32xf32>
    %cst_165 = arith.constant dense<0.000000e+00> : vector<8xf32>
    %360 = vector.multi_reduction <add>, %355, %cst_165 [1] : vector<8x32xf32> to vector<8xf32>
    %361 = vector.shape_cast %360 : vector<8xf32> to vector<8x1xf32>
    %cst_166 = arith.constant 3.200000e+01 : f32
    %362 = vector.broadcast %cst_166 : f32 to vector<8x1xf32>
    %363 = arith.divf %361, %362 : vector<8x1xf32>
    %364 = vector.broadcast %363 : vector<8x1xf32> to vector<8x32xf32>
    %365 = arith.subf %355, %364 : vector<8x32xf32>
    %366 = arith.mulf %365, %365 : vector<8x32xf32>
    %cst_167 = arith.constant dense<0.000000e+00> : vector<8xf32>
    %367 = vector.multi_reduction <add>, %366, %cst_167 [1] : vector<8x32xf32> to vector<8xf32>
    %368 = vector.shape_cast %367 : vector<8xf32> to vector<8x1xf32>
    %cst_168 = arith.constant 3.200000e+01 : f32
    %369 = vector.broadcast %cst_168 : f32 to vector<8x1xf32>
    %370 = arith.divf %368, %369 : vector<8x1xf32>
    %371 = vector.broadcast %363 : vector<8x1xf32> to vector<8x32xf32>
    %372 = arith.subf %355, %371 : vector<8x32xf32>
    %cst_169 = arith.constant 9.99999974E-6 : f32
    %373 = vector.broadcast %cst_169 : f32 to vector<8x1xf32>
    %374 = arith.addf %370, %373 : vector<8x1xf32>
    %375 = math.rsqrt %374 : vector<8x1xf32>
    %376 = vector.broadcast %375 : vector<8x1xf32> to vector<8x32xf32>
    %377 = arith.mulf %372, %376 : vector<8x32xf32>
    %378 = vector.broadcast %357 : vector<1x32xf32> to vector<8x32xf32>
    %379 = arith.mulf %377, %378 : vector<8x32xf32>
    %380 = vector.broadcast %359 : vector<1x32xf32> to vector<8x32xf32>
    %381 = arith.addf %379, %380 : vector<8x32xf32>
    %c1_170 = arith.constant 1 : index
    %c0_171 = arith.constant 0 : index
    %c0_172 = arith.constant 0 : index
    %382 = vector.load %arg5[%c1_170, %c0_171, %c0_172] : memref<2x1x32xf32, #tpu.memory_space<vmem>>, vector<1x1x32xf32>
    %383 = vector.shape_cast %382 : vector<1x1x32xf32> to vector<1x32xf32>
    %c1_173 = arith.constant 1 : index
    %c0_174 = arith.constant 0 : index
    %c0_175 = arith.constant 0 : index
    %384 = vector.load %arg6[%c1_173, %c0_174, %c0_175] : memref<2x1x32xf32, #tpu.memory_space<vmem>>, vector<1x1x32xf32>
    %385 = vector.shape_cast %384 : vector<1x1x32xf32> to vector<1x32xf32>
    %cst_176 = arith.constant dense<0.000000e+00> : vector<8xf32>
    %386 = vector.multi_reduction <add>, %381, %cst_176 [1] : vector<8x32xf32> to vector<8xf32>
    %387 = vector.shape_cast %386 : vector<8xf32> to vector<8x1xf32>
    %cst_177 = arith.constant 3.200000e+01 : f32
    %388 = vector.broadcast %cst_177 : f32 to vector<8x1xf32>
    %389 = arith.divf %387, %388 : vector<8x1xf32>
    %390 = vector.broadcast %389 : vector<8x1xf32> to vector<8x32xf32>
    %391 = arith.subf %381, %390 : vector<8x32xf32>
    %392 = arith.mulf %391, %391 : vector<8x32xf32>
    %cst_178 = arith.constant dense<0.000000e+00> : vector<8xf32>
    %393 = vector.multi_reduction <add>, %392, %cst_178 [1] : vector<8x32xf32> to vector<8xf32>
    %394 = vector.shape_cast %393 : vector<8xf32> to vector<8x1xf32>
    %cst_179 = arith.constant 3.200000e+01 : f32
    %395 = vector.broadcast %cst_179 : f32 to vector<8x1xf32>
    %396 = arith.divf %394, %395 : vector<8x1xf32>
    %397 = vector.broadcast %389 : vector<8x1xf32> to vector<8x32xf32>
    %398 = arith.subf %381, %397 : vector<8x32xf32>
    %cst_180 = arith.constant 9.99999974E-6 : f32
    %399 = vector.broadcast %cst_180 : f32 to vector<8x1xf32>
    %400 = arith.addf %396, %399 : vector<8x1xf32>
    %401 = math.rsqrt %400 : vector<8x1xf32>
    %402 = vector.broadcast %401 : vector<8x1xf32> to vector<8x32xf32>
    %403 = arith.mulf %398, %402 : vector<8x32xf32>
    %404 = vector.broadcast %383 : vector<1x32xf32> to vector<8x32xf32>
    %405 = arith.mulf %403, %404 : vector<8x32xf32>
    %406 = vector.broadcast %385 : vector<1x32xf32> to vector<8x32xf32>
    %407 = arith.addf %405, %406 : vector<8x32xf32>
    %c1_181 = arith.constant 1 : index
    %c0_182 = arith.constant 0 : index
    %c0_183 = arith.constant 0 : index
    %408 = vector.load %arg7[%c1_181, %c0_182, %c0_183] : memref<2x32x128xf32, #tpu.memory_space<vmem>>, vector<1x32x128xf32>
    %409 = vector.shape_cast %408 : vector<1x32x128xf32> to vector<32x128xf32>
    %cst_184 = arith.constant dense<0.000000e+00> : vector<8x128xf32>
    %410 = tpu.matmul %407, %409, %cst_184 {dimension_numbers = #tpu.dot_dimension_numbers<[1], [0], [0], [1], [0, 0, 1, 1], [], []>} : vector<8x32xf32>, vector<32x128xf32>, vector<8x128xf32> -> vector<8x128xf32>
    %c1_185 = arith.constant 1 : index
    %c0_186 = arith.constant 0 : index
    %c0_187 = arith.constant 0 : index
    %411 = vector.load %arg8[%c1_185, %c0_186, %c0_187] : memref<2x1x128xf32, #tpu.memory_space<vmem>>, vector<1x1x128xf32>
    %412 = vector.shape_cast %411 : vector<1x1x128xf32> to vector<1x128xf32>
    %413 = vector.broadcast %412 : vector<1x128xf32> to vector<8x128xf32>
    %414 = arith.addf %410, %413 : vector<8x128xf32>
    %415 = arith.negf %414 : vector<8x128xf32>
    %416 = math.exp %415 : vector<8x128xf32>
    %cst_188 = arith.constant 1.000000e+00 : f32
    %417 = vector.broadcast %cst_188 : f32 to vector<8x128xf32>
    %418 = arith.addf %417, %416 : vector<8x128xf32>
    %419 = arith.divf %417, %418 : vector<8x128xf32>
    %420 = arith.mulf %414, %419 : vector<8x128xf32>
    %c1_189 = arith.constant 1 : index
    %c0_190 = arith.constant 0 : index
    %c0_191 = arith.constant 0 : index
    %421 = vector.load %arg9[%c1_189, %c0_190, %c0_191] : memref<2x128x32xf32, #tpu.memory_space<vmem>>, vector<1x128x32xf32>
    %422 = vector.shape_cast %421 : vector<1x128x32xf32> to vector<128x32xf32>
    %cst_192 = arith.constant dense<0.000000e+00> : vector<8x32xf32>
    %423 = tpu.matmul %420, %422, %cst_192 {dimension_numbers = #tpu.dot_dimension_numbers<[1], [0], [0], [1], [0, 0, 1, 1], [], []>} : vector<8x128xf32>, vector<128x32xf32>, vector<8x32xf32> -> vector<8x32xf32>
    %c1_193 = arith.constant 1 : index
    %c0_194 = arith.constant 0 : index
    %c0_195 = arith.constant 0 : index
    %424 = vector.load %arg10[%c1_193, %c0_194, %c0_195] : memref<2x1x32xf32, #tpu.memory_space<vmem>>, vector<1x1x32xf32>
    %425 = vector.shape_cast %424 : vector<1x1x32xf32> to vector<1x32xf32>
    %426 = vector.broadcast %425 : vector<1x32xf32> to vector<8x32xf32>
    %427 = arith.addf %423, %426 : vector<8x32xf32>
    %cst_196 = arith.constant 5.000000e-01 : f32
    %428 = vector.broadcast %cst_196 : f32 to vector<8x32xf32>
    %429 = arith.mulf %428, %427 : vector<8x32xf32>
    %430 = arith.addf %381, %429 : vector<8x32xf32>
    %c1_197 = arith.constant 1 : index
    %c0_198 = arith.constant 0 : index
    %c0_199 = arith.constant 0 : index
    %431 = vector.load %arg11[%c1_197, %c0_198, %c0_199] : memref<2x1x32xf32, #tpu.memory_space<vmem>>, vector<1x1x32xf32>
    %432 = vector.shape_cast %431 : vector<1x1x32xf32> to vector<1x32xf32>
    %c1_200 = arith.constant 1 : index
    %c0_201 = arith.constant 0 : index
    %c0_202 = arith.constant 0 : index
    %433 = vector.load %arg12[%c1_200, %c0_201, %c0_202] : memref<2x1x32xf32, #tpu.memory_space<vmem>>, vector<1x1x32xf32>
    %434 = vector.shape_cast %433 : vector<1x1x32xf32> to vector<1x32xf32>
    %cst_203 = arith.constant dense<0.000000e+00> : vector<8xf32>
    %435 = vector.multi_reduction <add>, %430, %cst_203 [1] : vector<8x32xf32> to vector<8xf32>
    %436 = vector.shape_cast %435 : vector<8xf32> to vector<8x1xf32>
    %cst_204 = arith.constant 3.200000e+01 : f32
    %437 = vector.broadcast %cst_204 : f32 to vector<8x1xf32>
    %438 = arith.divf %436, %437 : vector<8x1xf32>
    %439 = vector.broadcast %438 : vector<8x1xf32> to vector<8x32xf32>
    %440 = arith.subf %430, %439 : vector<8x32xf32>
    %441 = arith.mulf %440, %440 : vector<8x32xf32>
    %cst_205 = arith.constant dense<0.000000e+00> : vector<8xf32>
    %442 = vector.multi_reduction <add>, %441, %cst_205 [1] : vector<8x32xf32> to vector<8xf32>
    %443 = vector.shape_cast %442 : vector<8xf32> to vector<8x1xf32>
    %cst_206 = arith.constant 3.200000e+01 : f32
    %444 = vector.broadcast %cst_206 : f32 to vector<8x1xf32>
    %445 = arith.divf %443, %444 : vector<8x1xf32>
    %446 = vector.broadcast %438 : vector<8x1xf32> to vector<8x32xf32>
    %447 = arith.subf %430, %446 : vector<8x32xf32>
    %cst_207 = arith.constant 9.99999974E-6 : f32
    %448 = vector.broadcast %cst_207 : f32 to vector<8x1xf32>
    %449 = arith.addf %445, %448 : vector<8x1xf32>
    %450 = math.rsqrt %449 : vector<8x1xf32>
    %451 = vector.broadcast %450 : vector<8x1xf32> to vector<8x32xf32>
    %452 = arith.mulf %447, %451 : vector<8x32xf32>
    %453 = vector.broadcast %432 : vector<1x32xf32> to vector<8x32xf32>
    %454 = arith.mulf %452, %453 : vector<8x32xf32>
    %455 = vector.broadcast %434 : vector<1x32xf32> to vector<8x32xf32>
    %456 = arith.addf %454, %455 : vector<8x32xf32>
    %c1_208 = arith.constant 1 : index
    %c0_209 = arith.constant 0 : index
    %c0_210 = arith.constant 0 : index
    %457 = vector.load %arg13[%c1_208, %c0_209, %c0_210] : memref<2x32x128xf32, #tpu.memory_space<vmem>>, vector<1x32x128xf32>
    %458 = vector.shape_cast %457 : vector<1x32x128xf32> to vector<32x128xf32>
    %cst_211 = arith.constant dense<0.000000e+00> : vector<8x128xf32>
    %459 = tpu.matmul %456, %458, %cst_211 {dimension_numbers = #tpu.dot_dimension_numbers<[1], [0], [0], [1], [0, 0, 1, 1], [], []>} : vector<8x32xf32>, vector<32x128xf32>, vector<8x128xf32> -> vector<8x128xf32>
    %c1_212 = arith.constant 1 : index
    %c0_213 = arith.constant 0 : index
    %c0_214 = arith.constant 0 : index
    %460 = vector.load %arg14[%c1_212, %c0_213, %c0_214] : memref<2x32x32xf32, #tpu.memory_space<vmem>>, vector<1x32x32xf32>
    %461 = vector.shape_cast %460 : vector<1x32x32xf32> to vector<32x32xf32>
    %c1_215 = arith.constant 1 : index
    %c0_216 = arith.constant 0 : index
    %c0_217 = arith.constant 0 : index
    %462 = vector.load %arg15[%c1_215, %c0_216, %c0_217] : memref<2x1x32xf32, #tpu.memory_space<vmem>>, vector<1x1x32xf32>
    %463 = vector.shape_cast %462 : vector<1x1x32xf32> to vector<1x32xf32>
    %464 = vector.extract_strided_slice %459 {offsets = [0, 0], sizes = [8, 16], strides = [1, 1]} : vector<8x128xf32> to vector<8x16xf32>
    %465 = vector.extract_strided_slice %459 {offsets = [0, 32], sizes = [8, 16], strides = [1, 1]} : vector<8x128xf32> to vector<8x16xf32>
    %466 = vector.extract_strided_slice %459 {offsets = [0, 64], sizes = [8, 16], strides = [1, 1]} : vector<8x128xf32> to vector<8x16xf32>
    %467 = vector.extract_strided_slice %459 {offsets = [0, 96], sizes = [8, 16], strides = [1, 1]} : vector<8x128xf32> to vector<8x16xf32>
    %468 = arith.negf %467 : vector<8x16xf32>
    %469 = math.exp %468 : vector<8x16xf32>
    %cst_218 = arith.constant 1.000000e+00 : f32
    %470 = vector.broadcast %cst_218 : f32 to vector<8x16xf32>
    %471 = arith.addf %470, %469 : vector<8x16xf32>
    %472 = arith.divf %470, %471 : vector<8x16xf32>
    %473 = arith.subf %88, %466 : vector<8x16xf32>
    %474 = arith.mulf %472, %473 : vector<8x16xf32>
    %475 = arith.addf %466, %474 : vector<8x16xf32>
    %476 = vector.extract_strided_slice %464 {offsets = [0, 8], sizes = [8, 8], strides = [1, 1]} : vector<8x16xf32> to vector<8x8xf32>
    %cst_219 = arith.constant 0.000000e+00 : f32
    %477 = vector.broadcast %cst_219 : f32 to vector<8x8xf32>
    %478 = arith.subf %477, %476 : vector<8x8xf32>
    %479 = vector.extract_strided_slice %464 {offsets = [0, 0], sizes = [8, 8], strides = [1, 1]} : vector<8x16xf32> to vector<8x8xf32>
    %480 = tpu.concatenate %478, %479 in 1 : vector<8x8xf32>, vector<8x8xf32> -> vector<8x16xf32>
    %481 = arith.mulf %464, %2 : vector<8x16xf32>
    %482 = arith.mulf %480, %3 : vector<8x16xf32>
    %483 = arith.addf %481, %482 : vector<8x16xf32>
    %484 = vector.extract_strided_slice %465 {offsets = [0, 8], sizes = [8, 8], strides = [1, 1]} : vector<8x16xf32> to vector<8x8xf32>
    %cst_220 = arith.constant 0.000000e+00 : f32
    %485 = vector.broadcast %cst_220 : f32 to vector<8x8xf32>
    %486 = arith.subf %485, %484 : vector<8x8xf32>
    %487 = vector.extract_strided_slice %465 {offsets = [0, 0], sizes = [8, 8], strides = [1, 1]} : vector<8x16xf32> to vector<8x8xf32>
    %488 = tpu.concatenate %486, %487 in 1 : vector<8x8xf32>, vector<8x8xf32> -> vector<8x16xf32>
    %489 = arith.mulf %465, %2 : vector<8x16xf32>
    %490 = arith.mulf %488, %3 : vector<8x16xf32>
    %491 = arith.addf %489, %490 : vector<8x16xf32>
    %492 = tpu.transpose %491, [1, 0] : vector<8x16xf32> -> vector<16x8xf32>
    %cst_221 = arith.constant dense<0.000000e+00> : vector<8x8xf32>
    %493 = tpu.matmul %483, %492, %cst_221 {dimension_numbers = #tpu.dot_dimension_numbers<[1], [0], [0], [1], [0, 0, 1, 1], [], []>} : vector<8x16xf32>, vector<16x8xf32>, vector<8x8xf32> -> vector<8x8xf32>
    %cst_222 = arith.constant 2.500000e-01 : f32
    %494 = vector.broadcast %cst_222 : f32 to vector<8x8xf32>
    %495 = arith.mulf %493, %494 : vector<8x8xf32>
    %cst_223 = arith.constant dense<0xFF800000> : vector<8xf32>
    %496 = vector.multi_reduction <maximumf>, %495, %cst_223 [1] : vector<8x8xf32> to vector<8xf32>
    %497 = vector.shape_cast %496 : vector<8xf32> to vector<8x1xf32>
    %498 = vector.broadcast %497 : vector<8x1xf32> to vector<8x8xf32>
    %499 = arith.subf %495, %498 : vector<8x8xf32>
    %500 = math.exp %499 : vector<8x8xf32>
    %cst_224 = arith.constant dense<0.000000e+00> : vector<8xf32>
    %501 = vector.multi_reduction <add>, %500, %cst_224 [1] : vector<8x8xf32> to vector<8xf32>
    %502 = vector.shape_cast %501 : vector<8xf32> to vector<8x1xf32>
    %503 = tpu.reciprocal %502 {approx = true} : vector<8x1xf32> -> vector<8x1xf32>
    %504 = vector.broadcast %503 : vector<8x1xf32> to vector<8x8xf32>
    %505 = arith.mulf %500, %504 : vector<8x8xf32>
    %cst_225 = arith.constant dense<0.000000e+00> : vector<8x16xf32>
    %506 = tpu.matmul %505, %475, %cst_225 {dimension_numbers = #tpu.dot_dimension_numbers<[1], [0], [0], [1], [0, 0, 1, 1], [], []>} : vector<8x8xf32>, vector<8x16xf32>, vector<8x16xf32> -> vector<8x16xf32>
    %507 = vector.extract_strided_slice %461 {offsets = [0, 0], sizes = [16, 32], strides = [1, 1]} : vector<32x32xf32> to vector<16x32xf32>
    %cst_226 = arith.constant dense<0.000000e+00> : vector<8x32xf32>
    %508 = tpu.matmul %506, %507, %cst_226 {dimension_numbers = #tpu.dot_dimension_numbers<[1], [0], [0], [1], [0, 0, 1, 1], [], []>} : vector<8x16xf32>, vector<16x32xf32>, vector<8x32xf32> -> vector<8x32xf32>
    %509 = vector.broadcast %463 : vector<1x32xf32> to vector<8x32xf32>
    %510 = arith.addf %509, %508 : vector<8x32xf32>
    %511 = vector.extract_strided_slice %459 {offsets = [0, 16], sizes = [8, 16], strides = [1, 1]} : vector<8x128xf32> to vector<8x16xf32>
    %512 = vector.extract_strided_slice %459 {offsets = [0, 48], sizes = [8, 16], strides = [1, 1]} : vector<8x128xf32> to vector<8x16xf32>
    %513 = vector.extract_strided_slice %459 {offsets = [0, 80], sizes = [8, 16], strides = [1, 1]} : vector<8x128xf32> to vector<8x16xf32>
    %514 = vector.extract_strided_slice %459 {offsets = [0, 112], sizes = [8, 16], strides = [1, 1]} : vector<8x128xf32> to vector<8x16xf32>
    %515 = arith.negf %514 : vector<8x16xf32>
    %516 = math.exp %515 : vector<8x16xf32>
    %cst_227 = arith.constant 1.000000e+00 : f32
    %517 = vector.broadcast %cst_227 : f32 to vector<8x16xf32>
    %518 = arith.addf %517, %516 : vector<8x16xf32>
    %519 = arith.divf %517, %518 : vector<8x16xf32>
    %520 = arith.subf %126, %513 : vector<8x16xf32>
    %521 = arith.mulf %519, %520 : vector<8x16xf32>
    %522 = arith.addf %513, %521 : vector<8x16xf32>
    %523 = vector.extract_strided_slice %511 {offsets = [0, 8], sizes = [8, 8], strides = [1, 1]} : vector<8x16xf32> to vector<8x8xf32>
    %cst_228 = arith.constant 0.000000e+00 : f32
    %524 = vector.broadcast %cst_228 : f32 to vector<8x8xf32>
    %525 = arith.subf %524, %523 : vector<8x8xf32>
    %526 = vector.extract_strided_slice %511 {offsets = [0, 0], sizes = [8, 8], strides = [1, 1]} : vector<8x16xf32> to vector<8x8xf32>
    %527 = tpu.concatenate %525, %526 in 1 : vector<8x8xf32>, vector<8x8xf32> -> vector<8x16xf32>
    %528 = arith.mulf %511, %2 : vector<8x16xf32>
    %529 = arith.mulf %527, %3 : vector<8x16xf32>
    %530 = arith.addf %528, %529 : vector<8x16xf32>
    %531 = vector.extract_strided_slice %512 {offsets = [0, 8], sizes = [8, 8], strides = [1, 1]} : vector<8x16xf32> to vector<8x8xf32>
    %cst_229 = arith.constant 0.000000e+00 : f32
    %532 = vector.broadcast %cst_229 : f32 to vector<8x8xf32>
    %533 = arith.subf %532, %531 : vector<8x8xf32>
    %534 = vector.extract_strided_slice %512 {offsets = [0, 0], sizes = [8, 8], strides = [1, 1]} : vector<8x16xf32> to vector<8x8xf32>
    %535 = tpu.concatenate %533, %534 in 1 : vector<8x8xf32>, vector<8x8xf32> -> vector<8x16xf32>
    %536 = arith.mulf %512, %2 : vector<8x16xf32>
    %537 = arith.mulf %535, %3 : vector<8x16xf32>
    %538 = arith.addf %536, %537 : vector<8x16xf32>
    %539 = tpu.transpose %538, [1, 0] : vector<8x16xf32> -> vector<16x8xf32>
    %cst_230 = arith.constant dense<0.000000e+00> : vector<8x8xf32>
    %540 = tpu.matmul %530, %539, %cst_230 {dimension_numbers = #tpu.dot_dimension_numbers<[1], [0], [0], [1], [0, 0, 1, 1], [], []>} : vector<8x16xf32>, vector<16x8xf32>, vector<8x8xf32> -> vector<8x8xf32>
    %cst_231 = arith.constant 2.500000e-01 : f32
    %541 = vector.broadcast %cst_231 : f32 to vector<8x8xf32>
    %542 = arith.mulf %540, %541 : vector<8x8xf32>
    %cst_232 = arith.constant dense<0xFF800000> : vector<8xf32>
    %543 = vector.multi_reduction <maximumf>, %542, %cst_232 [1] : vector<8x8xf32> to vector<8xf32>
    %544 = vector.shape_cast %543 : vector<8xf32> to vector<8x1xf32>
    %545 = vector.broadcast %544 : vector<8x1xf32> to vector<8x8xf32>
    %546 = arith.subf %542, %545 : vector<8x8xf32>
    %547 = math.exp %546 : vector<8x8xf32>
    %cst_233 = arith.constant dense<0.000000e+00> : vector<8xf32>
    %548 = vector.multi_reduction <add>, %547, %cst_233 [1] : vector<8x8xf32> to vector<8xf32>
    %549 = vector.shape_cast %548 : vector<8xf32> to vector<8x1xf32>
    %550 = tpu.reciprocal %549 {approx = true} : vector<8x1xf32> -> vector<8x1xf32>
    %551 = vector.broadcast %550 : vector<8x1xf32> to vector<8x8xf32>
    %552 = arith.mulf %547, %551 : vector<8x8xf32>
    %cst_234 = arith.constant dense<0.000000e+00> : vector<8x16xf32>
    %553 = tpu.matmul %552, %522, %cst_234 {dimension_numbers = #tpu.dot_dimension_numbers<[1], [0], [0], [1], [0, 0, 1, 1], [], []>} : vector<8x8xf32>, vector<8x16xf32>, vector<8x16xf32> -> vector<8x16xf32>
    %554 = vector.extract_strided_slice %461 {offsets = [16, 0], sizes = [16, 32], strides = [1, 1]} : vector<32x32xf32> to vector<16x32xf32>
    %cst_235 = arith.constant dense<0.000000e+00> : vector<8x32xf32>
    %555 = tpu.matmul %553, %554, %cst_235 {dimension_numbers = #tpu.dot_dimension_numbers<[1], [0], [0], [1], [0, 0, 1, 1], [], []>} : vector<8x16xf32>, vector<16x32xf32>, vector<8x32xf32> -> vector<8x32xf32>
    %556 = arith.addf %510, %555 : vector<8x32xf32>
    %557 = arith.addf %430, %556 : vector<8x32xf32>
    %c1_236 = arith.constant 1 : index
    %c0_237 = arith.constant 0 : index
    %c0_238 = arith.constant 0 : index
    %558 = vector.load %arg16[%c1_236, %c0_237, %c0_238] : memref<2x1x32xf32, #tpu.memory_space<vmem>>, vector<1x1x32xf32>
    %559 = vector.shape_cast %558 : vector<1x1x32xf32> to vector<1x32xf32>
    %c1_239 = arith.constant 1 : index
    %c0_240 = arith.constant 0 : index
    %c0_241 = arith.constant 0 : index
    %560 = vector.load %arg17[%c1_239, %c0_240, %c0_241] : memref<2x1x32xf32, #tpu.memory_space<vmem>>, vector<1x1x32xf32>
    %561 = vector.shape_cast %560 : vector<1x1x32xf32> to vector<1x32xf32>
    %cst_242 = arith.constant dense<0.000000e+00> : vector<8xf32>
    %562 = vector.multi_reduction <add>, %557, %cst_242 [1] : vector<8x32xf32> to vector<8xf32>
    %563 = vector.shape_cast %562 : vector<8xf32> to vector<8x1xf32>
    %cst_243 = arith.constant 3.200000e+01 : f32
    %564 = vector.broadcast %cst_243 : f32 to vector<8x1xf32>
    %565 = arith.divf %563, %564 : vector<8x1xf32>
    %566 = vector.broadcast %565 : vector<8x1xf32> to vector<8x32xf32>
    %567 = arith.subf %557, %566 : vector<8x32xf32>
    %568 = arith.mulf %567, %567 : vector<8x32xf32>
    %cst_244 = arith.constant dense<0.000000e+00> : vector<8xf32>
    %569 = vector.multi_reduction <add>, %568, %cst_244 [1] : vector<8x32xf32> to vector<8xf32>
    %570 = vector.shape_cast %569 : vector<8xf32> to vector<8x1xf32>
    %cst_245 = arith.constant 3.200000e+01 : f32
    %571 = vector.broadcast %cst_245 : f32 to vector<8x1xf32>
    %572 = arith.divf %570, %571 : vector<8x1xf32>
    %573 = vector.broadcast %565 : vector<8x1xf32> to vector<8x32xf32>
    %574 = arith.subf %557, %573 : vector<8x32xf32>
    %cst_246 = arith.constant 9.99999974E-6 : f32
    %575 = vector.broadcast %cst_246 : f32 to vector<8x1xf32>
    %576 = arith.addf %572, %575 : vector<8x1xf32>
    %577 = math.rsqrt %576 : vector<8x1xf32>
    %578 = vector.broadcast %577 : vector<8x1xf32> to vector<8x32xf32>
    %579 = arith.mulf %574, %578 : vector<8x32xf32>
    %580 = vector.broadcast %559 : vector<1x32xf32> to vector<8x32xf32>
    %581 = arith.mulf %579, %580 : vector<8x32xf32>
    %582 = vector.broadcast %561 : vector<1x32xf32> to vector<8x32xf32>
    %583 = arith.addf %581, %582 : vector<8x32xf32>
    %c1_247 = arith.constant 1 : index
    %c0_248 = arith.constant 0 : index
    %c0_249 = arith.constant 0 : index
    %584 = vector.load %arg18[%c1_247, %c0_248, %c0_249] : memref<2x32x128xf32, #tpu.memory_space<vmem>>, vector<1x32x128xf32>
    %585 = vector.shape_cast %584 : vector<1x32x128xf32> to vector<32x128xf32>
    %cst_250 = arith.constant dense<0.000000e+00> : vector<8x128xf32>
    %586 = tpu.matmul %583, %585, %cst_250 {dimension_numbers = #tpu.dot_dimension_numbers<[1], [0], [0], [1], [0, 0, 1, 1], [], []>} : vector<8x32xf32>, vector<32x128xf32>, vector<8x128xf32> -> vector<8x128xf32>
    %c1_251 = arith.constant 1 : index
    %c0_252 = arith.constant 0 : index
    %c0_253 = arith.constant 0 : index
    %587 = vector.load %arg19[%c1_251, %c0_252, %c0_253] : memref<2x1x128xf32, #tpu.memory_space<vmem>>, vector<1x1x128xf32>
    %588 = vector.shape_cast %587 : vector<1x1x128xf32> to vector<1x128xf32>
    %589 = vector.broadcast %588 : vector<1x128xf32> to vector<8x128xf32>
    %590 = arith.addf %586, %589 : vector<8x128xf32>
    %591 = vector.extract_strided_slice %590 {offsets = [0, 0], sizes = [8, 64], strides = [1, 1]} : vector<8x128xf32> to vector<8x64xf32>
    %592 = vector.extract_strided_slice %590 {offsets = [0, 64], sizes = [8, 64], strides = [1, 1]} : vector<8x128xf32> to vector<8x64xf32>
    %593 = arith.negf %592 : vector<8x64xf32>
    %594 = math.exp %593 : vector<8x64xf32>
    %cst_254 = arith.constant 1.000000e+00 : f32
    %595 = vector.broadcast %cst_254 : f32 to vector<8x64xf32>
    %596 = arith.addf %595, %594 : vector<8x64xf32>
    %597 = arith.divf %595, %596 : vector<8x64xf32>
    %598 = arith.mulf %591, %597 : vector<8x64xf32>
    %c1_255 = arith.constant 1 : index
    %c0_256 = arith.constant 0 : index
    %c0_257 = arith.constant 0 : index
    %599 = vector.load %arg20[%c1_255, %c0_256, %c0_257] : memref<2x7x64xf32, #tpu.memory_space<vmem>>, vector<1x7x64xf32>
    %600 = vector.shape_cast %599 : vector<1x7x64xf32> to vector<7x64xf32>
    %c0_258 = arith.constant 0 : index
    %c0_259 = arith.constant 0 : index
    %c0_260 = arith.constant 0 : index
    %601 = vector.load %arg4[%c0_258, %c0_259, %c0_260] : memref<7x8x8xf32, #tpu.memory_space<vmem>>, vector<1x8x8xf32>
    %602 = vector.shape_cast %601 : vector<1x8x8xf32> to vector<8x8xf32>
    %cst_261 = arith.constant dense<0.000000e+00> : vector<8x64xf32>
    %603 = tpu.matmul %602, %598, %cst_261 {dimension_numbers = #tpu.dot_dimension_numbers<[1], [0], [0], [1], [0, 0, 1, 1], [], []>} : vector<8x8xf32>, vector<8x64xf32>, vector<8x64xf32> -> vector<8x64xf32>
    %604 = vector.extract_strided_slice %600 {offsets = [0, 0], sizes = [1, 64], strides = [1, 1]} : vector<7x64xf32> to vector<1x64xf32>
    %605 = vector.shape_cast %604 : vector<1x64xf32> to vector<64xf32>
    %606 = vector.shape_cast %605 : vector<64xf32> to vector<1x64xf32>
    %607 = vector.broadcast %606 : vector<1x64xf32> to vector<8x64xf32>
    %608 = arith.mulf %603, %607 : vector<8x64xf32>
    %c1_262 = arith.constant 1 : index
    %c0_263 = arith.constant 0 : index
    %c0_264 = arith.constant 0 : index
    %609 = vector.load %arg4[%c1_262, %c0_263, %c0_264] : memref<7x8x8xf32, #tpu.memory_space<vmem>>, vector<1x8x8xf32>
    %610 = vector.shape_cast %609 : vector<1x8x8xf32> to vector<8x8xf32>
    %cst_265 = arith.constant dense<0.000000e+00> : vector<8x64xf32>
    %611 = tpu.matmul %610, %598, %cst_265 {dimension_numbers = #tpu.dot_dimension_numbers<[1], [0], [0], [1], [0, 0, 1, 1], [], []>} : vector<8x8xf32>, vector<8x64xf32>, vector<8x64xf32> -> vector<8x64xf32>
    %612 = vector.extract_strided_slice %600 {offsets = [1, 0], sizes = [1, 64], strides = [1, 1]} : vector<7x64xf32> to vector<1x64xf32>
    %613 = vector.shape_cast %612 : vector<1x64xf32> to vector<64xf32>
    %614 = vector.shape_cast %613 : vector<64xf32> to vector<1x64xf32>
    %615 = vector.broadcast %614 : vector<1x64xf32> to vector<8x64xf32>
    %616 = arith.mulf %611, %615 : vector<8x64xf32>
    %617 = arith.addf %608, %616 : vector<8x64xf32>
    %c2_266 = arith.constant 2 : index
    %c0_267 = arith.constant 0 : index
    %c0_268 = arith.constant 0 : index
    %618 = vector.load %arg4[%c2_266, %c0_267, %c0_268] : memref<7x8x8xf32, #tpu.memory_space<vmem>>, vector<1x8x8xf32>
    %619 = vector.shape_cast %618 : vector<1x8x8xf32> to vector<8x8xf32>
    %cst_269 = arith.constant dense<0.000000e+00> : vector<8x64xf32>
    %620 = tpu.matmul %619, %598, %cst_269 {dimension_numbers = #tpu.dot_dimension_numbers<[1], [0], [0], [1], [0, 0, 1, 1], [], []>} : vector<8x8xf32>, vector<8x64xf32>, vector<8x64xf32> -> vector<8x64xf32>
    %621 = vector.extract_strided_slice %600 {offsets = [2, 0], sizes = [1, 64], strides = [1, 1]} : vector<7x64xf32> to vector<1x64xf32>
    %622 = vector.shape_cast %621 : vector<1x64xf32> to vector<64xf32>
    %623 = vector.shape_cast %622 : vector<64xf32> to vector<1x64xf32>
    %624 = vector.broadcast %623 : vector<1x64xf32> to vector<8x64xf32>
    %625 = arith.mulf %620, %624 : vector<8x64xf32>
    %626 = arith.addf %617, %625 : vector<8x64xf32>
    %c3_270 = arith.constant 3 : index
    %c0_271 = arith.constant 0 : index
    %c0_272 = arith.constant 0 : index
    %627 = vector.load %arg4[%c3_270, %c0_271, %c0_272] : memref<7x8x8xf32, #tpu.memory_space<vmem>>, vector<1x8x8xf32>
    %628 = vector.shape_cast %627 : vector<1x8x8xf32> to vector<8x8xf32>
    %cst_273 = arith.constant dense<0.000000e+00> : vector<8x64xf32>
    %629 = tpu.matmul %628, %598, %cst_273 {dimension_numbers = #tpu.dot_dimension_numbers<[1], [0], [0], [1], [0, 0, 1, 1], [], []>} : vector<8x8xf32>, vector<8x64xf32>, vector<8x64xf32> -> vector<8x64xf32>
    %630 = vector.extract_strided_slice %600 {offsets = [3, 0], sizes = [1, 64], strides = [1, 1]} : vector<7x64xf32> to vector<1x64xf32>
    %631 = vector.shape_cast %630 : vector<1x64xf32> to vector<64xf32>
    %632 = vector.shape_cast %631 : vector<64xf32> to vector<1x64xf32>
    %633 = vector.broadcast %632 : vector<1x64xf32> to vector<8x64xf32>
    %634 = arith.mulf %629, %633 : vector<8x64xf32>
    %635 = arith.addf %626, %634 : vector<8x64xf32>
    %c4_274 = arith.constant 4 : index
    %c0_275 = arith.constant 0 : index
    %c0_276 = arith.constant 0 : index
    %636 = vector.load %arg4[%c4_274, %c0_275, %c0_276] : memref<7x8x8xf32, #tpu.memory_space<vmem>>, vector<1x8x8xf32>
    %637 = vector.shape_cast %636 : vector<1x8x8xf32> to vector<8x8xf32>
    %cst_277 = arith.constant dense<0.000000e+00> : vector<8x64xf32>
    %638 = tpu.matmul %637, %598, %cst_277 {dimension_numbers = #tpu.dot_dimension_numbers<[1], [0], [0], [1], [0, 0, 1, 1], [], []>} : vector<8x8xf32>, vector<8x64xf32>, vector<8x64xf32> -> vector<8x64xf32>
    %639 = vector.extract_strided_slice %600 {offsets = [4, 0], sizes = [1, 64], strides = [1, 1]} : vector<7x64xf32> to vector<1x64xf32>
    %640 = vector.shape_cast %639 : vector<1x64xf32> to vector<64xf32>
    %641 = vector.shape_cast %640 : vector<64xf32> to vector<1x64xf32>
    %642 = vector.broadcast %641 : vector<1x64xf32> to vector<8x64xf32>
    %643 = arith.mulf %638, %642 : vector<8x64xf32>
    %644 = arith.addf %635, %643 : vector<8x64xf32>
    %c5_278 = arith.constant 5 : index
    %c0_279 = arith.constant 0 : index
    %c0_280 = arith.constant 0 : index
    %645 = vector.load %arg4[%c5_278, %c0_279, %c0_280] : memref<7x8x8xf32, #tpu.memory_space<vmem>>, vector<1x8x8xf32>
    %646 = vector.shape_cast %645 : vector<1x8x8xf32> to vector<8x8xf32>
    %cst_281 = arith.constant dense<0.000000e+00> : vector<8x64xf32>
    %647 = tpu.matmul %646, %598, %cst_281 {dimension_numbers = #tpu.dot_dimension_numbers<[1], [0], [0], [1], [0, 0, 1, 1], [], []>} : vector<8x8xf32>, vector<8x64xf32>, vector<8x64xf32> -> vector<8x64xf32>
    %648 = vector.extract_strided_slice %600 {offsets = [5, 0], sizes = [1, 64], strides = [1, 1]} : vector<7x64xf32> to vector<1x64xf32>
    %649 = vector.shape_cast %648 : vector<1x64xf32> to vector<64xf32>
    %650 = vector.shape_cast %649 : vector<64xf32> to vector<1x64xf32>
    %651 = vector.broadcast %650 : vector<1x64xf32> to vector<8x64xf32>
    %652 = arith.mulf %647, %651 : vector<8x64xf32>
    %653 = arith.addf %644, %652 : vector<8x64xf32>
    %c6_282 = arith.constant 6 : index
    %c0_283 = arith.constant 0 : index
    %c0_284 = arith.constant 0 : index
    %654 = vector.load %arg4[%c6_282, %c0_283, %c0_284] : memref<7x8x8xf32, #tpu.memory_space<vmem>>, vector<1x8x8xf32>
    %655 = vector.shape_cast %654 : vector<1x8x8xf32> to vector<8x8xf32>
    %cst_285 = arith.constant dense<0.000000e+00> : vector<8x64xf32>
    %656 = tpu.matmul %655, %598, %cst_285 {dimension_numbers = #tpu.dot_dimension_numbers<[1], [0], [0], [1], [0, 0, 1, 1], [], []>} : vector<8x8xf32>, vector<8x64xf32>, vector<8x64xf32> -> vector<8x64xf32>
    %657 = vector.extract_strided_slice %600 {offsets = [6, 0], sizes = [1, 64], strides = [1, 1]} : vector<7x64xf32> to vector<1x64xf32>
    %658 = vector.shape_cast %657 : vector<1x64xf32> to vector<64xf32>
    %659 = vector.shape_cast %658 : vector<64xf32> to vector<1x64xf32>
    %660 = vector.broadcast %659 : vector<1x64xf32> to vector<8x64xf32>
    %661 = arith.mulf %656, %660 : vector<8x64xf32>
    %662 = arith.addf %653, %661 : vector<8x64xf32>
    %c1_286 = arith.constant 1 : index
    %c0_287 = arith.constant 0 : index
    %c0_288 = arith.constant 0 : index
    %663 = vector.load %arg21[%c1_286, %c0_287, %c0_288] : memref<2x1x64xf32, #tpu.memory_space<vmem>>, vector<1x1x64xf32>
    %664 = vector.shape_cast %663 : vector<1x1x64xf32> to vector<1x64xf32>
    %665 = vector.broadcast %664 : vector<1x64xf32> to vector<8x64xf32>
    %666 = arith.addf %662, %665 : vector<8x64xf32>
    %667 = arith.negf %666 : vector<8x64xf32>
    %668 = math.exp %667 : vector<8x64xf32>
    %cst_289 = arith.constant 1.000000e+00 : f32
    %669 = vector.broadcast %cst_289 : f32 to vector<8x64xf32>
    %670 = arith.addf %669, %668 : vector<8x64xf32>
    %671 = arith.divf %669, %670 : vector<8x64xf32>
    %672 = arith.mulf %666, %671 : vector<8x64xf32>
    %cst_290 = arith.constant dense<0.000000e+00> : vector<8xf32>
    %673 = vector.multi_reduction <add>, %672, %cst_290 [1] : vector<8x64xf32> to vector<8xf32>
    %674 = vector.shape_cast %673 : vector<8xf32> to vector<8x1xf32>
    %cst_291 = arith.constant 6.400000e+01 : f32
    %675 = vector.broadcast %cst_291 : f32 to vector<8x1xf32>
    %676 = arith.divf %674, %675 : vector<8x1xf32>
    %677 = vector.broadcast %676 : vector<8x1xf32> to vector<8x64xf32>
    %678 = arith.subf %672, %677 : vector<8x64xf32>
    %679 = arith.mulf %678, %678 : vector<8x64xf32>
    %cst_292 = arith.constant dense<0.000000e+00> : vector<8xf32>
    %680 = vector.multi_reduction <add>, %679, %cst_292 [1] : vector<8x64xf32> to vector<8xf32>
    %681 = vector.shape_cast %680 : vector<8xf32> to vector<8x1xf32>
    %cst_293 = arith.constant 6.400000e+01 : f32
    %682 = vector.broadcast %cst_293 : f32 to vector<8x1xf32>
    %683 = arith.divf %681, %682 : vector<8x1xf32>
    %684 = vector.broadcast %676 : vector<8x1xf32> to vector<8x64xf32>
    %685 = arith.subf %672, %684 : vector<8x64xf32>
    %cst_294 = arith.constant 9.99999997E-7 : f32
    %686 = vector.broadcast %cst_294 : f32 to vector<8x1xf32>
    %687 = arith.maximumf %683, %686 : vector<8x1xf32>
    %688 = math.rsqrt %687 : vector<8x1xf32>
    %689 = vector.broadcast %688 : vector<8x1xf32> to vector<8x64xf32>
    %690 = arith.mulf %685, %689 : vector<8x64xf32>
    %c1_295 = arith.constant 1 : index
    %c0_296 = arith.constant 0 : index
    %c0_297 = arith.constant 0 : index
    %691 = vector.load %arg22[%c1_295, %c0_296, %c0_297] : memref<2x1x64xf32, #tpu.memory_space<vmem>>, vector<1x1x64xf32>
    %692 = vector.shape_cast %691 : vector<1x1x64xf32> to vector<1x64xf32>
    %693 = vector.broadcast %692 : vector<1x64xf32> to vector<8x64xf32>
    %694 = arith.mulf %690, %693 : vector<8x64xf32>
    %c1_298 = arith.constant 1 : index
    %c0_299 = arith.constant 0 : index
    %c0_300 = arith.constant 0 : index
    %695 = vector.load %arg23[%c1_298, %c0_299, %c0_300] : memref<2x64x32xf32, #tpu.memory_space<vmem>>, vector<1x64x32xf32>
    %696 = vector.shape_cast %695 : vector<1x64x32xf32> to vector<64x32xf32>
    %cst_301 = arith.constant dense<0.000000e+00> : vector<8x32xf32>
    %697 = tpu.matmul %694, %696, %cst_301 {dimension_numbers = #tpu.dot_dimension_numbers<[1], [0], [0], [1], [0, 0, 1, 1], [], []>} : vector<8x64xf32>, vector<64x32xf32>, vector<8x32xf32> -> vector<8x32xf32>
    %c1_302 = arith.constant 1 : index
    %c0_303 = arith.constant 0 : index
    %c0_304 = arith.constant 0 : index
    %698 = vector.load %arg24[%c1_302, %c0_303, %c0_304] : memref<2x1x32xf32, #tpu.memory_space<vmem>>, vector<1x1x32xf32>
    %699 = vector.shape_cast %698 : vector<1x1x32xf32> to vector<1x32xf32>
    %700 = vector.broadcast %699 : vector<1x32xf32> to vector<8x32xf32>
    %701 = arith.addf %697, %700 : vector<8x32xf32>
    %702 = arith.addf %557, %701 : vector<8x32xf32>
    %c1_305 = arith.constant 1 : index
    %c0_306 = arith.constant 0 : index
    %c0_307 = arith.constant 0 : index
    %703 = vector.load %arg25[%c1_305, %c0_306, %c0_307] : memref<2x1x32xf32, #tpu.memory_space<vmem>>, vector<1x1x32xf32>
    %704 = vector.shape_cast %703 : vector<1x1x32xf32> to vector<1x32xf32>
    %c1_308 = arith.constant 1 : index
    %c0_309 = arith.constant 0 : index
    %c0_310 = arith.constant 0 : index
    %705 = vector.load %arg26[%c1_308, %c0_309, %c0_310] : memref<2x1x32xf32, #tpu.memory_space<vmem>>, vector<1x1x32xf32>
    %706 = vector.shape_cast %705 : vector<1x1x32xf32> to vector<1x32xf32>
    %cst_311 = arith.constant dense<0.000000e+00> : vector<8xf32>
    %707 = vector.multi_reduction <add>, %702, %cst_311 [1] : vector<8x32xf32> to vector<8xf32>
    %708 = vector.shape_cast %707 : vector<8xf32> to vector<8x1xf32>
    %cst_312 = arith.constant 3.200000e+01 : f32
    %709 = vector.broadcast %cst_312 : f32 to vector<8x1xf32>
    %710 = arith.divf %708, %709 : vector<8x1xf32>
    %711 = vector.broadcast %710 : vector<8x1xf32> to vector<8x32xf32>
    %712 = arith.subf %702, %711 : vector<8x32xf32>
    %713 = arith.mulf %712, %712 : vector<8x32xf32>
    %cst_313 = arith.constant dense<0.000000e+00> : vector<8xf32>
    %714 = vector.multi_reduction <add>, %713, %cst_313 [1] : vector<8x32xf32> to vector<8xf32>
    %715 = vector.shape_cast %714 : vector<8xf32> to vector<8x1xf32>
    %cst_314 = arith.constant 3.200000e+01 : f32
    %716 = vector.broadcast %cst_314 : f32 to vector<8x1xf32>
    %717 = arith.divf %715, %716 : vector<8x1xf32>
    %718 = vector.broadcast %710 : vector<8x1xf32> to vector<8x32xf32>
    %719 = arith.subf %702, %718 : vector<8x32xf32>
    %cst_315 = arith.constant 9.99999974E-6 : f32
    %720 = vector.broadcast %cst_315 : f32 to vector<8x1xf32>
    %721 = arith.addf %717, %720 : vector<8x1xf32>
    %722 = math.rsqrt %721 : vector<8x1xf32>
    %723 = vector.broadcast %722 : vector<8x1xf32> to vector<8x32xf32>
    %724 = arith.mulf %719, %723 : vector<8x32xf32>
    %725 = vector.broadcast %704 : vector<1x32xf32> to vector<8x32xf32>
    %726 = arith.mulf %724, %725 : vector<8x32xf32>
    %727 = vector.broadcast %706 : vector<1x32xf32> to vector<8x32xf32>
    %728 = arith.addf %726, %727 : vector<8x32xf32>
    %c1_316 = arith.constant 1 : index
    %c0_317 = arith.constant 0 : index
    %c0_318 = arith.constant 0 : index
    %729 = vector.load %arg27[%c1_316, %c0_317, %c0_318] : memref<2x32x128xf32, #tpu.memory_space<vmem>>, vector<1x32x128xf32>
    %730 = vector.shape_cast %729 : vector<1x32x128xf32> to vector<32x128xf32>
    %cst_319 = arith.constant dense<0.000000e+00> : vector<8x128xf32>
    %731 = tpu.matmul %728, %730, %cst_319 {dimension_numbers = #tpu.dot_dimension_numbers<[1], [0], [0], [1], [0, 0, 1, 1], [], []>} : vector<8x32xf32>, vector<32x128xf32>, vector<8x128xf32> -> vector<8x128xf32>
    %c1_320 = arith.constant 1 : index
    %c0_321 = arith.constant 0 : index
    %c0_322 = arith.constant 0 : index
    %732 = vector.load %arg28[%c1_320, %c0_321, %c0_322] : memref<2x1x128xf32, #tpu.memory_space<vmem>>, vector<1x1x128xf32>
    %733 = vector.shape_cast %732 : vector<1x1x128xf32> to vector<1x128xf32>
    %734 = vector.broadcast %733 : vector<1x128xf32> to vector<8x128xf32>
    %735 = arith.addf %731, %734 : vector<8x128xf32>
    %736 = arith.negf %735 : vector<8x128xf32>
    %737 = math.exp %736 : vector<8x128xf32>
    %cst_323 = arith.constant 1.000000e+00 : f32
    %738 = vector.broadcast %cst_323 : f32 to vector<8x128xf32>
    %739 = arith.addf %738, %737 : vector<8x128xf32>
    %740 = arith.divf %738, %739 : vector<8x128xf32>
    %741 = arith.mulf %735, %740 : vector<8x128xf32>
    %c1_324 = arith.constant 1 : index
    %c0_325 = arith.constant 0 : index
    %c0_326 = arith.constant 0 : index
    %742 = vector.load %arg29[%c1_324, %c0_325, %c0_326] : memref<2x128x32xf32, #tpu.memory_space<vmem>>, vector<1x128x32xf32>
    %743 = vector.shape_cast %742 : vector<1x128x32xf32> to vector<128x32xf32>
    %cst_327 = arith.constant dense<0.000000e+00> : vector<8x32xf32>
    %744 = tpu.matmul %741, %743, %cst_327 {dimension_numbers = #tpu.dot_dimension_numbers<[1], [0], [0], [1], [0, 0, 1, 1], [], []>} : vector<8x128xf32>, vector<128x32xf32>, vector<8x32xf32> -> vector<8x32xf32>
    %c1_328 = arith.constant 1 : index
    %c0_329 = arith.constant 0 : index
    %c0_330 = arith.constant 0 : index
    %745 = vector.load %arg30[%c1_328, %c0_329, %c0_330] : memref<2x1x32xf32, #tpu.memory_space<vmem>>, vector<1x1x32xf32>
    %746 = vector.shape_cast %745 : vector<1x1x32xf32> to vector<1x32xf32>
    %747 = vector.broadcast %746 : vector<1x32xf32> to vector<8x32xf32>
    %748 = arith.addf %744, %747 : vector<8x32xf32>
    %cst_331 = arith.constant 5.000000e-01 : f32
    %749 = vector.broadcast %cst_331 : f32 to vector<8x32xf32>
    %750 = arith.mulf %749, %748 : vector<8x32xf32>
    %751 = arith.addf %702, %750 : vector<8x32xf32>
    %c1_332 = arith.constant 1 : index
    %c0_333 = arith.constant 0 : index
    %c0_334 = arith.constant 0 : index
    %752 = vector.load %arg31[%c1_332, %c0_333, %c0_334] : memref<2x1x32xf32, #tpu.memory_space<vmem>>, vector<1x1x32xf32>
    %753 = vector.shape_cast %752 : vector<1x1x32xf32> to vector<1x32xf32>
    %c1_335 = arith.constant 1 : index
    %c0_336 = arith.constant 0 : index
    %c0_337 = arith.constant 0 : index
    %754 = vector.load %arg32[%c1_335, %c0_336, %c0_337] : memref<2x1x32xf32, #tpu.memory_space<vmem>>, vector<1x1x32xf32>
    %755 = vector.shape_cast %754 : vector<1x1x32xf32> to vector<1x32xf32>
    %cst_338 = arith.constant dense<0.000000e+00> : vector<8xf32>
    %756 = vector.multi_reduction <add>, %751, %cst_338 [1] : vector<8x32xf32> to vector<8xf32>
    %757 = vector.shape_cast %756 : vector<8xf32> to vector<8x1xf32>
    %cst_339 = arith.constant 3.200000e+01 : f32
    %758 = vector.broadcast %cst_339 : f32 to vector<8x1xf32>
    %759 = arith.divf %757, %758 : vector<8x1xf32>
    %760 = vector.broadcast %759 : vector<8x1xf32> to vector<8x32xf32>
    %761 = arith.subf %751, %760 : vector<8x32xf32>
    %762 = arith.mulf %761, %761 : vector<8x32xf32>
    %cst_340 = arith.constant dense<0.000000e+00> : vector<8xf32>
    %763 = vector.multi_reduction <add>, %762, %cst_340 [1] : vector<8x32xf32> to vector<8xf32>
    %764 = vector.shape_cast %763 : vector<8xf32> to vector<8x1xf32>
    %cst_341 = arith.constant 3.200000e+01 : f32
    %765 = vector.broadcast %cst_341 : f32 to vector<8x1xf32>
    %766 = arith.divf %764, %765 : vector<8x1xf32>
    %767 = vector.broadcast %759 : vector<8x1xf32> to vector<8x32xf32>
    %768 = arith.subf %751, %767 : vector<8x32xf32>
    %cst_342 = arith.constant 9.99999974E-6 : f32
    %769 = vector.broadcast %cst_342 : f32 to vector<8x1xf32>
    %770 = arith.addf %766, %769 : vector<8x1xf32>
    %771 = math.rsqrt %770 : vector<8x1xf32>
    %772 = vector.broadcast %771 : vector<8x1xf32> to vector<8x32xf32>
    %773 = arith.mulf %768, %772 : vector<8x32xf32>
    %774 = vector.broadcast %753 : vector<1x32xf32> to vector<8x32xf32>
    %775 = arith.mulf %773, %774 : vector<8x32xf32>
    %776 = vector.broadcast %755 : vector<1x32xf32> to vector<8x32xf32>
    %777 = arith.addf %775, %776 : vector<8x32xf32>
    %c0_343 = arith.constant 0 : index
    %c0_344 = arith.constant 0 : index
    %778 = vector.load %arg33[%c0_343, %c0_344] : memref<32x128xf32, #tpu.memory_space<vmem>>, vector<32x128xf32>
    %cst_345 = arith.constant dense<0.000000e+00> : vector<8x128xf32>
    %779 = tpu.matmul %777, %778, %cst_345 {dimension_numbers = #tpu.dot_dimension_numbers<[1], [0], [0], [1], [0, 0, 1, 1], [], []>} : vector<8x32xf32>, vector<32x128xf32>, vector<8x128xf32> -> vector<8x128xf32>
    %c0_346 = arith.constant 0 : index
    %c0_347 = arith.constant 0 : index
    %780 = vector.load %arg34[%c0_346, %c0_347] : memref<1x128xf32, #tpu.memory_space<vmem>>, vector<1x128xf32>
    %781 = vector.broadcast %780 : vector<1x128xf32> to vector<8x128xf32>
    %782 = arith.addf %779, %781 : vector<8x128xf32>
    %c0_348 = arith.constant 0 : index
    %c0_349 = arith.constant 0 : index
    %c0_350 = arith.constant 0 : index
    %783 = vector.load %arg35[%c0_348, %c0_349, %c0_350] : memref<1x8x128xf32, #tpu.memory_space<vmem>>, vector<1x8x128xf32>
    %784 = vector.shape_cast %783 : vector<1x8x128xf32> to vector<8x128xf32>
    %785 = vector.shape_cast %782 : vector<8x128xf32> to vector<1x8x128xf32>
    tpu.vector_store %arg35[%c0_348, %c0_349, %c0_350], %785 {strides = array<i32>} : memref<1x8x128xf32, #tpu.memory_space<vmem>>, vector<1x8x128xf32>,
    return
  }
  func.func @transform_0(%arg0: i32) -> (i32, i32, i32) {
    %c0_i32 = arith.constant 0 : i32
    %c0_i32_0 = arith.constant 0 : i32
    %c0_i32_1 = arith.constant 0 : i32
    return %arg0, %c0_i32, %c0_i32_0 : i32, i32, i32
  }
  func.func @transform_1(%arg0: i32) -> (i32, i32) {
    %c0_i32 = arith.constant 0 : i32
    %c0_i32_0 = arith.constant 0 : i32
    %c0_i32_1 = arith.constant 0 : i32
    return %c0_i32, %c0_i32_0 : i32, i32
  }
  func.func @transform_2(%arg0: i32) -> (i32, i32) {
    %c0_i32 = arith.constant 0 : i32
    %c0_i32_0 = arith.constant 0 : i32
    %c0_i32_1 = arith.constant 0 : i32
    return %c0_i32, %c0_i32_0 : i32, i32
  }
  func.func @transform_3(%arg0: i32) -> (i32, i32, i32) {
    %c0_i32 = arith.constant 0 : i32
    %c0_i32_0 = arith.constant 0 : i32
    %c0_i32_1 = arith.constant 0 : i32
    %c0_i32_2 = arith.constant 0 : i32
    return %c0_i32, %c0_i32_0, %c0_i32_1 : i32, i32, i32
  }
  func.func @transform_4(%arg0: i32) -> (i32, i32, i32) {
    %c0_i32 = arith.constant 0 : i32
    %c0_i32_0 = arith.constant 0 : i32
    %c0_i32_1 = arith.constant 0 : i32
    %c0_i32_2 = arith.constant 0 : i32
    return %c0_i32, %c0_i32_0, %c0_i32_1 : i32, i32, i32
  }
  func.func @transform_5(%arg0: i32) -> (i32, i32, i32) {
    %c0_i32 = arith.constant 0 : i32
    %c0_i32_0 = arith.constant 0 : i32
    %c0_i32_1 = arith.constant 0 : i32
    %c0_i32_2 = arith.constant 0 : i32
    return %c0_i32, %c0_i32_0, %c0_i32_1 : i32, i32, i32
  }
  func.func @transform_6(%arg0: i32) -> (i32, i32, i32) {
    %c0_i32 = arith.constant 0 : i32
    %c0_i32_0 = arith.constant 0 : i32
    %c0_i32_1 = arith.constant 0 : i32
    %c0_i32_2 = arith.constant 0 : i32
    return %c0_i32, %c0_i32_0, %c0_i32_1 : i32, i32, i32
  }
  func.func @transform_7(%arg0: i32) -> (i32, i32, i32) {
    %c0_i32 = arith.constant 0 : i32
    %c0_i32_0 = arith.constant 0 : i32
    %c0_i32_1 = arith.constant 0 : i32
    %c0_i32_2 = arith.constant 0 : i32
    return %c0_i32, %c0_i32_0, %c0_i32_1 : i32, i32, i32
  }
  func.func @transform_8(%arg0: i32) -> (i32, i32, i32) {
    %c0_i32 = arith.constant 0 : i32
    %c0_i32_0 = arith.constant 0 : i32
    %c0_i32_1 = arith.constant 0 : i32
    %c0_i32_2 = arith.constant 0 : i32
    return %c0_i32, %c0_i32_0, %c0_i32_1 : i32, i32, i32
  }
  func.func @transform_9(%arg0: i32) -> (i32, i32, i32) {
    %c0_i32 = arith.constant 0 : i32
    %c0_i32_0 = arith.constant 0 : i32
    %c0_i32_1 = arith.constant 0 : i32
    %c0_i32_2 = arith.constant 0 : i32
    return %c0_i32, %c0_i32_0, %c0_i32_1 : i32, i32, i32
  }
  func.func @transform_10(%arg0: i32) -> (i32, i32, i32) {
    %c0_i32 = arith.constant 0 : i32
    %c0_i32_0 = arith.constant 0 : i32
    %c0_i32_1 = arith.constant 0 : i32
    %c0_i32_2 = arith.constant 0 : i32
    return %c0_i32, %c0_i32_0, %c0_i32_1 : i32, i32, i32
  }
  func.func @transform_11(%arg0: i32) -> (i32, i32, i32) {
    %c0_i32 = arith.constant 0 : i32
    %c0_i32_0 = arith.constant 0 : i32
    %c0_i32_1 = arith.constant 0 : i32
    %c0_i32_2 = arith.constant 0 : i32
    return %c0_i32, %c0_i32_0, %c0_i32_1 : i32, i32, i32
  }
  func.func @transform_12(%arg0: i32) -> (i32, i32, i32) {
    %c0_i32 = arith.constant 0 : i32
    %c0_i32_0 = arith.constant 0 : i32
    %c0_i32_1 = arith.constant 0 : i32
    %c0_i32_2 = arith.constant 0 : i32
    return %c0_i32, %c0_i32_0, %c0_i32_1 : i32, i32, i32
  }
  func.func @transform_13(%arg0: i32) -> (i32, i32, i32) {
    %c0_i32 = arith.constant 0 : i32
    %c0_i32_0 = arith.constant 0 : i32
    %c0_i32_1 = arith.constant 0 : i32
    %c0_i32_2 = arith.constant 0 : i32
    return %c0_i32, %c0_i32_0, %c0_i32_1 : i32, i32, i32
  }
  func.func @transform_14(%arg0: i32) -> (i32, i32, i32) {
    %c0_i32 = arith.constant 0 : i32
    %c0_i32_0 = arith.constant 0 : i32
    %c0_i32_1 = arith.constant 0 : i32
    %c0_i32_2 = arith.constant 0 : i32
    return %c0_i32, %c0_i32_0, %c0_i32_1 : i32, i32, i32
  }
  func.func @transform_15(%arg0: i32) -> (i32, i32, i32) {
    %c0_i32 = arith.constant 0 : i32
    %c0_i32_0 = arith.constant 0 : i32
    %c0_i32_1 = arith.constant 0 : i32
    %c0_i32_2 = arith.constant 0 : i32
    return %c0_i32, %c0_i32_0, %c0_i32_1 : i32, i32, i32
  }
  func.func @transform_16(%arg0: i32) -> (i32, i32, i32) {
    %c0_i32 = arith.constant 0 : i32
    %c0_i32_0 = arith.constant 0 : i32
    %c0_i32_1 = arith.constant 0 : i32
    %c0_i32_2 = arith.constant 0 : i32
    return %c0_i32, %c0_i32_0, %c0_i32_1 : i32, i32, i32
  }
  func.func @transform_17(%arg0: i32) -> (i32, i32, i32) {
    %c0_i32 = arith.constant 0 : i32
    %c0_i32_0 = arith.constant 0 : i32
    %c0_i32_1 = arith.constant 0 : i32
    %c0_i32_2 = arith.constant 0 : i32
    return %c0_i32, %c0_i32_0, %c0_i32_1 : i32, i32, i32
  }
  func.func @transform_18(%arg0: i32) -> (i32, i32, i32) {
    %c0_i32 = arith.constant 0 : i32
    %c0_i32_0 = arith.constant 0 : i32
    %c0_i32_1 = arith.constant 0 : i32
    %c0_i32_2 = arith.constant 0 : i32
    return %c0_i32, %c0_i32_0, %c0_i32_1 : i32, i32, i32
  }
  func.func @transform_19(%arg0: i32) -> (i32, i32, i32) {
    %c0_i32 = arith.constant 0 : i32
    %c0_i32_0 = arith.constant 0 : i32
    %c0_i32_1 = arith.constant 0 : i32
    %c0_i32_2 = arith.constant 0 : i32
    return %c0_i32, %c0_i32_0, %c0_i32_1 : i32, i32, i32
  }
  func.func @transform_20(%arg0: i32) -> (i32, i32, i32) {
    %c0_i32 = arith.constant 0 : i32
    %c0_i32_0 = arith.constant 0 : i32
    %c0_i32_1 = arith.constant 0 : i32
    %c0_i32_2 = arith.constant 0 : i32
    return %c0_i32, %c0_i32_0, %c0_i32_1 : i32, i32, i32
  }
  func.func @transform_21(%arg0: i32) -> (i32, i32, i32) {
    %c0_i32 = arith.constant 0 : i32
    %c0_i32_0 = arith.constant 0 : i32
    %c0_i32_1 = arith.constant 0 : i32
    %c0_i32_2 = arith.constant 0 : i32
    return %c0_i32, %c0_i32_0, %c0_i32_1 : i32, i32, i32
  }
  func.func @transform_22(%arg0: i32) -> (i32, i32, i32) {
    %c0_i32 = arith.constant 0 : i32
    %c0_i32_0 = arith.constant 0 : i32
    %c0_i32_1 = arith.constant 0 : i32
    %c0_i32_2 = arith.constant 0 : i32
    return %c0_i32, %c0_i32_0, %c0_i32_1 : i32, i32, i32
  }
  func.func @transform_23(%arg0: i32) -> (i32, i32, i32) {
    %c0_i32 = arith.constant 0 : i32
    %c0_i32_0 = arith.constant 0 : i32
    %c0_i32_1 = arith.constant 0 : i32
    %c0_i32_2 = arith.constant 0 : i32
    return %c0_i32, %c0_i32_0, %c0_i32_1 : i32, i32, i32
  }
  func.func @transform_24(%arg0: i32) -> (i32, i32, i32) {
    %c0_i32 = arith.constant 0 : i32
    %c0_i32_0 = arith.constant 0 : i32
    %c0_i32_1 = arith.constant 0 : i32
    %c0_i32_2 = arith.constant 0 : i32
    return %c0_i32, %c0_i32_0, %c0_i32_1 : i32, i32, i32
  }
  func.func @transform_25(%arg0: i32) -> (i32, i32, i32) {
    %c0_i32 = arith.constant 0 : i32
    %c0_i32_0 = arith.constant 0 : i32
    %c0_i32_1 = arith.constant 0 : i32
    %c0_i32_2 = arith.constant 0 : i32
    return %c0_i32, %c0_i32_0, %c0_i32_1 : i32, i32, i32
  }
  func.func @transform_26(%arg0: i32) -> (i32, i32, i32) {
    %c0_i32 = arith.constant 0 : i32
    %c0_i32_0 = arith.constant 0 : i32
    %c0_i32_1 = arith.constant 0 : i32
    %c0_i32_2 = arith.constant 0 : i32
    return %c0_i32, %c0_i32_0, %c0_i32_1 : i32, i32, i32
  }
  func.func @transform_27(%arg0: i32) -> (i32, i32, i32) {
    %c0_i32 = arith.constant 0 : i32
    %c0_i32_0 = arith.constant 0 : i32
    %c0_i32_1 = arith.constant 0 : i32
    %c0_i32_2 = arith.constant 0 : i32
    return %c0_i32, %c0_i32_0, %c0_i32_1 : i32, i32, i32
  }
  func.func @transform_28(%arg0: i32) -> (i32, i32, i32) {
    %c0_i32 = arith.constant 0 : i32
    %c0_i32_0 = arith.constant 0 : i32
    %c0_i32_1 = arith.constant 0 : i32
    %c0_i32_2 = arith.constant 0 : i32
    return %c0_i32, %c0_i32_0, %c0_i32_1 : i32, i32, i32
  }
  func.func @transform_29(%arg0: i32) -> (i32, i32, i32) {
    %c0_i32 = arith.constant 0 : i32
    %c0_i32_0 = arith.constant 0 : i32
    %c0_i32_1 = arith.constant 0 : i32
    %c0_i32_2 = arith.constant 0 : i32
    return %c0_i32, %c0_i32_0, %c0_i32_1 : i32, i32, i32
  }
  func.func @transform_30(%arg0: i32) -> (i32, i32, i32) {
    %c0_i32 = arith.constant 0 : i32
    %c0_i32_0 = arith.constant 0 : i32
    %c0_i32_1 = arith.constant 0 : i32
    %c0_i32_2 = arith.constant 0 : i32
    return %c0_i32, %c0_i32_0, %c0_i32_1 : i32, i32, i32
  }
  func.func @transform_31(%arg0: i32) -> (i32, i32, i32) {
    %c0_i32 = arith.constant 0 : i32
    %c0_i32_0 = arith.constant 0 : i32
    %c0_i32_1 = arith.constant 0 : i32
    %c0_i32_2 = arith.constant 0 : i32
    return %c0_i32, %c0_i32_0, %c0_i32_1 : i32, i32, i32
  }
  func.func @transform_32(%arg0: i32) -> (i32, i32) {
    %c0_i32 = arith.constant 0 : i32
    %c0_i32_0 = arith.constant 0 : i32
    %c0_i32_1 = arith.constant 0 : i32
    return %c0_i32, %c0_i32_0 : i32, i32
  }
  func.func @transform_33(%arg0: i32) -> (i32, i32) {
    %c0_i32 = arith.constant 0 : i32
    %c0_i32_0 = arith.constant 0 : i32
    %c0_i32_1 = arith.constant 0 : i32
    return %c0_i32, %c0_i32_0 : i32, i32
  }
  func.func @transform_34(%arg0: i32) -> (i32, i32, i32) {
    %c0_i32 = arith.constant 0 : i32
    %c0_i32_0 = arith.constant 0 : i32
    %c0_i32_1 = arith.constant 0 : i32
    return %arg0, %c0_i32, %c0_i32_0 : i32, i32, i32
  }
}

</mosaic_0001>

<llo_original>
// kernel: logit_head_forward.1
$region0: #{logit_head_forward.1}
  #allocation0 [shape = 'u32[]', space=smem, size = 0x4, offset = 0x4, fixed_abs, tag = 'smem constant byte address 0x4 - core index']
  #allocation1 [shape = 'u32[72,128]{1,0:T(1,128)}', space=vmem, size = 0x9000, scoped, tag = 'internal scratch']
  %s0 = inlined_call_operand.smem [shape: u32[35], index: -1, kind: input, shape index: {}]
  %s1 = sld [smem:[%s0]]
  %s2 = scalar_lea.smem %s0, 1
  %s3 = sld [smem:[%s2]]
  %s4 = scalar_lea.smem %s0, 2
  %s5 = sld [smem:[%s4]]
  %s6 = scalar_lea.smem %s0, 3
  %s7 = sld [smem:[%s6]]
  %s8 = scalar_lea.smem %s0, 4
  %s9 = sld [smem:[%s8]]
  %s10 = scalar_lea.smem %s0, 5
  %s11 = sld [smem:[%s10]]
  %s12 = scalar_lea.smem %s0, 6
  %s13 = sld [smem:[%s12]]
  %s14 = scalar_lea.smem %s0, 7
  %s15 = sld [smem:[%s14]]
  %s16 = scalar_lea.smem %s0, 8
  %s17 = sld [smem:[%s16]]
  %s18 = scalar_lea.smem %s0, 9
  %s19 = sld [smem:[%s18]]
  %s20 = scalar_lea.smem %s0, 10
  %s21 = sld [smem:[%s20]]
  %s22 = scalar_lea.smem %s0, 11
  %s23 = sld [smem:[%s22]]
  %s24 = scalar_lea.smem %s0, 12
  %s25 = sld [smem:[%s24]]
  %s26 = scalar_lea.smem %s0, 13
  %s27 = sld [smem:[%s26]]
  %s28 = scalar_lea.smem %s0, 14
  %s29 = sld [smem:[%s28]]
  %s30 = scalar_lea.smem %s0, 15
  %s31 = sld [smem:[%s30]]
  %s32 = scalar_lea.smem %s0, 16
  %s33 = sld [smem:[%s32]]
  %s34 = scalar_lea.smem %s0, 17
  %s35 = sld [smem:[%s34]]
  %s36 = scalar_lea.smem %s0, 18
  %s37 = sld [smem:[%s36]]
  %s38 = scalar_lea.smem %s0, 19
  %s39 = sld [smem:[%s38]]
  %s40 = scalar_lea.smem %s0, 20
  %s41 = sld [smem:[%s40]]
  %s42 = scalar_lea.smem %s0, 21
  %s43 = sld [smem:[%s42]]
  %s44 = scalar_lea.smem %s0, 22
  %s45 = sld [smem:[%s44]]
  %s46 = scalar_lea.smem %s0, 23
  %s47 = sld [smem:[%s46]]
  %s48 = scalar_lea.smem %s0, 24
  %s49 = sld [smem:[%s48]]
  %s50 = scalar_lea.smem %s0, 25
  %s51 = sld [smem:[%s50]]
  %s52 = scalar_lea.smem %s0, 26
  %s53 = sld [smem:[%s52]]
  %s54 = scalar_lea.smem %s0, 27
  %s55 = sld [smem:[%s54]]
  %s56 = scalar_lea.smem %s0, 28
  %s57 = sld [smem:[%s56]]
  %s58 = scalar_lea.smem %s0, 29
  %s59 = sld [smem:[%s58]]
  %s60 = scalar_lea.smem %s0, 30
  %s61 = sld [smem:[%s60]]
  %s62 = scalar_lea.smem %s0, 31
  %s63 = sld [smem:[%s62]]
  %s64 = scalar_lea.smem %s0, 32
  %s65 = sld [smem:[%s64]]
  %s66 = scalar_lea.smem %s0, 33
  %s67 = sld [smem:[%s66]]
  %s68 = scalar_lea.smem %s0, 34
  %s69 = sld [smem:[%s68]]
  %s70 = sld [smem:[#allocation0]]
  $region169: #{logit_head_forward.1} parent=0
    _
  %s72 = ssub.s32 1, %s70
  %s73 = scalar_select 0, %s72, %s70
  loop: start=0, step=1, limit=4
  $region2: #{logit_head_forward.1} parent=0 // loop_pre_header
    _
  $region3: #{logit_head_forward.1} parent=0 // loop_header
    %s75 = sphi 0, %s79
    %p76 = scmp.ge.s32.totalorder %s75, 4
    %s85 = sphi 0, %s87
    %s88 = sphi 0, %s85
    %s89 = sphi 0, %s88
    %s105 = sphi 0, %s89
    %s109 = sphi 0, %s109
    %s111 = sphi 0, %s109
    %s112 = sphi 0, %s111
    %s126 = sphi 0, %s112
    %s130 = sphi 0, %s130
    %s132 = sphi 0, %s130
    %s133 = sphi 0, %s132
    %s147 = sphi 0, %s133
    %s151 = sphi 0, %s151
    %s153 = sphi 0, %s151
    %s154 = sphi 0, %s153
    %s168 = sphi 0, %s154
    %s172 = sphi 0, %s172
    %s174 = sphi 0, %s172
    %s175 = sphi 0, %s174
    %s189 = sphi 0, %s175
    %s193 = sphi 0, %s193
    %s195 = sphi 0, %s193
    %s196 = sphi 0, %s195
    %s210 = sphi 0, %s196
    %s214 = sphi 0, %s214
    %s216 = sphi 0, %s214
    %s217 = sphi 0, %s216
    %s231 = sphi 0, %s217
    %s235 = sphi 0, %s235
    %s237 = sphi 0, %s235
    %s238 = sphi 0, %s237
    %s252 = sphi 0, %s238
    %s256 = sphi 0, %s256
    %s258 = sphi 0, %s256
    %s259 = sphi 0, %s258
    %s273 = sphi 0, %s259
    %s277 = sphi 0, %s277
    %s279 = sphi 0, %s277
    %s280 = sphi 0, %s279
    %s294 = sphi 0, %s280
    %s298 = sphi 0, %s298
    %s300 = sphi 0, %s298
    %s301 = sphi 0, %s300
    %s315 = sphi 0, %s301
    %s319 = sphi 0, %s319
    %s321 = sphi 0, %s319
    %s322 = sphi 0, %s321
    %s336 = sphi 0, %s322
    %s340 = sphi 0, %s340
    %s342 = sphi 0, %s340
    %s343 = sphi 0, %s342
    %s357 = sphi 0, %s343
    %s361 = sphi 0, %s361
    %s363 = sphi 0, %s361
    %s364 = sphi 0, %s363
    %s378 = sphi 0, %s364
    %s382 = sphi 0, %s382
    %s384 = sphi 0, %s382
    %s385 = sphi 0, %s384
    %s399 = sphi 0, %s385
    %s403 = sphi 0, %s403
    %s405 = sphi 0, %s403
    %s406 = sphi 0, %s405
    %s420 = sphi 0, %s406
    %s424 = sphi 0, %s424
    %s426 = sphi 0, %s424
    %s427 = sphi 0, %s426
    %s441 = sphi 0, %s427
    %s445 = sphi 0, %s445
    %s447 = sphi 0, %s445
    %s448 = sphi 0, %s447
    %s462 = sphi 0, %s448
    %s466 = sphi 0, %s466
    %s468 = sphi 0, %s466
    %s469 = sphi 0, %s468
    %s483 = sphi 0, %s469
    %s487 = sphi 0, %s487
    %s489 = sphi 0, %s487
    %s490 = sphi 0, %s489
    %s504 = sphi 0, %s490
    %s508 = sphi 0, %s508
    %s510 = sphi 0, %s508
    %s511 = sphi 0, %s510
    %s525 = sphi 0, %s511
    %s529 = sphi 0, %s529
    %s531 = sphi 0, %s529
    %s532 = sphi 0, %s531
    %s546 = sphi 0, %s532
    %s550 = sphi 0, %s550
    %s552 = sphi 0, %s550
    %s553 = sphi 0, %s552
    %s567 = sphi 0, %s553
    %s571 = sphi 0, %s571
    %s573 = sphi 0, %s571
    %s574 = sphi 0, %s573
    %s588 = sphi 0, %s574
    %s592 = sphi 0, %s592
    %s594 = sphi 0, %s592
    %s595 = sphi 0, %s594
    %s609 = sphi 0, %s595
    %s613 = sphi 0, %s613
    %s615 = sphi 0, %s613
    %s616 = sphi 0, %s615
    %s630 = sphi 0, %s616
    %s634 = sphi 0, %s634
    %s636 = sphi 0, %s634
    %s637 = sphi 0, %s636
    %s651 = sphi 0, %s637
    %s655 = sphi 0, %s655
    %s657 = sphi 0, %s655
    %s658 = sphi 0, %s657
    %s672 = sphi 0, %s658
    %s676 = sphi 0, %s676
    %s678 = sphi 0, %s676
    %s679 = sphi 0, %s678
    %s693 = sphi 0, %s679
    %s697 = sphi 0, %s697
    %s699 = sphi 0, %s697
    %s700 = sphi 0, %s699
    %s714 = sphi 0, %s700
    %s718 = sphi 0, %s718
    %s720 = sphi 0, %s718
    %s721 = sphi 0, %s720
    %s735 = sphi 0, %s721
    %s739 = sphi 0, %s739
    %s741 = sphi 0, %s739
    %s742 = sphi 0, %s741
    %s756 = sphi 0, %s742
    %s760 = sphi 0, %s760
    %s762 = sphi 0, %s760
    %s763 = sphi 0, %s762
    %s777 = sphi 0, %s763
    %s781 = sphi 0, %s781
    %s783 = sphi 0, %s781
    %s784 = sphi 0, %s783
    %s798 = sphi 0, %s784
    %s804 = sphi 0, %s806
    %s807 = sphi 0, %s804
    %s808 = sphi 0, %s807
    %s824 = sphi 0, %s808
  $region4: #{logit_head_forward.1} parent=0 // loop_header_branch
    %78 = sbr.rel (%p76) target = $region8
  $region5: #{logit_head_forward.1} parent=0 // loop_body
    %s80 = ssub.s32 %s75, 1
    %s81 = ssub.s32 %s75, 2
    %s82 = sadd.s32 %s75, 1
    %s83 = ssub.s32 %s75, %s82
    %p84 = scmp.eq.s32.totalorder %s83, 0
    %s86 = sadd.s32 %s85, 1
    %s87 = scalar_select %p84, %s85, %s86
    %p90 = pneg %p84
    %p91 = scmp.eq.s32.totalorder %s75, 1
    %p92 = por %p90, %p91
    %p93 = scmp.ne.s32.totalorder %s85, %s88
    %p94 = scmp.eq.s32.totalorder %s75, 0
    %p95 = por %p93, %p94
    %p96 = scmp.ne.s32.totalorder %s85, %s88
    %p97 = scmp.eq.s32.totalorder %s80, 1
    %p98 = por %p96, %p97
    %p99 = scmp.ne.s32.totalorder %s88, %s89
    %p100 = scmp.eq.s32.totalorder %s80, 0
    %p101 = por %p99, %p100
    %p102 = scmp.ne.s32.totalorder %s88, %s89
    %p103 = scmp.eq.s32.totalorder %s81, 1
    %p104 = por %p102, %p103
    %p106 = scmp.ne.s32.totalorder %s89, %s105
    %p107 = scmp.eq.s32.totalorder %s81, 0
    %p108 = por %p106, %p107
    %s110 = sadd.s32 %s109, 1
    %p113 = scmp.eq.s32.totalorder %s75, 1
    %p114 = scmp.ne.s32.totalorder %s109, %s111
    %p115 = scmp.eq.s32.totalorder %s75, 0
    %p116 = por %p114, %p115
    %p117 = scmp.ne.s32.totalorder %s109, %s111
    %p118 = scmp.eq.s32.totalorder %s80, 1
    %p119 = por %p117, %p118
    %p120 = scmp.ne.s32.totalorder %s111, %s112
    %p121 = scmp.eq.s32.totalorder %s80, 0
    %p122 = por %p120, %p121
    %p123 = scmp.ne.s32.totalorder %s111, %s112
    %p124 = scmp.eq.s32.totalorder %s81, 1
    %p125 = por %p123, %p124
    %p127 = scmp.ne.s32.totalorder %s112, %s126
    %p128 = scmp.eq.s32.totalorder %s81, 0
    %p129 = por %p127, %p128
    %s131 = sadd.s32 %s130, 1
    %p134 = scmp.eq.s32.totalorder %s75, 1
    %p135 = scmp.ne.s32.totalorder %s130, %s132
    %p136 = scmp.eq.s32.totalorder %s75, 0
    %p137 = por %p135, %p136
    %p138 = scmp.ne.s32.totalorder %s130, %s132
    %p139 = scmp.eq.s32.totalorder %s80, 1
    %p140 = por %p138, %p139
    %p141 = scmp.ne.s32.totalorder %s132, %s133
    %p142 = scmp.eq.s32.totalorder %s80, 0
    %p143 = por %p141, %p142
    %p144 = scmp.ne.s32.totalorder %s132, %s133
    %p145 = scmp.eq.s32.totalorder %s81, 1
    %p146 = por %p144, %p145
    %p148 = scmp.ne.s32.totalorder %s133, %s147
    %p149 = scmp.eq.s32.totalorder %s81, 0
    %p150 = por %p148, %p149
    %s152 = sadd.s32 %s151, 1
    %p155 = scmp.eq.s32.totalorder %s75, 1
    %p156 = scmp.ne.s32.totalorder %s151, %s153
    %p157 = scmp.eq.s32.totalorder %s75, 0
    %p158 = por %p156, %p157
    %p159 = scmp.ne.s32.totalorder %s151, %s153
    %p160 = scmp.eq.s32.totalorder %s80, 1
    %p161 = por %p159, %p160
    %p162 = scmp.ne.s32.totalorder %s153, %s154
    %p163 = scmp.eq.s32.totalorder %s80, 0
    %p164 = por %p162, %p163
    %p165 = scmp.ne.s32.totalorder %s153, %s154
    %p166 = scmp.eq.s32.totalorder %s81, 1
    %p167 = por %p165, %p166
    %p169 = scmp.ne.s32.totalorder %s154, %s168
    %p170 = scmp.eq.s32.totalorder %s81, 0
    %p171 = por %p169, %p170
    %s173 = sadd.s32 %s172, 1
    %p176 = scmp.eq.s32.totalorder %s75, 1
    %p177 = scmp.ne.s32.totalorder %s172, %s174
    %p178 = scmp.eq.s32.totalorder %s75, 0
    %p179 = por %p177, %p178
    %p180 = scmp.ne.s32.totalorder %s172, %s174
    %p181 = scmp.eq.s32.totalorder %s80, 1
    %p182 = por %p180, %p181
    %p183 = scmp.ne.s32.totalorder %s174, %s175
    %p184 = scmp.eq.s32.totalorder %s80, 0
    %p185 = por %p183, %p184
    %p186 = scmp.ne.s32.totalorder %s174, %s175
    %p187 = scmp.eq.s32.totalorder %s81, 1
    %p188 = por %p186, %p187
    %p190 = scmp.ne.s32.totalorder %s175, %s189
    %p191 = scmp.eq.s32.totalorder %s81, 0
    %p192 = por %p190, %p191
    %s194 = sadd.s32 %s193, 1
    %p197 = scmp.eq.s32.totalorder %s75, 1
    %p198 = scmp.ne.s32.totalorder %s193, %s195
    %p199 = scmp.eq.s32.totalorder %s75, 0
    %p200 = por %p198, %p199
    %p201 = scmp.ne.s32.totalorder %s193, %s195
    %p202 = scmp.eq.s32.totalorder %s80, 1
    %p203 = por %p201, %p202
    %p204 = scmp.ne.s32.totalorder %s195, %s196
    %p205 = scmp.eq.s32.totalorder %s80, 0
    %p206 = por %p204, %p205
    %p207 = scmp.ne.s32.totalorder %s195, %s196
    %p208 = scmp.eq.s32.totalorder %s81, 1
    %p209 = por %p207, %p208
    %p211 = scmp.ne.s32.totalorder %s196, %s210
    %p212 = scmp.eq.s32.totalorder %s81, 0
    %p213 = por %p211, %p212
    %s215 = sadd.s32 %s214, 1
    %p218 = scmp.eq.s32.totalorder %s75, 1
    %p219 = scmp.ne.s32.totalorder %s214, %s216
    %p220 = scmp.eq.s32.totalorder %s75, 0
    %p221 = por %p219, %p220
    %p222 = scmp.ne.s32.totalorder %s214, %s216
    %p223 = scmp.eq.s32.totalorder %s80, 1
    %p224 = por %p222, %p223
    %p225 = scmp.ne.s32.totalorder %s216, %s217
    %p226 = scmp.eq.s32.totalorder %s80, 0
    %p227 = por %p225, %p226
    %p228 = scmp.ne.s32.totalorder %s216, %s217
    %p229 = scmp.eq.s32.totalorder %s81, 1
    %p230 = por %p228, %p229
    %p232 = scmp.ne.s32.totalorder %s217, %s231
    %p233 = scmp.eq.s32.totalorder %s81, 0
    %p234 = por %p232, %p233
    %s236 = sadd.s32 %s235, 1
    %p239 = scmp.eq.s32.totalorder %s75, 1
    %p240 = scmp.ne.s32.totalorder %s235, %s237
    %p241 = scmp.eq.s32.totalorder %s75, 0
    %p242 = por %p240, %p241
    %p243 = scmp.ne.s32.totalorder %s235, %s237
    %p244 = scmp.eq.s32.totalorder %s80, 1
    %p245 = por %p243, %p244
    %p246 = scmp.ne.s32.totalorder %s237, %s238
    %p247 = scmp.eq.s32.totalorder %s80, 0
    %p248 = por %p246, %p247
    %p249 = scmp.ne.s32.totalorder %s237, %s238
    %p250 = scmp.eq.s32.totalorder %s81, 1
    %p251 = por %p249, %p250
    %p253 = scmp.ne.s32.totalorder %s238, %s252
    %p254 = scmp.eq.s32.totalorder %s81, 0
    %p255 = por %p253, %p254
    %s257 = sadd.s32 %s256, 1
    %p260 = scmp.eq.s32.totalorder %s75, 1
    %p261 = scmp.ne.s32.totalorder %s256, %s258
    %p262 = scmp.eq.s32.totalorder %s75, 0
    %p263 = por %p261, %p262
    %p264 = scmp.ne.s32.totalorder %s256, %s258
    %p265 = scmp.eq.s32.totalorder %s80, 1
    %p266 = por %p264, %p265
    %p267 = scmp.ne.s32.totalorder %s258, %s259
    %p268 = scmp.eq.s32.totalorder %s80, 0
    %p269 = por %p267, %p268
    %p270 = scmp.ne.s32.totalorder %s258, %s259
    %p271 = scmp.eq.s32.totalorder %s81, 1
    %p272 = por %p270, %p271
    %p274 = scmp.ne.s32.totalorder %s259, %s273
    %p275 = scmp.eq.s32.totalorder %s81, 0
    %p276 = por %p274, %p275
    %s278 = sadd.s32 %s277, 1
    %p281 = scmp.eq.s32.totalorder %s75, 1
    %p282 = scmp.ne.s32.totalorder %s277, %s279
    %p283 = scmp.eq.s32.totalorder %s75, 0
    %p284 = por %p282, %p283
    %p285 = scmp.ne.s32.totalorder %s277, %s279
    %p286 = scmp.eq.s32.totalorder %s80, 1
    %p287 = por %p285, %p286
    %p288 = scmp.ne.s32.totalorder %s279, %s280
    %p289 = scmp.eq.s32.totalorder %s80, 0
    %p290 = por %p288, %p289
    %p291 = scmp.ne.s32.totalorder %s279, %s280
    %p292 = scmp.eq.s32.totalorder %s81, 1
    %p293 = por %p291, %p292
    %p295 = scmp.ne.s32.totalorder %s280, %s294
    %p296 = scmp.eq.s32.totalorder %s81, 0
    %p297 = por %p295, %p296
    %s299 = sadd.s32 %s298, 1
    %p302 = scmp.eq.s32.totalorder %s75, 1
    %p303 = scmp.ne.s32.totalorder %s298, %s300
    %p304 = scmp.eq.s32.totalorder %s75, 0
    %p305 = por %p303, %p304
    %p306 = scmp.ne.s32.totalorder %s298, %s300
    %p307 = scmp.eq.s32.totalorder %s80, 1
    %p308 = por %p306, %p307
    %p309 = scmp.ne.s32.totalorder %s300, %s301
    %p310 = scmp.eq.s32.totalorder %s80, 0
    %p311 = por %p309, %p310
    %p312 = scmp.ne.s32.totalorder %s300, %s301
    %p313 = scmp.eq.s32.totalorder %s81, 1
    %p314 = por %p312, %p313
    %p316 = scmp.ne.s32.totalorder %s301, %s315
    %p317 = scmp.eq.s32.totalorder %s81, 0
    %p318 = por %p316, %p317
    %s320 = sadd.s32 %s319, 1
    %p323 = scmp.eq.s32.totalorder %s75, 1
    %p324 = scmp.ne.s32.totalorder %s319, %s321
    %p325 = scmp.eq.s32.totalorder %s75, 0
    %p326 = por %p324, %p325
    %p327 = scmp.ne.s32.totalorder %s319, %s321
    %p328 = scmp.eq.s32.totalorder %s80, 1
    %p329 = por %p327, %p328
    %p330 = scmp.ne.s32.totalorder %s321, %s322
    %p331 = scmp.eq.s32.totalorder %s80, 0
    %p332 = por %p330, %p331
    %p333 = scmp.ne.s32.totalorder %s321, %s322
    %p334 = scmp.eq.s32.totalorder %s81, 1
    %p335 = por %p333, %p334
    %p337 = scmp.ne.s32.totalorder %s322, %s336
    %p338 = scmp.eq.s32.totalorder %s81, 0
    %p339 = por %p337, %p338
    %s341 = sadd.s32 %s340, 1
    %p344 = scmp.eq.s32.totalorder %s75, 1
    %p345 = scmp.ne.s32.totalorder %s340, %s342
    %p346 = scmp.eq.s32.totalorder %s75, 0
    %p347 = por %p345, %p346
    %p348 = scmp.ne.s32.totalorder %s340, %s342
    %p349 = scmp.eq.s32.totalorder %s80, 1
    %p350 = por %p348, %p349
    %p351 = scmp.ne.s32.totalorder %s342, %s343
    %p352 = scmp.eq.s32.totalorder %s80, 0
    %p353 = por %p351, %p352
    %p354 = scmp.ne.s32.totalorder %s342, %s343
    %p355 = scmp.eq.s32.totalorder %s81, 1
    %p356 = por %p354, %p355
    %p358 = scmp.ne.s32.totalorder %s343, %s357
    %p359 = scmp.eq.s32.totalorder %s81, 0
    %p360 = por %p358, %p359
    %s362 = sadd.s32 %s361, 1
    %p365 = scmp.eq.s32.totalorder %s75, 1
    %p366 = scmp.ne.s32.totalorder %s361, %s363
    %p367 = scmp.eq.s32.totalorder %s75, 0
    %p368 = por %p366, %p367
    %p369 = scmp.ne.s32.totalorder %s361, %s363
    %p370 = scmp.eq.s32.totalorder %s80, 1
    %p371 = por %p369, %p370
    %p372 = scmp.ne.s32.totalorder %s363, %s364
    %p373 = scmp.eq.s32.totalorder %s80, 0
    %p374 = por %p372, %p373
    %p375 = scmp.ne.s32.totalorder %s363, %s364
    %p376 = scmp.eq.s32.totalorder %s81, 1
    %p377 = por %p375, %p376
    %p379 = scmp.ne.s32.totalorder %s364, %s378
    %p380 = scmp.eq.s32.totalorder %s81, 0
    %p381 = por %p379, %p380
    %s383 = sadd.s32 %s382, 1
    %p386 = scmp.eq.s32.totalorder %s75, 1
    %p387 = scmp.ne.s32.totalorder %s382, %s384
    %p388 = scmp.eq.s32.totalorder %s75, 0
    %p389 = por %p387, %p388
    %p390 = scmp.ne.s32.totalorder %s382, %s384
    %p391 = scmp.eq.s32.totalorder %s80, 1
    %p392 = por %p390, %p391
    %p393 = scmp.ne.s32.totalorder %s384, %s385
    %p394 = scmp.eq.s32.totalorder %s80, 0
    %p395 = por %p393, %p394
    %p396 = scmp.ne.s32.totalorder %s384, %s385
    %p397 = scmp.eq.s32.totalorder %s81, 1
    %p398 = por %p396, %p397
    %p400 = scmp.ne.s32.totalorder %s385, %s399
    %p401 = scmp.eq.s32.totalorder %s81, 0
    %p402 = por %p400, %p401
    %s404 = sadd.s32 %s403, 1
    %p407 = scmp.eq.s32.totalorder %s75, 1
    %p408 = scmp.ne.s32.totalorder %s403, %s405
    %p409 = scmp.eq.s32.totalorder %s75, 0
    %p410 = por %p408, %p409
    %p411 = scmp.ne.s32.totalorder %s403, %s405
    %p412 = scmp.eq.s32.totalorder %s80, 1
    %p413 = por %p411, %p412
    %p414 = scmp.ne.s32.totalorder %s405, %s406
    %p415 = scmp.eq.s32.totalorder %s80, 0
    %p416 = por %p414, %p415
    %p417 = scmp.ne.s32.totalorder %s405, %s406
    %p418 = scmp.eq.s32.totalorder %s81, 1
    %p419 = por %p417, %p418
    %p421 = scmp.ne.s32.totalorder %s406, %s420
    %p422 = scmp.eq.s32.totalorder %s81, 0
    %p423 = por %p421, %p422
    %s425 = sadd.s32 %s424, 1
    %p428 = scmp.eq.s32.totalorder %s75, 1
    %p429 = scmp.ne.s32.totalorder %s424, %s426
    %p430 = scmp.eq.s32.totalorder %s75, 0
    %p431 = por %p429, %p430
    %p432 = scmp.ne.s32.totalorder %s424, %s426
    %p433 = scmp.eq.s32.totalorder %s80, 1
    %p434 = por %p432, %p433
    %p435 = scmp.ne.s32.totalorder %s426, %s427
    %p436 = scmp.eq.s32.totalorder %s80, 0
    %p437 = por %p435, %p436
    %p438 = scmp.ne.s32.totalorder %s426, %s427
    %p439 = scmp.eq.s32.totalorder %s81, 1
    %p440 = por %p438, %p439
    %p442 = scmp.ne.s32.totalorder %s427, %s441
    %p443 = scmp.eq.s32.totalorder %s81, 0
    %p444 = por %p442, %p443
    %s446 = sadd.s32 %s445, 1
    %p449 = scmp.eq.s32.totalorder %s75, 1
    %p450 = scmp.ne.s32.totalorder %s445, %s447
    %p451 = scmp.eq.s32.totalorder %s75, 0
    %p452 = por %p450, %p451
    %p453 = scmp.ne.s32.totalorder %s445, %s447
    %p454 = scmp.eq.s32.totalorder %s80, 1
    %p455 = por %p453, %p454
    %p456 = scmp.ne.s32.totalorder %s447, %s448
    %p457 = scmp.eq.s32.totalorder %s80, 0
    %p458 = por %p456, %p457
    %p459 = scmp.ne.s32.totalorder %s447, %s448
    %p460 = scmp.eq.s32.totalorder %s81, 1
    %p461 = por %p459, %p460
    %p463 = scmp.ne.s32.totalorder %s448, %s462
    %p464 = scmp.eq.s32.totalorder %s81, 0
    %p465 = por %p463, %p464
    %s467 = sadd.s32 %s466, 1
    %p470 = scmp.eq.s32.totalorder %s75, 1
    %p471 = scmp.ne.s32.totalorder %s466, %s468
    %p472 = scmp.eq.s32.totalorder %s75, 0
    %p473 = por %p471, %p472
    %p474 = scmp.ne.s32.totalorder %s466, %s468
    %p475 = scmp.eq.s32.totalorder %s80, 1
    %p476 = por %p474, %p475
    %p477 = scmp.ne.s32.totalorder %s468, %s469
    %p478 = scmp.eq.s32.totalorder %s80, 0
    %p479 = por %p477, %p478
    %p480 = scmp.ne.s32.totalorder %s468, %s469
    %p481 = scmp.eq.s32.totalorder %s81, 1
    %p482 = por %p480, %p481
    %p484 = scmp.ne.s32.totalorder %s469, %s483
    %p485 = scmp.eq.s32.totalorder %s81, 0
    %p486 = por %p484, %p485
    %s488 = sadd.s32 %s487, 1
    %p491 = scmp.eq.s32.totalorder %s75, 1
    %p492 = scmp.ne.s32.totalorder %s487, %s489
    %p493 = scmp.eq.s32.totalorder %s75, 0
    %p494 = por %p492, %p493
    %p495 = scmp.ne.s32.totalorder %s487, %s489
    %p496 = scmp.eq.s32.totalorder %s80, 1
    %p497 = por %p495, %p496
    %p498 = scmp.ne.s32.totalorder %s489, %s490
    %p499 = scmp.eq.s32.totalorder %s80, 0
    %p500 = por %p498, %p499
    %p501 = scmp.ne.s32.totalorder %s489, %s490
    %p502 = scmp.eq.s32.totalorder %s81, 1
    %p503 = por %p501, %p502
    %p505 = scmp.ne.s32.totalorder %s490, %s504
    %p506 = scmp.eq.s32.totalorder %s81, 0
    %p507 = por %p505, %p506
    %s509 = sadd.s32 %s508, 1
    %p512 = scmp.eq.s32.totalorder %s75, 1
    %p513 = scmp.ne.s32.totalorder %s508, %s510
    %p514 = scmp.eq.s32.totalorder %s75, 0
    %p515 = por %p513, %p514
    %p516 = scmp.ne.s32.totalorder %s508, %s510
    %p517 = scmp.eq.s32.totalorder %s80, 1
    %p518 = por %p516, %p517
    %p519 = scmp.ne.s32.totalorder %s510, %s511
    %p520 = scmp.eq.s32.totalorder %s80, 0
    %p521 = por %p519, %p520
    %p522 = scmp.ne.s32.totalorder %s510, %s511
    %p523 = scmp.eq.s32.totalorder %s81, 1
    %p524 = por %p522, %p523
    %p526 = scmp.ne.s32.totalorder %s511, %s525
    %p527 = scmp.eq.s32.totalorder %s81, 0
    %p528 = por %p526, %p527
    %s530 = sadd.s32 %s529, 1
    %p533 = scmp.eq.s32.totalorder %s75, 1
    %p534 = scmp.ne.s32.totalorder %s529, %s531
    %p535 = scmp.eq.s32.totalorder %s75, 0
    %p536 = por %p534, %p535
    %p537 = scmp.ne.s32.totalorder %s529, %s531
    %p538 = scmp.eq.s32.totalorder %s80, 1
    %p539 = por %p537, %p538
    %p540 = scmp.ne.s32.totalorder %s531, %s532
    %p541 = scmp.eq.s32.totalorder %s80, 0
    %p542 = por %p540, %p541
    %p543 = scmp.ne.s32.totalorder %s531, %s532
    %p544 = scmp.eq.s32.totalorder %s81, 1
    %p545 = por %p543, %p544
    %p547 = scmp.ne.s32.totalorder %s532, %s546
    %p548 = scmp.eq.s32.totalorder %s81, 0
    %p549 = por %p547, %p548
    %s551 = sadd.s32 %s550, 1
    %p554 = scmp.eq.s32.totalorder %s75, 1
    %p555 = scmp.ne.s32.totalorder %s550, %s552
    %p556 = scmp.eq.s32.totalorder %s75, 0
    %p557 = por %p555, %p556
    %p558 = scmp.ne.s32.totalorder %s550, %s552
    %p559 = scmp.eq.s32.totalorder %s80, 1
    %p560 = por %p558, %p559
    %p561 = scmp.ne.s32.totalorder %s552, %s553
    %p562 = scmp.eq.s32.totalorder %s80, 0
    %p563 = por %p561, %p562
    %p564 = scmp.ne.s32.totalorder %s552, %s553
    %p565 = scmp.eq.s32.totalorder %s81, 1
    %p566 = por %p564, %p565
    %p568 = scmp.ne.s32.totalorder %s553, %s567
    %p569 = scmp.eq.s32.totalorder %s81, 0
    %p570 = por %p568, %p569
    %s572 = sadd.s32 %s571, 1
    %p575 = scmp.eq.s32.totalorder %s75, 1
    %p576 = scmp.ne.s32.totalorder %s571, %s573
    %p577 = scmp.eq.s32.totalorder %s75, 0
    %p578 = por %p576, %p577
    %p579 = scmp.ne.s32.totalorder %s571, %s573
    %p580 = scmp.eq.s32.totalorder %s80, 1
    %p581 = por %p579, %p580
    %p582 = scmp.ne.s32.totalorder %s573, %s574
    %p583 = scmp.eq.s32.totalorder %s80, 0
    %p584 = por %p582, %p583
    %p585 = scmp.ne.s32.totalorder %s573, %s574
    %p586 = scmp.eq.s32.totalorder %s81, 1
    %p587 = por %p585, %p586
    %p589 = scmp.ne.s32.totalorder %s574, %s588
    %p590 = scmp.eq.s32.totalorder %s81, 0
    %p591 = por %p589, %p590
    %s593 = sadd.s32 %s592, 1
    %p596 = scmp.eq.s32.totalorder %s75, 1
    %p597 = scmp.ne.s32.totalorder %s592, %s594
    %p598 = scmp.eq.s32.totalorder %s75, 0
    %p599 = por %p597, %p598
    %p600 = scmp.ne.s32.totalorder %s592, %s594
    %p601 = scmp.eq.s32.totalorder %s80, 1
    %p602 = por %p600, %p601
    %p603 = scmp.ne.s32.totalorder %s594, %s595
    %p604 = scmp.eq.s32.totalorder %s80, 0
    %p605 = por %p603, %p604
    %p606 = scmp.ne.s32.totalorder %s594, %s595
    %p607 = scmp.eq.s32.totalorder %s81, 1
    %p608 = por %p606, %p607
    %p610 = scmp.ne.s32.totalorder %s595, %s609
    %p611 = scmp.eq.s32.totalorder %s81, 0
    %p612 = por %p610, %p611
    %s614 = sadd.s32 %s613, 1
    %p617 = scmp.eq.s32.totalorder %s75, 1
    %p618 = scmp.ne.s32.totalorder %s613, %s615
    %p619 = scmp.eq.s32.totalorder %s75, 0
    %p620 = por %p618, %p619
    %p621 = scmp.ne.s32.totalorder %s613, %s615
    %p622 = scmp.eq.s32.totalorder %s80, 1
    %p623 = por %p621, %p622
    %p624 = scmp.ne.s32.totalorder %s615, %s616
    %p625 = scmp.eq.s32.totalorder %s80, 0
    %p626 = por %p624, %p625
    %p627 = scmp.ne.s32.totalorder %s615, %s616
    %p628 = scmp.eq.s32.totalorder %s81, 1
    %p629 = por %p627, %p628
    %p631 = scmp.ne.s32.totalorder %s616, %s630
    %p632 = scmp.eq.s32.totalorder %s81, 0
    %p633 = por %p631, %p632
    %s635 = sadd.s32 %s634, 1
    %p638 = scmp.eq.s32.totalorder %s75, 1
    %p639 = scmp.ne.s32.totalorder %s634, %s636
    %p640 = scmp.eq.s32.totalorder %s75, 0
    %p641 = por %p639, %p640
    %p642 = scmp.ne.s32.totalorder %s634, %s636
    %p643 = scmp.eq.s32.totalorder %s80, 1
    %p644 = por %p642, %p643
    %p645 = scmp.ne.s32.totalorder %s636, %s637
    %p646 = scmp.eq.s32.totalorder %s80, 0
    %p647 = por %p645, %p646
    %p648 = scmp.ne.s32.totalorder %s636, %s637
    %p649 = scmp.eq.s32.totalorder %s81, 1
    %p650 = por %p648, %p649
    %p652 = scmp.ne.s32.totalorder %s637, %s651
    %p653 = scmp.eq.s32.totalorder %s81, 0
    %p654 = por %p652, %p653
    %s656 = sadd.s32 %s655, 1
    %p659 = scmp.eq.s32.totalorder %s75, 1
    %p660 = scmp.ne.s32.totalorder %s655, %s657
    %p661 = scmp.eq.s32.totalorder %s75, 0
    %p662 = por %p660, %p661
    %p663 = scmp.ne.s32.totalorder %s655, %s657
    %p664 = scmp.eq.s32.totalorder %s80, 1
    %p665 = por %p663, %p664
    %p666 = scmp.ne.s32.totalorder %s657, %s658
    %p667 = scmp.eq.s32.totalorder %s80, 0
    %p668 = por %p666, %p667
    %p669 = scmp.ne.s32.totalorder %s657, %s658
    %p670 = scmp.eq.s32.totalorder %s81, 1
    %p671 = por %p669, %p670
    %p673 = scmp.ne.s32.totalorder %s658, %s672
    %p674 = scmp.eq.s32.totalorder %s81, 0
    %p675 = por %p673, %p674
    %s677 = sadd.s32 %s676, 1
    %p680 = scmp.eq.s32.totalorder %s75, 1
    %p681 = scmp.ne.s32.totalorder %s676, %s678
    %p682 = scmp.eq.s32.totalorder %s75, 0
    %p683 = por %p681, %p682
    %p684 = scmp.ne.s32.totalorder %s676, %s678
    %p685 = scmp.eq.s32.totalorder %s80, 1
    %p686 = por %p684, %p685
    %p687 = scmp.ne.s32.totalorder %s678, %s679
    %p688 = scmp.eq.s32.totalorder %s80, 0
    %p689 = por %p687, %p688
    %p690 = scmp.ne.s32.totalorder %s678, %s679
    %p691 = scmp.eq.s32.totalorder %s81, 1
    %p692 = por %p690, %p691
    %p694 = scmp.ne.s32.totalorder %s679, %s693
    %p695 = scmp.eq.s32.totalorder %s81, 0
    %p696 = por %p694, %p695
    %s698 = sadd.s32 %s697, 1
    %p701 = scmp.eq.s32.totalorder %s75, 1
    %p702 = scmp.ne.s32.totalorder %s697, %s699
    %p703 = scmp.eq.s32.totalorder %s75, 0
    %p704 = por %p702, %p703
    %p705 = scmp.ne.s32.totalorder %s697, %s699
    %p706 = scmp.eq.s32.totalorder %s80, 1
    %p707 = por %p705, %p706
    %p708 = scmp.ne.s32.totalorder %s699, %s700
    %p709 = scmp.eq.s32.totalorder %s80, 0
    %p710 = por %p708, %p709
    %p711 = scmp.ne.s32.totalorder %s699, %s700
    %p712 = scmp.eq.s32.totalorder %s81, 1
    %p713 = por %p711, %p712
    %p715 = scmp.ne.s32.totalorder %s700, %s714
    %p716 = scmp.eq.s32.totalorder %s81, 0
    %p717 = por %p715, %p716
    %s719 = sadd.s32 %s718, 1
    %p722 = scmp.eq.s32.totalorder %s75, 1
    %p723 = scmp.ne.s32.totalorder %s718, %s720
    %p724 = scmp.eq.s32.totalorder %s75, 0
    %p725 = por %p723, %p724
    %p726 = scmp.ne.s32.totalorder %s718, %s720
    %p727 = scmp.eq.s32.totalorder %s80, 1
    %p728 = por %p726, %p727
    %p729 = scmp.ne.s32.totalorder %s720, %s721
    %p730 = scmp.eq.s32.totalorder %s80, 0
    %p731 = por %p729, %p730
    %p732 = scmp.ne.s32.totalorder %s720, %s721
    %p733 = scmp.eq.s32.totalorder %s81, 1
    %p734 = por %p732, %p733
    %p736 = scmp.ne.s32.totalorder %s721, %s735
    %p737 = scmp.eq.s32.totalorder %s81, 0
    %p738 = por %p736, %p737
    %s740 = sadd.s32 %s739, 1
    %p743 = scmp.eq.s32.totalorder %s75, 1
    %p744 = scmp.ne.s32.totalorder %s739, %s741
    %p745 = scmp.eq.s32.totalorder %s75, 0
    %p746 = por %p744, %p745
    %p747 = scmp.ne.s32.totalorder %s739, %s741
    %p748 = scmp.eq.s32.totalorder %s80, 1
    %p749 = por %p747, %p748
    %p750 = scmp.ne.s32.totalorder %s741, %s742
    %p751 = scmp.eq.s32.totalorder %s80, 0
    %p752 = por %p750, %p751
    %p753 = scmp.ne.s32.totalorder %s741, %s742
    %p754 = scmp.eq.s32.totalorder %s81, 1
    %p755 = por %p753, %p754
    %p757 = scmp.ne.s32.totalorder %s742, %s756
    %p758 = scmp.eq.s32.totalorder %s81, 0
    %p759 = por %p757, %p758
    %s761 = sadd.s32 %s760, 1
    %p764 = scmp.eq.s32.totalorder %s75, 1
    %p765 = scmp.ne.s32.totalorder %s760, %s762
    %p766 = scmp.eq.s32.totalorder %s75, 0
    %p767 = por %p765, %p766
    %p768 = scmp.ne.s32.totalorder %s760, %s762
    %p769 = scmp.eq.s32.totalorder %s80, 1
    %p770 = por %p768, %p769
    %p771 = scmp.ne.s32.totalorder %s762, %s763
    %p772 = scmp.eq.s32.totalorder %s80, 0
    %p773 = por %p771, %p772
    %p774 = scmp.ne.s32.totalorder %s762, %s763
    %p775 = scmp.eq.s32.totalorder %s81, 1
    %p776 = por %p774, %p775
    %p778 = scmp.ne.s32.totalorder %s763, %s777
    %p779 = scmp.eq.s32.totalorder %s81, 0
    %p780 = por %p778, %p779
    %s782 = sadd.s32 %s781, 1
    %p785 = scmp.eq.s32.totalorder %s75, 1
    %p786 = scmp.ne.s32.totalorder %s781, %s783
    %p787 = scmp.eq.s32.totalorder %s75, 0
    %p788 = por %p786, %p787
    %p789 = scmp.ne.s32.totalorder %s781, %s783
    %p790 = scmp.eq.s32.totalorder %s80, 1
    %p791 = por %p789, %p790
    %p792 = scmp.ne.s32.totalorder %s783, %s784
    %p793 = scmp.eq.s32.totalorder %s80, 0
    %p794 = por %p792, %p793
    %p795 = scmp.ne.s32.totalorder %s783, %s784
    %p796 = scmp.eq.s32.totalorder %s81, 1
    %p797 = por %p795, %p796
    %p799 = scmp.ne.s32.totalorder %s784, %s798
    %p800 = scmp.eq.s32.totalorder %s81, 0
    %p801 = por %p799, %p800
    %s802 = ssub.s32 %s75, %s82
    %p803 = scmp.eq.s32.totalorder %s802, 0
    %s805 = sadd.s32 %s804, 1
    %s806 = scalar_select %p803, %s804, %s805
    %p809 = pneg %p803
    %p810 = scmp.eq.s32.totalorder %s75, 1
    %p811 = por %p809, %p810
    %p812 = scmp.ne.s32.totalorder %s804, %s807
    %p813 = scmp.eq.s32.totalorder %s75, 0
    %p814 = por %p812, %p813
    %p815 = scmp.ne.s32.totalorder %s804, %s807
    %p816 = scmp.eq.s32.totalorder %s80, 1
    %p817 = por %p815, %p816
    %p818 = scmp.ne.s32.totalorder %s807, %s808
    %p819 = scmp.eq.s32.totalorder %s80, 0
    %p820 = por %p818, %p819
    %p821 = scmp.ne.s32.totalorder %s807, %s808
    %p822 = scmp.eq.s32.totalorder %s81, 1
    %p823 = por %p821, %p822
    %p825 = scmp.ne.s32.totalorder %s808, %s824
    %p826 = scmp.eq.s32.totalorder %s81, 0
    %p827 = por %p825, %p826
    %p828 = scmp.le.s32.totalorder 1, %s75
    %p829 = scmp.lt.s32.totalorder %s75, 3
    %p830 = pnand %p828, %p829
    %p831 = pneg %p830
    // Predicated region
    $region9: #{logit_head_forward.1} parent=5 // pred_check
      _
    $region10: #{logit_head_forward.1} parent=5 // pred_check_branch
      %833 = sbr.rel (%p830) target = $region12
    $region11: #{logit_head_forward.1} parent=5 // pred_region
      %s834 = ssub.s32 %s75, 1
      // Predicated region
      $region13: #{logit_head_forward.1} parent=11 // pred_check
        %p835 = pneg %p122
      $region14: #{logit_head_forward.1} parent=11 // pred_check_branch
        %837 = sbr.rel (%p835) target = $region16
      $region15: #{logit_head_forward.1} parent=11 // pred_region
        _
      $region16: #{logit_head_forward.1} parent=11 // pred_fallthru
        _
      // Predicated region
      $region17: #{logit_head_forward.1} parent=11 // pred_check
        %p838 = pneg %p143
      $region18: #{logit_head_forward.1} parent=11 // pred_check_branch
        %840 = sbr.rel (%p838) target = $region20
      $region19: #{logit_head_forward.1} parent=11 // pred_region
        _
      $region20: #{logit_head_forward.1} parent=11 // pred_fallthru
        _
      // Predicated region
      $region21: #{logit_head_forward.1} parent=11 // pred_check
        %p841 = pneg %p164
      $region22: #{logit_head_forward.1} parent=11 // pred_check_branch
        %843 = sbr.rel (%p841) target = $region24
      $region23: #{logit_head_forward.1} parent=11 // pred_region
        _
      $region24: #{logit_head_forward.1} parent=11 // pred_fallthru
        _
      // Predicated region
      $region25: #{logit_head_forward.1} parent=11 // pred_check
        %p844 = pneg %p185
      $region26: #{logit_head_forward.1} parent=11 // pred_check_branch
        %846 = sbr.rel (%p844) target = $region28
      $region27: #{logit_head_forward.1} parent=11 // pred_region
        _
      $region28: #{logit_head_forward.1} parent=11 // pred_fallthru
        _
      // Predicated region
      $region29: #{logit_head_forward.1} parent=11 // pred_check
        %p847 = pneg %p206
      $region30: #{logit_head_forward.1} parent=11 // pred_check_branch
        %849 = sbr.rel (%p847) target = $region32
      $region31: #{logit_head_forward.1} parent=11 // pred_region
        _
      $region32: #{logit_head_forward.1} parent=11 // pred_fallthru
        _
      // Predicated region
      $region33: #{logit_head_forward.1} parent=11 // pred_check
        %p850 = pneg %p227
      $region34: #{logit_head_forward.1} parent=11 // pred_check_branch
        %852 = sbr.rel (%p850) target = $region36
      $region35: #{logit_head_forward.1} parent=11 // pred_region
        _
      $region36: #{logit_head_forward.1} parent=11 // pred_fallthru
        _
      // Predicated region
      $region37: #{logit_head_forward.1} parent=11 // pred_check
        %p853 = pneg %p248
      $region38: #{logit_head_forward.1} parent=11 // pred_check_branch
        %855 = sbr.rel (%p853) target = $region40
      $region39: #{logit_head_forward.1} parent=11 // pred_region
        _
      $region40: #{logit_head_forward.1} parent=11 // pred_fallthru
        _
      // Predicated region
      $region41: #{logit_head_forward.1} parent=11 // pred_check
        %p856 = pneg %p269
      $region42: #{logit_head_forward.1} parent=11 // pred_check_branch
        %858 = sbr.rel (%p856) target = $region44
      $region43: #{logit_head_forward.1} parent=11 // pred_region
        _
      $region44: #{logit_head_forward.1} parent=11 // pred_fallthru
        _
      // Predicated region
      $region45: #{logit_head_forward.1} parent=11 // pred_check
        %p859 = pneg %p290
      $region46: #{logit_head_forward.1} parent=11 // pred_check_branch
        %861 = sbr.rel (%p859) target = $region48
      $region47: #{logit_head_forward.1} parent=11 // pred_region
        _
      $region48: #{logit_head_forward.1} parent=11 // pred_fallthru
        _
      // Predicated region
      $region49: #{logit_head_forward.1} parent=11 // pred_check
        %p862 = pneg %p311
      $region50: #{logit_head_forward.1} parent=11 // pred_check_branch
        %864 = sbr.rel (%p862) target = $region52
      $region51: #{logit_head_forward.1} parent=11 // pred_region
        _
      $region52: #{logit_head_forward.1} parent=11 // pred_fallthru
        _
      // Predicated region
      $region53: #{logit_head_forward.1} parent=11 // pred_check
        %p865 = pneg %p332
      $region54: #{logit_head_forward.1} parent=11 // pred_check_branch
        %867 = sbr.rel (%p865) target = $region56
      $region55: #{logit_head_forward.1} parent=11 // pred_region
        _
      $region56: #{logit_head_forward.1} parent=11 // pred_fallthru
        _
      // Predicated region
      $region57: #{logit_head_forward.1} parent=11 // pred_check
        %p868 = pneg %p353
      $region58: #{logit_head_forward.1} parent=11 // pred_check_branch
        %870 = sbr.rel (%p868) target = $region60
      $region59: #{logit_head_forward.1} parent=11 // pred_region
        _
      $region60: #{logit_head_forward.1} parent=11 // pred_fallthru
        _
      // Predicated region
      $region61: #{logit_head_forward.1} parent=11 // pred_check
        %p871 = pneg %p374
      $region62: #{logit_head_forward.1} parent=11 // pred_check_branch
        %873 = sbr.rel (%p871) target = $region64
      $region63: #{logit_head_forward.1} parent=11 // pred_region
        _
      $region64: #{logit_head_forward.1} parent=11 // pred_fallthru
        _
      // Predicated region
      $region65: #{logit_head_forward.1} parent=11 // pred_check
        %p874 = pneg %p395
      $region66: #{logit_head_forward.1} parent=11 // pred_check_branch
        %876 = sbr.rel (%p874) target = $region68
      $region67: #{logit_head_forward.1} parent=11 // pred_region
        _
      $region68: #{logit_head_forward.1} parent=11 // pred_fallthru
        _
      // Predicated region
      $region69: #{logit_head_forward.1} parent=11 // pred_check
        %p877 = pneg %p416
      $region70: #{logit_head_forward.1} parent=11 // pred_check_branch
        %879 = sbr.rel (%p877) target = $region72
      $region71: #{logit_head_forward.1} parent=11 // pred_region
        _
      $region72: #{logit_head_forward.1} parent=11 // pred_fallthru
        _
      // Predicated region
      $region73: #{logit_head_forward.1} parent=11 // pred_check
        %p880 = pneg %p437
      $region74: #{logit_head_forward.1} parent=11 // pred_check_branch
        %882 = sbr.rel (%p880) target = $region76
      $region75: #{logit_head_forward.1} parent=11 // pred_region
        _
      $region76: #{logit_head_forward.1} parent=11 // pred_fallthru
        _
      // Predicated region
      $region77: #{logit_head_forward.1} parent=11 // pred_check
        %p883 = pneg %p458
      $region78: #{logit_head_forward.1} parent=11 // pred_check_branch
        %885 = sbr.rel (%p883) target = $region80
      $region79: #{logit_head_forward.1} parent=11 // pred_region
        _
      $region80: #{logit_head_forward.1} parent=11 // pred_fallthru
        _
      // Predicated region
      $region81: #{logit_head_forward.1} parent=11 // pred_check
        %p886 = pneg %p479
      $region82: #{logit_head_forward.1} parent=11 // pred_check_branch
        %888 = sbr.rel (%p886) target = $region84
      $region83: #{logit_head_forward.1} parent=11 // pred_region
        _
      $region84: #{logit_head_forward.1} parent=11 // pred_fallthru
        _
      // Predicated region
      $region85: #{logit_head_forward.1} parent=11 // pred_check
        %p889 = pneg %p500
      $region86: #{logit_head_forward.1} parent=11 // pred_check_branch
        %891 = sbr.rel (%p889) target = $region88
      $region87: #{logit_head_forward.1} parent=11 // pred_region
        _
      $region88: #{logit_head_forward.1} parent=11 // pred_fallthru
        _
      // Predicated region
      $region89: #{logit_head_forward.1} parent=11 // pred_check
        %p892 = pneg %p521
      $region90: #{logit_head_forward.1} parent=11 // pred_check_branch
        %894 = sbr.rel (%p892) target = $region92
      $region91: #{logit_head_forward.1} parent=11 // pred_region
        _
      $region92: #{logit_head_forward.1} parent=11 // pred_fallthru
        _
      // Predicated region
      $region93: #{logit_head_forward.1} parent=11 // pred_check
        %p895 = pneg %p542
      $region94: #{logit_head_forward.1} parent=11 // pred_check_branch
        %897 = sbr.rel (%p895) target = $region96
      $region95: #{logit_head_forward.1} parent=11 // pred_region
        _
      $region96: #{logit_head_forward.1} parent=11 // pred_fallthru
        _
      // Predicated region
      $region97: #{logit_head_forward.1} parent=11 // pred_check
        %p898 = pneg %p563
      $region98: #{logit_head_forward.1} parent=11 // pred_check_branch
        %900 = sbr.rel (%p898) target = $region100
      $region99: #{logit_head_forward.1} parent=11 // pred_region
        _
      $region100: #{logit_head_forward.1} parent=11 // pred_fallthru
        _
      // Predicated region
      $region101: #{logit_head_forward.1} parent=11 // pred_check
        %p901 = pneg %p584
      $region102: #{logit_head_forward.1} parent=11 // pred_check_branch
        %903 = sbr.rel (%p901) target = $region104
      $region103: #{logit_head_forward.1} parent=11 // pred_region
        _
      $region104: #{logit_head_forward.1} parent=11 // pred_fallthru
        _
      // Predicated region
      $region105: #{logit_head_forward.1} parent=11 // pred_check
        %p904 = pneg %p605
      $region106: #{logit_head_forward.1} parent=11 // pred_check_branch
        %906 = sbr.rel (%p904) target = $region108
      $region107: #{logit_head_forward.1} parent=11 // pred_region
        _
      $region108: #{logit_head_forward.1} parent=11 // pred_fallthru
        _
      // Predicated region
      $region109: #{logit_head_forward.1} parent=11 // pred_check
        %p907 = pneg %p626
      $region110: #{logit_head_forward.1} parent=11 // pred_check_branch
        %909 = sbr.rel (%p907) target = $region112
      $region111: #{logit_head_forward.1} parent=11 // pred_region
        _
      $region112: #{logit_head_forward.1} parent=11 // pred_fallthru
        _
      // Predicated region
      $region113: #{logit_head_forward.1} parent=11 // pred_check
        %p910 = pneg %p647
      $region114: #{logit_head_forward.1} parent=11 // pred_check_branch
        %912 = sbr.rel (%p910) target = $region116
      $region115: #{logit_head_forward.1} parent=11 // pred_region
        _
      $region116: #{logit_head_forward.1} parent=11 // pred_fallthru
        _
      // Predicated region
      $region117: #{logit_head_forward.1} parent=11 // pred_check
        %p913 = pneg %p668
      $region118: #{logit_head_forward.1} parent=11 // pred_check_branch
        %915 = sbr.rel (%p913) target = $region120
      $region119: #{logit_head_forward.1} parent=11 // pred_region
        _
      $region120: #{logit_head_forward.1} parent=11 // pred_fallthru
        _
      // Predicated region
      $region121: #{logit_head_forward.1} parent=11 // pred_check
        %p916 = pneg %p689
      $region122: #{logit_head_forward.1} parent=11 // pred_check_branch
        %918 = sbr.rel (%p916) target = $region124
      $region123: #{logit_head_forward.1} parent=11 // pred_region
        _
      $region124: #{logit_head_forward.1} parent=11 // pred_fallthru
        _
      // Predicated region
      $region125: #{logit_head_forward.1} parent=11 // pred_check
        %p919 = pneg %p710
      $region126: #{logit_head_forward.1} parent=11 // pred_check_branch
        %921 = sbr.rel (%p919) target = $region128
      $region127: #{logit_head_forward.1} parent=11 // pred_region
        _
      $region128: #{logit_head_forward.1} parent=11 // pred_fallthru
        _
      // Predicated region
      $region129: #{logit_head_forward.1} parent=11 // pred_check
        %p922 = pneg %p731
      $region130: #{logit_head_forward.1} parent=11 // pred_check_branch
        %924 = sbr.rel (%p922) target = $region132
      $region131: #{logit_head_forward.1} parent=11 // pred_region
        _
      $region132: #{logit_head_forward.1} parent=11 // pred_fallthru
        _
      // Predicated region
      $region133: #{logit_head_forward.1} parent=11 // pred_check
        %p925 = pneg %p752
      $region134: #{logit_head_forward.1} parent=11 // pred_check_branch
        %927 = sbr.rel (%p925) target = $region136
      $region135: #{logit_head_forward.1} parent=11 // pred_region
        _
      $region136: #{logit_head_forward.1} parent=11 // pred_fallthru
        _
      // Predicated region
      $region137: #{logit_head_forward.1} parent=11 // pred_check
        %p928 = pneg %p773
      $region138: #{logit_head_forward.1} parent=11 // pred_check_branch
        %930 = sbr.rel (%p928) target = $region140
      $region139: #{logit_head_forward.1} parent=11 // pred_region
        _
      $region140: #{logit_head_forward.1} parent=11 // pred_fallthru
        _
      // Predicated region
      $region141: #{logit_head_forward.1} parent=11 // pred_check
        %p931 = pneg %p794
      $region142: #{logit_head_forward.1} parent=11 // pred_check_branch
        %933 = sbr.rel (%p931) target = $region144
      $region143: #{logit_head_forward.1} parent=11 // pred_region
        _
      $region144: #{logit_head_forward.1} parent=11 // pred_fallthru
        _
    $region12: #{logit_head_forward.1} parent=5 // pred_fallthru
      _
    %p934 = scmp.lt.s32.totalorder %s75, 2
    // Predicated region
    $region145: #{logit_head_forward.1} parent=5 // pred_check
      %p935 = pneg %p934
    $region146: #{logit_head_forward.1} parent=5 // pred_check_branch
      %937 = sbr.rel (%p935) target = $region148
    $region147: #{logit_head_forward.1} parent=5 // pred_region
      // Predicated region
      $region149: #{logit_head_forward.1} parent=147 // pred_check
        %p938 = pneg %p95
      $region150: #{logit_head_forward.1} parent=147 // pred_check_branch
        %940 = sbr.rel (%p938) target = $region152
      $region151: #{logit_head_forward.1} parent=147 // pred_region
        %p941 = scmp.lt.s32.totalorder %s75, 1
        %s942 = scalar_select %p941, %s75, 1
        %s943 = smul.addr %s942, 8
        %s944 = scalar_lea.vmem %s1, %s943
      $region152: #{logit_head_forward.1} parent=147 // pred_fallthru
        _
    $region148: #{logit_head_forward.1} parent=5 // pred_fallthru
      _
    %p945 = scmp.le.s32.totalorder 1, %s75
    %p946 = scmp.lt.s32.totalorder %s75, 3
    %p947 = pnand %p945, %p946
    %p948 = pneg %p947
    // Predicated region
    $region153: #{logit_head_forward.1} parent=5 // pred_check
      _
    $region154: #{logit_head_forward.1} parent=5 // pred_check_branch
      %950 = sbr.rel (%p947) target = $region156
    $region155: #{logit_head_forward.1} parent=5 // pred_region
      %s951 = ssub.s32 %s75, 1
      %p952 = scmp.lt.s32.totalorder %s80, 1
      %s953 = scalar_select %p952, %s80, 1
      %s954 = smul.addr %s953, 8
      %s955 = scalar_lea.vmem %s1, %s954
      %p956 = pneg %p101
      %p957 = pneg %p98
      %p958 = pneg %p122
      %p959 = pneg %p119
      %p960 = pneg %p143
      %p961 = pneg %p140
      %p962 = pneg %p164
      %p963 = pneg %p161
      %p964 = pneg %p185
      %p965 = pneg %p182
      %p966 = pneg %p206
      %p967 = pneg %p203
      %p968 = pneg %p227
      %p969 = pneg %p224
      %p970 = pneg %p248
      %p971 = pneg %p245
      %p972 = pneg %p269
      %p973 = pneg %p266
      %p974 = pneg %p290
      %p975 = pneg %p287
      %p976 = pneg %p311
      %p977 = pneg %p308
      %p978 = pneg %p332
      %p979 = pneg %p329
      %p980 = pneg %p353
      %p981 = pneg %p350
      %p982 = pneg %p374
      %p983 = pneg %p371
      %p984 = pneg %p395
      %p985 = pneg %p392
      %p986 = pneg %p416
      %p987 = pneg %p413
      %p988 = pneg %p437
      %p989 = pneg %p434
      %p990 = pneg %p458
      %p991 = pneg %p455
      %p992 = pneg %p479
      %p993 = pneg %p476
      %p994 = pneg %p500
      %p995 = pneg %p497
      %p996 = pneg %p521
      %p997 = pneg %p518
      %p998 = pneg %p542
      %p999 = pneg %p539
      %p1000 = pneg %p563
      %p1001 = pneg %p560
      %p1002 = pneg %p584
      %p1003 = pneg %p581
      %p1004 = pneg %p605
      %p1005 = pneg %p602
      %p1006 = pneg %p626
      %p1007 = pneg %p623
      %p1008 = pneg %p647
      %p1009 = pneg %p644
      %p1010 = pneg %p668
      %p1011 = pneg %p665
      %p1012 = pneg %p689
      %p1013 = pneg %p686
      %p1014 = pneg %p710
      %p1015 = pneg %p707
      %p1016 = pneg %p731
      %p1017 = pneg %p728
      %p1018 = pneg %p752
      %p1019 = pneg %p749
      %p1020 = pneg %p773
      %p1021 = pneg %p770
      %p1022 = pneg %p794
      %p1023 = pneg %p791
      %p1024 = pneg %p820
      %p1025 = pneg %p817
      %p1026 = scmp.lt.s32.totalorder %s80, 1
      %s1027 = scalar_select %p1026, %s80, 1
      %s1028 = smul.addr %s1027, 8
      %s1029 = scalar_lea.vmem %s69, %s1028
      %p1030 = scmp.lt.s32.totalorder %s80, 1
      %s1031 = scalar_select %p1030, %s80, 1
      %s1032 = smul.addr %s1031, 8
      %s1033 = scalar_lea.vmem %s1, %s1032
      %p1034 = scmp.lt.s32.totalorder %s80, 1
      %s1035 = scalar_select %p1034, %s80, 1
      %s1036 = smul.addr %s1035, 8
      %s1037 = scalar_lea.vmem %s69, %s1036
      %v1038 = vld [vmem:[%s1033] sm:$0xff]
      %v1039 = vld [vmem:[%s3] sm:$0xff]
      %v1040 = vld [vmem:[%s5] sm:$0xff]
      %v1041 = vld [vmem:[%s9] sm:$0x1]
      %v1042 = vld [vmem:[%s11] sm:$0x1]
      %vm1043 = vcmask 261120
      %v1044 = vsel %vm1043, %v1038, 0.0
      %1045 = vadd.xlane.f32.xlu0 %v1044
      %v1046 = vpop.xlane.xlu0 %1045
      %v1047 = vrcp.pop 32.0
      %v1048 = vmul.f32 32.0, %v1047
      %v1049 = vsub.f32 1.0, %v1048
      %v1050 = vmul.f32 %v1047, %v1049
      %v1051 = vadd.f32 %v1047, %v1050
      %vm1052 = vweird.f32 %v1047
      %v1053 = vsel %vm1052, %v1047, %v1051
      %v1054 = vmul.f32 %v1046, %v1053
      %v1055 = vsub.f32 %v1038, %v1054
      %v1056 = vmul.f32 %v1055, %v1055
      %v1057 = vsel %vm1043, %v1056, 0.0
      %1058 = vadd.xlane.f32.xlu0 %v1057
      %v1059 = vpop.xlane.xlu0 %1058
      %v1060 = vmul.f32 %v1059, %v1053
      %v1061 = vadd.f32 %v1060, 1e-05
      %v1062 = vrsqrt.pop %v1061
      %v1063 = vmul.f32 %v1062, %v1061
      %v1064 = vmul.f32 %v1063, %v1062
      %v1065 = vmul.f32 0.5, %v1064
      %v1066 = vsub.f32 1.5, %v1065
      %v1067 = vmul.f32 %v1062, %v1066
      %vm1068 = vweird.f32 %v1061
      %vm1069 = vweird.f32 %v1062
      %vm1070 = vmor %vm1068, %vm1069
      %v1071 = vsel %vm1070, %v1062, %v1067
      %v1072 = vmul.f32 %v1055, %v1071
      %v1074 = vperm.slane %v1041, 0
      %v1076 = vmul.f32 %v1072, %v1074
      %v1078 = vperm.slane %v1042, 0
      %v1080 = vadd.f32 %v1076, %v1078
      %v1081 = vld [vmem:[%s13] sm:$0xff]
      %v1082 = vld [vmem:[%s13 + $0x8] sm:$0xff]
      %v1083 = vld [vmem:[%s13 + $0x10] sm:$0xff]
      %v1084 = vld [vmem:[%s13 + $0x18] sm:$0xff]
      %v1085 = vld [vmem:[%s15] sm:$0x1]
      %v1087 = vperm.slane %v1085, 0
      %v1090 = vsel %vm1043, %v1080, 0
      %1092 = vmatpush.msra.mxu0 0.0
      %1093 = vmatpush.msra.mxu0 0.0
      %1094 = vmatpush.msra.mxu0 0.0
      %1095 = vmatpush.msra.mxu0 0.0
      %1096 = vmatpush.msra.mxu0 0.0
      %1097 = vmatpush.msra.mxu0 0.0
      %1098 = vmatpush.msra.mxu0 0.0
      %1099 = vmatpush.msra.mxu0 0.0
      %1100 = vmatpush.msra.mxu0 0.0
      %1101 = vmatpush.msra.mxu0 0.0
      %1102 = vmatpush.msra.mxu0 0.0
      %1103 = vmatpush.msra.mxu0 0.0
      %1104 = vmatpush.msra.mxu0 %v1084
      %1105 = vmatpush.msra.mxu0 %v1083
      %1106 = vmatpush.msra.mxu0 %v1082
      %1107 = vmatpush.msra.mxu0 %v1081
      %1108 = vmatmul.f32.gmra.mxu0 %v1090
      %v1109 = vpop.f32.mrf.mxu0
      %v1110 = vadd.f32 %v1087, %v1109
      %1111 = vdwg.mxu0
      %v1112 = vxor.u32 %v1110, 2147483648
      %v1113 = vmul.f32 %v1112, 1.442695
      %v1114 = vpow.pop %v1113
      %v1115 = vadd.f32 %v1114, 1.0
      %v1116 = vrcp.pop %v1115
      %v1117 = vmul.f32 %v1115, %v1116
      %v1118 = vsub.f32 1.0, %v1117
      %v1119 = vmul.f32 %v1116, %v1118
      %v1120 = vadd.f32 %v1116, %v1119
      %vm1121 = vweird.f32 %v1115
      %vm1122 = vweird.f32 %v1116
      %vm1123 = vmor %vm1121, %vm1122
      %v1124 = vsel %vm1123, %v1116, %v1120
      %v1125 = vand.u32 2147483647, %v1115
      %vm1126 = vcmp.eq.f32.partialorder %v1125, 8.507059e+37
      %v1127 = vand.u32 %v1115, 2147483648
      %v1128 = vor.u32 1.1754944e-38, %v1127
      %v1129 = vsel %vm1126, %v1128, %v1124
      %v1130 = vmul.f32 1.0, %v1129
      %v1131 = vmul.f32 %v1110, %v1130
      %v1132 = vld [vmem:[%s17] sm:$0xff]
      %v1133 = vld [vmem:[%s17 + $0x8] sm:$0xff]
      %v1134 = vld [vmem:[%s17 + $0x10] sm:$0xff]
      %v1135 = vld [vmem:[%s17 + $0x18] sm:$0xff]
      %v1136 = vld [vmem:[%s17 + $0x20] sm:$0xff]
      %v1137 = vld [vmem:[%s17 + $0x28] sm:$0xff]
      %v1138 = vld [vmem:[%s17 + $0x30] sm:$0xff]
      %v1139 = vld [vmem:[%s17 + $0x38] sm:$0xff]
      %v1140 = vld [vmem:[%s17 + $0x40] sm:$0xff]
      %v1141 = vld [vmem:[%s17 + $0x48] sm:$0xff]
      %v1142 = vld [vmem:[%s17 + $0x50] sm:$0xff]
      %v1143 = vld [vmem:[%s17 + $0x58] sm:$0xff]
      %v1144 = vld [vmem:[%s17 + $0x60] sm:$0xff]
      %v1145 = vld [vmem:[%s17 + $0x68] sm:$0xff]
      %v1146 = vld [vmem:[%s17 + $0x70] sm:$0xff]
      %v1147 = vld [vmem:[%s17 + $0x78] sm:$0xff]
      %v1148 = vld [vmem:[%s19] sm:$0x1]
      %v1150 = vperm.slane %v1148, 0
      %1152 = vmatpush.msra.mxu0 %v1147
      %1153 = vmatpush.msra.mxu0 %v1146
      %1154 = vmatpush.msra.mxu0 %v1145
      %1155 = vmatpush.msra.mxu0 %v1144
      %1156 = vmatpush.msra.mxu0 %v1143
      %1157 = vmatpush.msra.mxu0 %v1142
      %1158 = vmatpush.msra.mxu0 %v1141
      %1159 = vmatpush.msra.mxu0 %v1140
      %1160 = vmatpush.msra.mxu0 %v1139
      %1161 = vmatpush.msra.mxu0 %v1138
      %1162 = vmatpush.msra.mxu0 %v1137
      %1163 = vmatpush.msra.mxu0 %v1136
      %1164 = vmatpush.msra.mxu0 %v1135
      %1165 = vmatpush.msra.mxu0 %v1134
      %1166 = vmatpush.msra.mxu0 %v1133
      %1167 = vmatpush.msra.mxu0 %v1132
      %1168 = vmatmul.f32.gmra.mxu0 %v1131
      %v1169 = vpop.f32.mrf.mxu0
      %v1170 = vadd.f32 %v1150, %v1169
      %1171 = vdwg.mxu0
      %v1172 = vmul.f32 %v1170, 0.5
      %v1173 = vadd.f32 %v1038, %v1172
      %v1174 = vld [vmem:[%s21] sm:$0x1]
      %v1175 = vld [vmem:[%s23] sm:$0x1]
      %v1176 = vsel %vm1043, %v1173, 0.0
      %1177 = vadd.xlane.f32.xlu0 %v1176
      %v1178 = vpop.xlane.xlu0 %1177
      %v1179 = vmul.f32 %v1178, %v1053
      %v1180 = vsub.f32 %v1173, %v1179
      %v1181 = vmul.f32 %v1180, %v1180
      %v1182 = vsel %vm1043, %v1181, 0.0
      %1183 = vadd.xlane.f32.xlu0 %v1182
      %v1184 = vpop.xlane.xlu0 %1183
      %v1185 = vmul.f32 %v1184, %v1053
      %v1186 = vadd.f32 %v1185, 1e-05
      %v1187 = vrsqrt.pop %v1186
      %v1188 = vmul.f32 %v1187, %v1186
      %v1189 = vmul.f32 %v1188, %v1187
      %v1190 = vmul.f32 0.5, %v1189
      %v1191 = vsub.f32 1.5, %v1190
      %v1192 = vmul.f32 %v1187, %v1191
      %vm1193 = vweird.f32 %v1186
      %vm1194 = vweird.f32 %v1187
      %vm1195 = vmor %vm1193, %vm1194
      %v1196 = vsel %vm1195, %v1187, %v1192
      %v1197 = vmul.f32 %v1180, %v1196
      %v1199 = vperm.slane %v1174, 0
      %v1201 = vmul.f32 %v1197, %v1199
      %v1203 = vperm.slane %v1175, 0
      %v1205 = vadd.f32 %v1201, %v1203
      %v1206 = vld [vmem:[%s25] sm:$0xff]
      %v1207 = vld [vmem:[%s25 + $0x8] sm:$0xff]
      %v1208 = vld [vmem:[%s25 + $0x10] sm:$0xff]
      %v1209 = vld [vmem:[%s25 + $0x18] sm:$0xff]
      %v1211 = vsel %vm1043, %v1205, 0
      %1213 = vmatpush.msra.mxu0 0.0
      %1214 = vmatpush.msra.mxu0 0.0
      %1215 = vmatpush.msra.mxu0 0.0
      %1216 = vmatpush.msra.mxu0 0.0
      %1217 = vmatpush.msra.mxu0 0.0
      %1218 = vmatpush.msra.mxu0 0.0
      %1219 = vmatpush.msra.mxu0 0.0
      %1220 = vmatpush.msra.mxu0 0.0
      %1221 = vmatpush.msra.mxu0 0.0
      %1222 = vmatpush.msra.mxu0 0.0
      %1223 = vmatpush.msra.mxu0 0.0
      %1224 = vmatpush.msra.mxu0 0.0
      %1225 = vmatpush.msra.mxu0 %v1209
      %1226 = vmatpush.msra.mxu0 %v1208
      %1227 = vmatpush.msra.mxu0 %v1207
      %1228 = vmatpush.msra.mxu0 %v1206
      %1229 = vmatmul.f32.gmra.mxu0 %v1211
      %v1230 = vpop.f32.mrf.mxu0
      %v1231 = vadd.f32 0.0, %v1230
      %1232 = vdwg.mxu0
      %v1233 = vld [vmem:[%s27] sm:$0xff]
      %v1234 = vld [vmem:[%s27 + $0x8] sm:$0xff]
      %v1235 = vld [vmem:[%s27 + $0x10] sm:$0xff]
      %v1236 = vld [vmem:[%s27 + $0x18] sm:$0xff]
      %v1237 = vld [vmem:[%s29] sm:$0x1]
      %v1238 = vsub.f32 0.0, %v1231
      %1240 = vrot.lane.b32.xlu0 %v1238, 120
      %v1241 = vpop.permute.xlu0 %1240
      %1244 = vrot.lane.b32.xlu0 %v1231, 8
      %v1245 = vpop.permute.xlu0 %1244
      %vm1247 = vcmask 64512
      %v1248 = vsel %vm1247, %v1241, %v1245
      %v1249 = vmul.f32 %v1231, %v1039
      %v1250 = vmul.f32 %v1248, %v1040
      %v1251 = vadd.f32 %v1249, %v1250
      %1252 = vrot.lane.b32.xlu0 %v1238, 88
      %v1253 = vpop.permute.xlu0 %1252
      %1255 = vrot.lane.b32.xlu0 %v1231, 104
      %v1256 = vpop.permute.xlu0 %1255
      %v1258 = vsel %vm1247, %v1253, %v1256
      %1260 = vrot.lane.b32.xlu0 %v1039, 32
      %v1261 = vpop.permute.xlu0 %1260
      %v1263 = vmul.f32 %v1231, %v1261
      %v1264 = vmul.f32 %v1258, %v1040
      %1266 = vrot.lane.b32.xlu0 %v1264, 32
      %v1267 = vpop.permute.xlu0 %1266
      %v1269 = vadd.f32 %v1263, %v1267
      %1271 = vrot.lane.b32.xlu0 %v1269, 96
      %v1272 = vpop.permute.xlu0 %1271
      %vm1273 = vcmask 130048
      %v1275 = vsel %vm1273, %v1251, 0
      %v1277 = vsel %vm1273, %v1272, 0
      %1279 = vmatpush.xpose.msra.mxu0 0.0
      %1280 = vmatpush.xpose.msra.mxu0 0.0
      %1281 = vmatpush.xpose.msra.mxu0 0.0
      %1282 = vmatpush.xpose.msra.mxu0 0.0
      %1283 = vmatpush.xpose.msra.mxu0 0.0
      %1284 = vmatpush.xpose.msra.mxu0 0.0
      %1285 = vmatpush.xpose.msra.mxu0 0.0
      %1286 = vmatpush.xpose.msra.mxu0 0.0
      %1287 = vmatpush.xpose.msra.mxu0 0.0
      %1288 = vmatpush.xpose.msra.mxu0 0.0
      %1289 = vmatpush.xpose.msra.mxu0 0.0
      %1290 = vmatpush.xpose.msra.mxu0 0.0
      %1291 = vmatpush.xpose.msra.mxu0 0.0
      %1292 = vmatpush.xpose.msra.mxu0 0.0
      %1293 = vmatpush.xpose.msra.mxu0 0.0
      %1294 = vmatpush.xpose.msra.mxu0 %v1277
      %1295 = vmatmul.f32.gmra.mxu0 %v1275
      %v1296 = vpop.f32.mrf.mxu0
      %v1297 = vadd.f32 0.0, %v1296
      %1298 = vdwg.mxu0
      %v1299 = vmul.f32 %v1297, 0.25
      %v1300 = vsel %vm1247, %v1299, -inf
      %1301 = vmax.xlane.f32.xlu0 %v1300
      %v1302 = vpop.xlane.xlu0 %1301
      %v1303 = vsub.f32 %v1299, %v1302
      %v1304 = vmul.f32 %v1303, 1.442695
      %v1305 = vpow.pop %v1304
      %v1306 = vsel %vm1247, %v1305, 0.0
      %1307 = vadd.xlane.f32.xlu0 %v1306
      %v1308 = vpop.xlane.xlu0 %1307
      %v1309 = vrcp.pop %v1308
      %v1310 = vmul.f32 %v1305, %v1309
      %1311 = vrot.lane.b32.xlu0 %v1231, 64
      %v1312 = vpop.permute.xlu0 %1311
      %v1315 = vsel %vm1247, %v1310, 0
      %1317 = vmatpush.msra.mxu0 0.0
      %1318 = vmatpush.msra.mxu0 0.0
      %1319 = vmatpush.msra.mxu0 0.0
      %1320 = vmatpush.msra.mxu0 0.0
      %1321 = vmatpush.msra.mxu0 0.0
      %1322 = vmatpush.msra.mxu0 0.0
      %1323 = vmatpush.msra.mxu0 0.0
      %1324 = vmatpush.msra.mxu0 0.0
      %1325 = vmatpush.msra.mxu0 0.0
      %1326 = vmatpush.msra.mxu0 0.0
      %1327 = vmatpush.msra.mxu0 0.0
      %1328 = vmatpush.msra.mxu0 0.0
      %1329 = vmatpush.msra.mxu0 0.0
      %1330 = vmatpush.msra.mxu0 0.0
      %1331 = vmatpush.msra.mxu0 0.0
      %1332 = vmatpush.msra.mxu0 %v1312
      %1333 = vmatmul.f32.gmra.mxu0 %v1315
      %v1334 = vpop.f32.mrf.mxu0
      %v1335 = vadd.f32 0.0, %v1334
      %1336 = vdwg.mxu0
      %v1338 = vsel %vm1273, %v1335, 0
      %1340 = vmatpush.msra.mxu0 0.0
      %1341 = vmatpush.msra.mxu0 0.0
      %1342 = vmatpush.msra.mxu0 0.0
      %1343 = vmatpush.msra.mxu0 0.0
      %1344 = vmatpush.msra.mxu0 0.0
      %1345 = vmatpush.msra.mxu0 0.0
      %1346 = vmatpush.msra.mxu0 0.0
      %1347 = vmatpush.msra.mxu0 0.0
      %1348 = vmatpush.msra.mxu0 0.0
      %1349 = vmatpush.msra.mxu0 0.0
      %1350 = vmatpush.msra.mxu0 0.0
      %1351 = vmatpush.msra.mxu0 0.0
      %1352 = vmatpush.msra.mxu0 0.0
      %1353 = vmatpush.msra.mxu0 0.0
      %1354 = vmatpush.msra.mxu0 %v1234
      %1355 = vmatpush.msra.mxu0 %v1233
      %1356 = vmatmul.f32.gmra.mxu0 %v1338
      %v1357 = vpop.f32.mrf.mxu0
      %v1358 = vadd.f32 0.0, %v1357
      %1359 = vdwg.mxu0
      %v1361 = vperm.slane %v1237, 0
      %v1363 = vadd.f32 %v1361, %v1358
      %1364 = vrot.lane.b32.xlu0 %v1238, 104
      %v1365 = vpop.permute.xlu0 %1364
      %1367 = vrot.lane.b32.xlu0 %v1231, 120
      %v1368 = vpop.permute.xlu0 %1367
      %v1370 = vsel %vm1247, %v1365, %v1368
      %1371 = vrot.lane.b32.xlu0 %v1039, 16
      %v1372 = vpop.permute.xlu0 %1371
      %v1374 = vmul.f32 %v1231, %v1372
      %v1375 = vmul.f32 %v1370, %v1040
      %1377 = vrot.lane.b32.xlu0 %v1375, 16
      %v1378 = vpop.permute.xlu0 %1377
      %v1380 = vadd.f32 %v1374, %v1378
      %1381 = vrot.lane.b32.xlu0 %v1238, 72
      %v1382 = vpop.permute.xlu0 %1381
      %1384 = vrot.lane.b32.xlu0 %v1231, 88
      %v1385 = vpop.permute.xlu0 %1384
      %v1387 = vsel %vm1247, %v1382, %v1385
      %1388 = vrot.lane.b32.xlu0 %v1039, 48
      %v1389 = vpop.permute.xlu0 %1388
      %v1391 = vmul.f32 %v1231, %v1389
      %v1392 = vmul.f32 %v1387, %v1040
      %1394 = vrot.lane.b32.xlu0 %v1392, 48
      %v1395 = vpop.permute.xlu0 %1394
      %v1397 = vadd.f32 %v1391, %v1395
      %1399 = vrot.lane.b32.xlu0 %v1380, 112
      %v1400 = vpop.permute.xlu0 %1399
      %1402 = vrot.lane.b32.xlu0 %v1397, 80
      %v1403 = vpop.permute.xlu0 %1402
      %v1404 = vsel %vm1273, %v1400, 0
      %v1406 = vsel %vm1273, %v1403, 0
      %1408 = vmatpush.xpose.msra.mxu0 0.0
      %1409 = vmatpush.xpose.msra.mxu0 0.0
      %1410 = vmatpush.xpose.msra.mxu0 0.0
      %1411 = vmatpush.xpose.msra.mxu0 0.0
      %1412 = vmatpush.xpose.msra.mxu0 0.0
      %1413 = vmatpush.xpose.msra.mxu0 0.0
      %1414 = vmatpush.xpose.msra.mxu0 0.0
      %1415 = vmatpush.xpose.msra.mxu0 0.0
      %1416 = vmatpush.xpose.msra.mxu0 0.0
      %1417 = vmatpush.xpose.msra.mxu0 0.0
      %1418 = vmatpush.xpose.msra.mxu0 0.0
      %1419 = vmatpush.xpose.msra.mxu0 0.0
      %1420 = vmatpush.xpose.msra.mxu0 0.0
      %1421 = vmatpush.xpose.msra.mxu0 0.0
      %1422 = vmatpush.xpose.msra.mxu0 0.0
      %1423 = vmatpush.xpose.msra.mxu0 %v1406
      %1424 = vmatmul.f32.gmra.mxu0 %v1404
      %v1425 = vpop.f32.mrf.mxu0
      %v1426 = vadd.f32 0.0, %v1425
      %1427 = vdwg.mxu0
      %v1428 = vmul.f32 %v1426, 0.25
      %v1429 = vsel %vm1247, %v1428, -inf
      %1430 = vmax.xlane.f32.xlu0 %v1429
      %v1431 = vpop.xlane.xlu0 %1430
      %v1432 = vsub.f32 %v1428, %v1431
      %v1433 = vmul.f32 %v1432, 1.442695
      %v1434 = vpow.pop %v1433
      %v1435 = vsel %vm1247, %v1434, 0.0
      %1436 = vadd.xlane.f32.xlu0 %v1435
      %v1437 = vpop.xlane.xlu0 %1436
      %v1438 = vrcp.pop %v1437
      %v1439 = vmul.f32 %v1434, %v1438
      %1440 = vrot.lane.b32.xlu0 %v1231, 48
      %v1441 = vpop.permute.xlu0 %1440
      %v1444 = vsel %vm1247, %v1439, 0
      %1446 = vmatpush.msra.mxu0 0.0
      %1447 = vmatpush.msra.mxu0 0.0
      %1448 = vmatpush.msra.mxu0 0.0
      %1449 = vmatpush.msra.mxu0 0.0
      %1450 = vmatpush.msra.mxu0 0.0
      %1451 = vmatpush.msra.mxu0 0.0
      %1452 = vmatpush.msra.mxu0 0.0
      %1453 = vmatpush.msra.mxu0 0.0
      %1454 = vmatpush.msra.mxu0 0.0
      %1455 = vmatpush.msra.mxu0 0.0
      %1456 = vmatpush.msra.mxu0 0.0
      %1457 = vmatpush.msra.mxu0 0.0
      %1458 = vmatpush.msra.mxu0 0.0
      %1459 = vmatpush.msra.mxu0 0.0
      %1460 = vmatpush.msra.mxu0 0.0
      %1461 = vmatpush.msra.mxu0 %v1441
      %1462 = vmatmul.f32.gmra.mxu0 %v1444
      %v1463 = vpop.f32.mrf.mxu0
      %v1464 = vadd.f32 0.0, %v1463
      %1465 = vdwg.mxu0
      %v1467 = vsel %vm1273, %v1464, 0
      %1469 = vmatpush.msra.mxu0 0.0
      %1470 = vmatpush.msra.mxu0 0.0
      %1471 = vmatpush.msra.mxu0 0.0
      %1472 = vmatpush.msra.mxu0 0.0
      %1473 = vmatpush.msra.mxu0 0.0
      %1474 = vmatpush.msra.mxu0 0.0
      %1475 = vmatpush.msra.mxu0 0.0
      %1476 = vmatpush.msra.mxu0 0.0
      %1477 = vmatpush.msra.mxu0 0.0
      %1478 = vmatpush.msra.mxu0 0.0
      %1479 = vmatpush.msra.mxu0 0.0
      %1480 = vmatpush.msra.mxu0 0.0
      %1481 = vmatpush.msra.mxu0 0.0
      %1482 = vmatpush.msra.mxu0 0.0
      %1483 = vmatpush.msra.mxu0 %v1236
      %1484 = vmatpush.msra.mxu0 %v1235
      %1485 = vmatmul.f32.gmra.mxu0 %v1467
      %v1486 = vpop.f32.mrf.mxu0
      %v1487 = vadd.f32 0.0, %v1486
      %1488 = vdwg.mxu0
      %v1489 = vadd.f32 %v1363, %v1487
      %v1490 = vadd.f32 %v1173, %v1489
      %v1491 = vld [vmem:[%s31] sm:$0x1]
      %v1492 = vld [vmem:[%s33] sm:$0x1]
      %v1493 = vsel %vm1043, %v1490, 0.0
      %1494 = vadd.xlane.f32.xlu0 %v1493
      %v1495 = vpop.xlane.xlu0 %1494
      %v1496 = vmul.f32 %v1495, %v1053
      %v1497 = vsub.f32 %v1490, %v1496
      %v1498 = vmul.f32 %v1497, %v1497
      %v1499 = vsel %vm1043, %v1498, 0.0
      %1500 = vadd.xlane.f32.xlu0 %v1499
      %v1501 = vpop.xlane.xlu0 %1500
      %v1502 = vmul.f32 %v1501, %v1053
      %v1503 = vadd.f32 %v1502, 1e-05
      %v1504 = vrsqrt.pop %v1503
      %v1505 = vmul.f32 %v1504, %v1503
      %v1506 = vmul.f32 %v1505, %v1504
      %v1507 = vmul.f32 0.5, %v1506
      %v1508 = vsub.f32 1.5, %v1507
      %v1509 = vmul.f32 %v1504, %v1508
      %vm1510 = vweird.f32 %v1503
      %vm1511 = vweird.f32 %v1504
      %vm1512 = vmor %vm1510, %vm1511
      %v1513 = vsel %vm1512, %v1504, %v1509
      %v1514 = vmul.f32 %v1497, %v1513
      %v1516 = vperm.slane %v1491, 0
      %v1518 = vmul.f32 %v1514, %v1516
      %v1520 = vperm.slane %v1492, 0
      %v1522 = vadd.f32 %v1518, %v1520
      %v1523 = vld [vmem:[%s35] sm:$0xff]
      %v1524 = vld [vmem:[%s35 + $0x8] sm:$0xff]
      %v1525 = vld [vmem:[%s35 + $0x10] sm:$0xff]
      %v1526 = vld [vmem:[%s35 + $0x18] sm:$0xff]
      %v1527 = vld [vmem:[%s37] sm:$0x1]
      %v1529 = vperm.slane %v1527, 0
      %v1532 = vsel %vm1043, %v1522, 0
      %1534 = vmatpush.msra.mxu0 0.0
      %1535 = vmatpush.msra.mxu0 0.0
      %1536 = vmatpush.msra.mxu0 0.0
      %1537 = vmatpush.msra.mxu0 0.0
      %1538 = vmatpush.msra.mxu0 0.0
      %1539 = vmatpush.msra.mxu0 0.0
      %1540 = vmatpush.msra.mxu0 0.0
      %1541 = vmatpush.msra.mxu0 0.0
      %1542 = vmatpush.msra.mxu0 0.0
      %1543 = vmatpush.msra.mxu0 0.0
      %1544 = vmatpush.msra.mxu0 0.0
      %1545 = vmatpush.msra.mxu0 0.0
      %1546 = vmatpush.msra.mxu0 %v1526
      %1547 = vmatpush.msra.mxu0 %v1525
      %1548 = vmatpush.msra.mxu0 %v1524
      %1549 = vmatpush.msra.mxu0 %v1523
      %1550 = vmatmul.f32.gmra.mxu0 %v1532
      %v1551 = vpop.f32.mrf.mxu0
      %v1552 = vadd.f32 %v1529, %v1551
      %1553 = vdwg.mxu0
      %v1554 = vxor.u32 %v1552, 2147483648
      %v1555 = vmul.f32 %v1554, 1.442695
      %v1556 = vpow.pop %v1555
      %v1557 = vadd.f32 %v1556, 1.0
      %v1558 = vrcp.pop %v1557
      %v1559 = vmul.f32 %v1557, %v1558
      %v1560 = vsub.f32 1.0, %v1559
      %v1561 = vmul.f32 %v1558, %v1560
      %v1562 = vadd.f32 %v1558, %v1561
      %vm1563 = vweird.f32 %v1557
      %vm1564 = vweird.f32 %v1558
      %vm1565 = vmor %vm1563, %vm1564
      %v1566 = vsel %vm1565, %v1558, %v1562
      %v1567 = vand.u32 2147483647, %v1557
      %vm1568 = vcmp.eq.f32.partialorder %v1567, 8.507059e+37
      %v1569 = vand.u32 %v1557, 2147483648
      %v1570 = vor.u32 1.1754944e-38, %v1569
      %v1571 = vsel %vm1568, %v1570, %v1566
      %v1572 = vmul.f32 1.0, %v1571
      %1574 = vrot.lane.b32.xlu0 %v1572, 64
      %v1575 = vpop.permute.xlu0 %1574
      %v1577 = vmul.f32 %v1552, %v1575
      %v1578 = vld [vmem:[%s39] sm:$0x7f]
      %v1579 = vld [vmem:[%s7] sm:$0xff]
      %v1581 = vsel %vm1247, %v1579, 0
      %1583 = vmatpush.msra.mxu0 0.0
      %1584 = vmatpush.msra.mxu0 0.0
      %1585 = vmatpush.msra.mxu0 0.0
      %1586 = vmatpush.msra.mxu0 0.0
      %1587 = vmatpush.msra.mxu0 0.0
      %1588 = vmatpush.msra.mxu0 0.0
      %1589 = vmatpush.msra.mxu0 0.0
      %1590 = vmatpush.msra.mxu0 0.0
      %1591 = vmatpush.msra.mxu0 0.0
      %1592 = vmatpush.msra.mxu0 0.0
      %1593 = vmatpush.msra.mxu0 0.0
      %1594 = vmatpush.msra.mxu0 0.0
      %1595 = vmatpush.msra.mxu0 0.0
      %1596 = vmatpush.msra.mxu0 0.0
      %1597 = vmatpush.msra.mxu0 0.0
      %1598 = vmatpush.msra.mxu0 %v1577
      %1599 = vmatmul.f32.gmra.mxu0 %v1581
      %v1600 = vpop.f32.mrf.mxu0
      %v1601 = vadd.f32 0.0, %v1600
      %1602 = vdwg.mxu0
      %v1603 = vperm.slane %v1578, 0
      %v1604 = vmul.f32 %v1601, %v1603
      %s1605 = scalar_lea.vmem %s7, 8
      %v1606 = vld [vmem:[%s1605] sm:$0xff]
      %v1608 = vsel %vm1247, %v1606, 0
      %1610 = vmatpush.msra.mxu0 0.0
      %1611 = vmatpush.msra.mxu0 0.0
      %1612 = vmatpush.msra.mxu0 0.0
      %1613 = vmatpush.msra.mxu0 0.0
      %1614 = vmatpush.msra.mxu0 0.0
      %1615 = vmatpush.msra.mxu0 0.0
      %1616 = vmatpush.msra.mxu0 0.0
      %1617 = vmatpush.msra.mxu0 0.0
      %1618 = vmatpush.msra.mxu0 0.0
      %1619 = vmatpush.msra.mxu0 0.0
      %1620 = vmatpush.msra.mxu0 0.0
      %1621 = vmatpush.msra.mxu0 0.0
      %1622 = vmatpush.msra.mxu0 0.0
      %1623 = vmatpush.msra.mxu0 0.0
      %1624 = vmatpush.msra.mxu0 0.0
      %1625 = vmatpush.msra.mxu0 %v1577
      %1626 = vmatmul.f32.gmra.mxu0 %v1608
      %v1627 = vpop.f32.mrf.mxu0
      %v1628 = vadd.f32 0.0, %v1627
      %1629 = vdwg.mxu0
      %v1630 = vperm.slane %v1578, 1
      %v1631 = vmul.f32 %v1628, %v1630
      %v1632 = vadd.f32 %v1604, %v1631
      %s1633 = scalar_lea.vmem %s7, 16
      %v1634 = vld [vmem:[%s1633] sm:$0xff]
      %v1636 = vsel %vm1247, %v1634, 0
      %1638 = vmatpush.msra.mxu0 0.0
      %1639 = vmatpush.msra.mxu0 0.0
      %1640 = vmatpush.msra.mxu0 0.0
      %1641 = vmatpush.msra.mxu0 0.0
      %1642 = vmatpush.msra.mxu0 0.0
      %1643 = vmatpush.msra.mxu0 0.0
      %1644 = vmatpush.msra.mxu0 0.0
      %1645 = vmatpush.msra.mxu0 0.0
      %1646 = vmatpush.msra.mxu0 0.0
      %1647 = vmatpush.msra.mxu0 0.0
      %1648 = vmatpush.msra.mxu0 0.0
      %1649 = vmatpush.msra.mxu0 0.0
      %1650 = vmatpush.msra.mxu0 0.0
      %1651 = vmatpush.msra.mxu0 0.0
      %1652 = vmatpush.msra.mxu0 0.0
      %1653 = vmatpush.msra.mxu0 %v1577
      %1654 = vmatmul.f32.gmra.mxu0 %v1636
      %v1655 = vpop.f32.mrf.mxu0
      %v1656 = vadd.f32 0.0, %v1655
      %1657 = vdwg.mxu0
      %v1658 = vperm.slane %v1578, 2
      %v1659 = vmul.f32 %v1656, %v1658
      %v1660 = vadd.f32 %v1632, %v1659
      %s1661 = scalar_lea.vmem %s7, 24
      %v1662 = vld [vmem:[%s1661] sm:$0xff]
      %v1664 = vsel %vm1247, %v1662, 0
      %1666 = vmatpush.msra.mxu0 0.0
      %1667 = vmatpush.msra.mxu0 0.0
      %1668 = vmatpush.msra.mxu0 0.0
      %1669 = vmatpush.msra.mxu0 0.0
      %1670 = vmatpush.msra.mxu0 0.0
      %1671 = vmatpush.msra.mxu0 0.0
      %1672 = vmatpush.msra.mxu0 0.0
      %1673 = vmatpush.msra.mxu0 0.0
      %1674 = vmatpush.msra.mxu0 0.0
      %1675 = vmatpush.msra.mxu0 0.0
      %1676 = vmatpush.msra.mxu0 0.0
      %1677 = vmatpush.msra.mxu0 0.0
      %1678 = vmatpush.msra.mxu0 0.0
      %1679 = vmatpush.msra.mxu0 0.0
      %1680 = vmatpush.msra.mxu0 0.0
      %1681 = vmatpush.msra.mxu0 %v1577
      %1682 = vmatmul.f32.gmra.mxu0 %v1664
      %v1683 = vpop.f32.mrf.mxu0
      %v1684 = vadd.f32 0.0, %v1683
      %1685 = vdwg.mxu0
      %v1686 = vperm.slane %v1578, 3
      %v1687 = vmul.f32 %v1684, %v1686
      %v1688 = vadd.f32 %v1660, %v1687
      %s1689 = scalar_lea.vmem %s7, 32
      %v1690 = vld [vmem:[%s1689] sm:$0xff]
      %v1692 = vsel %vm1247, %v1690, 0
      %1694 = vmatpush.msra.mxu0 0.0
      %1695 = vmatpush.msra.mxu0 0.0
      %1696 = vmatpush.msra.mxu0 0.0
      %1697 = vmatpush.msra.mxu0 0.0
      %1698 = vmatpush.msra.mxu0 0.0
      %1699 = vmatpush.msra.mxu0 0.0
      %1700 = vmatpush.msra.mxu0 0.0
      %1701 = vmatpush.msra.mxu0 0.0
      %1702 = vmatpush.msra.mxu0 0.0
      %1703 = vmatpush.msra.mxu0 0.0
      %1704 = vmatpush.msra.mxu0 0.0
      %1705 = vmatpush.msra.mxu0 0.0
      %1706 = vmatpush.msra.mxu0 0.0
      %1707 = vmatpush.msra.mxu0 0.0
      %1708 = vmatpush.msra.mxu0 0.0
      %1709 = vmatpush.msra.mxu0 %v1577
      %1710 = vmatmul.f32.gmra.mxu0 %v1692
      %v1711 = vpop.f32.mrf.mxu0
      %v1712 = vadd.f32 0.0, %v1711
      %1713 = vdwg.mxu0
      %v1714 = vperm.slane %v1578, 4
      %v1715 = vmul.f32 %v1712, %v1714
      %v1716 = vadd.f32 %v1688, %v1715
      %s1717 = scalar_lea.vmem %s7, 40
      %v1718 = vld [vmem:[%s1717] sm:$0xff]
      %v1720 = vsel %vm1247, %v1718, 0
      %1722 = vmatpush.msra.mxu0 0.0
      %1723 = vmatpush.msra.mxu0 0.0
      %1724 = vmatpush.msra.mxu0 0.0
      %1725 = vmatpush.msra.mxu0 0.0
      %1726 = vmatpush.msra.mxu0 0.0
      %1727 = vmatpush.msra.mxu0 0.0
      %1728 = vmatpush.msra.mxu0 0.0
      %1729 = vmatpush.msra.mxu0 0.0
      %1730 = vmatpush.msra.mxu0 0.0
      %1731 = vmatpush.msra.mxu0 0.0
      %1732 = vmatpush.msra.mxu0 0.0
      %1733 = vmatpush.msra.mxu0 0.0
      %1734 = vmatpush.msra.mxu0 0.0
      %1735 = vmatpush.msra.mxu0 0.0
      %1736 = vmatpush.msra.mxu0 0.0
      %1737 = vmatpush.msra.mxu0 %v1577
      %1738 = vmatmul.f32.gmra.mxu0 %v1720
      %v1739 = vpop.f32.mrf.mxu0
      %v1740 = vadd.f32 0.0, %v1739
      %1741 = vdwg.mxu0
      %v1742 = vperm.slane %v1578, 5
      %v1743 = vmul.f32 %v1740, %v1742
      %v1744 = vadd.f32 %v1716, %v1743
      %s1745 = scalar_lea.vmem %s7, 48
      %v1746 = vld [vmem:[%s1745] sm:$0xff]
      %v1748 = vsel %vm1247, %v1746, 0
      %1750 = vmatpush.msra.mxu0 0.0
      %1751 = vmatpush.msra.mxu0 0.0
      %1752 = vmatpush.msra.mxu0 0.0
      %1753 = vmatpush.msra.mxu0 0.0
      %1754 = vmatpush.msra.mxu0 0.0
      %1755 = vmatpush.msra.mxu0 0.0
      %1756 = vmatpush.msra.mxu0 0.0
      %1757 = vmatpush.msra.mxu0 0.0
      %1758 = vmatpush.msra.mxu0 0.0
      %1759 = vmatpush.msra.mxu0 0.0
      %1760 = vmatpush.msra.mxu0 0.0
      %1761 = vmatpush.msra.mxu0 0.0
      %1762 = vmatpush.msra.mxu0 0.0
      %1763 = vmatpush.msra.mxu0 0.0
      %1764 = vmatpush.msra.mxu0 0.0
      %1765 = vmatpush.msra.mxu0 %v1577
      %1766 = vmatmul.f32.gmra.mxu0 %v1748
      %v1767 = vpop.f32.mrf.mxu0
      %v1768 = vadd.f32 0.0, %v1767
      %1769 = vdwg.mxu0
      %v1770 = vperm.slane %v1578, 6
      %v1771 = vmul.f32 %v1768, %v1770
      %v1772 = vadd.f32 %v1744, %v1771
      %v1773 = vld [vmem:[%s41] sm:$0x1]
      %v1775 = vperm.slane %v1773, 0
      %v1777 = vadd.f32 %v1772, %v1775
      %v1778 = vxor.u32 %v1777, 2147483648
      %v1779 = vmul.f32 %v1778, 1.442695
      %v1780 = vpow.pop %v1779
      %v1781 = vadd.f32 %v1780, 1.0
      %v1782 = vrcp.pop %v1781
      %v1783 = vmul.f32 %v1781, %v1782
      %v1784 = vsub.f32 1.0, %v1783
      %v1785 = vmul.f32 %v1782, %v1784
      %v1786 = vadd.f32 %v1782, %v1785
      %vm1787 = vweird.f32 %v1781
      %vm1788 = vweird.f32 %v1782
      %vm1789 = vmor %vm1787, %vm1788
      %v1790 = vsel %vm1789, %v1782, %v1786
      %v1791 = vand.u32 2147483647, %v1781
      %vm1792 = vcmp.eq.f32.partialorder %v1791, 8.507059e+37
      %v1793 = vand.u32 %v1781, 2147483648
      %v1794 = vor.u32 1.1754944e-38, %v1793
      %v1795 = vsel %vm1792, %v1794, %v1790
      %v1796 = vmul.f32 1.0, %v1795
      %v1797 = vmul.f32 %v1777, %v1796
      %vm1798 = vcmask 523264
      %v1799 = vsel %vm1798, %v1797, 0.0
      %1800 = vadd.xlane.f32.xlu0 %v1799
      %v1801 = vpop.xlane.xlu0 %1800
      %v1802 = vrcp.pop 64.0
      %v1803 = vmul.f32 64.0, %v1802
      %v1804 = vsub.f32 1.0, %v1803
      %v1805 = vmul.f32 %v1802, %v1804
      %v1806 = vadd.f32 %v1802, %v1805
      %vm1807 = vweird.f32 %v1802
      %v1808 = vsel %vm1807, %v1802, %v1806
      %v1809 = vmul.f32 %v1801, %v1808
      %v1810 = vsub.f32 %v1797, %v1809
      %v1811 = vmul.f32 %v1810, %v1810
      %v1812 = vsel %vm1798, %v1811, 0.0
      %1813 = vadd.xlane.f32.xlu0 %v1812
      %v1814 = vpop.xlane.xlu0 %1813
      %v1815 = vmul.f32 %v1814, %v1808
      %v1816 = vmax.f32 %v1815, 1e-06
      %v1817 = vrsqrt.pop %v1816
      %v1818 = vmul.f32 %v1817, %v1816
      %v1819 = vmul.f32 %v1818, %v1817
      %v1820 = vmul.f32 0.5, %v1819
      %v1821 = vsub.f32 1.5, %v1820
      %v1822 = vmul.f32 %v1817, %v1821
      %vm1823 = vweird.f32 %v1816
      %vm1824 = vweird.f32 %v1817
      %vm1825 = vmor %vm1823, %vm1824
      %v1826 = vsel %vm1825, %v1817, %v1822
      %v1827 = vmul.f32 %v1810, %v1826
      %v1828 = vld [vmem:[%s43] sm:$0x1]
      %v1830 = vperm.slane %v1828, 0
      %v1832 = vmul.f32 %v1827, %v1830
      %v1833 = vld [vmem:[%s45] sm:$0xff]
      %v1834 = vld [vmem:[%s45 + $0x8] sm:$0xff]
      %v1835 = vld [vmem:[%s45 + $0x10] sm:$0xff]
      %v1836 = vld [vmem:[%s45 + $0x18] sm:$0xff]
      %v1837 = vld [vmem:[%s45 + $0x20] sm:$0xff]
      %v1838 = vld [vmem:[%s45 + $0x28] sm:$0xff]
      %v1839 = vld [vmem:[%s45 + $0x30] sm:$0xff]
      %v1840 = vld [vmem:[%s45 + $0x38] sm:$0xff]
      %v1841 = vld [vmem:[%s47] sm:$0x1]
      %v1843 = vperm.slane %v1841, 0
      %v1846 = vsel %vm1798, %v1832, 0
      %1848 = vmatpush.msra.mxu0 0.0
      %1849 = vmatpush.msra.mxu0 0.0
      %1850 = vmatpush.msra.mxu0 0.0
      %1851 = vmatpush.msra.mxu0 0.0
      %1852 = vmatpush.msra.mxu0 0.0
      %1853 = vmatpush.msra.mxu0 0.0
      %1854 = vmatpush.msra.mxu0 0.0
      %1855 = vmatpush.msra.mxu0 0.0
      %1856 = vmatpush.msra.mxu0 %v1840
      %1857 = vmatpush.msra.mxu0 %v1839
      %1858 = vmatpush.msra.mxu0 %v1838
      %1859 = vmatpush.msra.mxu0 %v1837
      %1860 = vmatpush.msra.mxu0 %v1836
      %1861 = vmatpush.msra.mxu0 %v1835
      %1862 = vmatpush.msra.mxu0 %v1834
      %1863 = vmatpush.msra.mxu0 %v1833
      %1864 = vmatmul.f32.gmra.mxu0 %v1846
      %v1865 = vpop.f32.mrf.mxu0
      %v1866 = vadd.f32 %v1843, %v1865
      %1867 = vdwg.mxu0
      %v1868 = vadd.f32 %v1490, %v1866
      %v1869 = vld [vmem:[%s49] sm:$0x1]
      %v1870 = vld [vmem:[%s51] sm:$0x1]
      %v1871 = vsel %vm1043, %v1868, 0.0
      %1872 = vadd.xlane.f32.xlu0 %v1871
      %v1873 = vpop.xlane.xlu0 %1872
      %v1874 = vmul.f32 %v1873, %v1053
      %v1875 = vsub.f32 %v1868, %v1874
      %v1876 = vmul.f32 %v1875, %v1875
      %v1877 = vsel %vm1043, %v1876, 0.0
      %1878 = vadd.xlane.f32.xlu0 %v1877
      %v1879 = vpop.xlane.xlu0 %1878
      %v1880 = vmul.f32 %v1879, %v1053
      %v1881 = vadd.f32 %v1880, 1e-05
      %v1882 = vrsqrt.pop %v1881
      %v1883 = vmul.f32 %v1882, %v1881
      %v1884 = vmul.f32 %v1883, %v1882
      %v1885 = vmul.f32 0.5, %v1884
      %v1886 = vsub.f32 1.5, %v1885
      %v1887 = vmul.f32 %v1882, %v1886
      %vm1888 = vweird.f32 %v1881
      %vm1889 = vweird.f32 %v1882
      %vm1890 = vmor %vm1888, %vm1889
      %v1891 = vsel %vm1890, %v1882, %v1887
      %v1892 = vmul.f32 %v1875, %v1891
      %v1894 = vperm.slane %v1869, 0
      %v1896 = vmul.f32 %v1892, %v1894
      %v1898 = vperm.slane %v1870, 0
      %v1900 = vadd.f32 %v1896, %v1898
      %v1901 = vld [vmem:[%s53] sm:$0xff]
      %v1902 = vld [vmem:[%s53 + $0x8] sm:$0xff]
      %v1903 = vld [vmem:[%s53 + $0x10] sm:$0xff]
      %v1904 = vld [vmem:[%s53 + $0x18] sm:$0xff]
      %v1905 = vld [vmem:[%s55] sm:$0x1]
      %v1907 = vperm.slane %v1905, 0
      %v1910 = vsel %vm1043, %v1900, 0
      %1912 = vmatpush.msra.mxu0 0.0
      %1913 = vmatpush.msra.mxu0 0.0
      %1914 = vmatpush.msra.mxu0 0.0
      %1915 = vmatpush.msra.mxu0 0.0
      %1916 = vmatpush.msra.mxu0 0.0
      %1917 = vmatpush.msra.mxu0 0.0
      %1918 = vmatpush.msra.mxu0 0.0
      %1919 = vmatpush.msra.mxu0 0.0
      %1920 = vmatpush.msra.mxu0 0.0
      %1921 = vmatpush.msra.mxu0 0.0
      %1922 = vmatpush.msra.mxu0 0.0
      %1923 = vmatpush.msra.mxu0 0.0
      %1924 = vmatpush.msra.mxu0 %v1904
      %1925 = vmatpush.msra.mxu0 %v1903
      %1926 = vmatpush.msra.mxu0 %v1902
      %1927 = vmatpush.msra.mxu0 %v1901
      %1928 = vmatmul.f32.gmra.mxu0 %v1910
      %v1929 = vpop.f32.mrf.mxu0
      %v1930 = vadd.f32 %v1907, %v1929
      %1931 = vdwg.mxu0
      %v1932 = vxor.u32 %v1930, 2147483648
      %v1933 = vmul.f32 %v1932, 1.442695
      %v1934 = vpow.pop %v1933
      %v1935 = vadd.f32 %v1934, 1.0
      %v1936 = vrcp.pop %v1935
      %v1937 = vmul.f32 %v1935, %v1936
      %v1938 = vsub.f32 1.0, %v1937
      %v1939 = vmul.f32 %v1936, %v1938
      %v1940 = vadd.f32 %v1936, %v1939
      %vm1941 = vweird.f32 %v1935
      %vm1942 = vweird.f32 %v1936
      %vm1943 = vmor %vm1941, %vm1942
      %v1944 = vsel %vm1943, %v1936, %v1940
      %v1945 = vand.u32 2147483647, %v1935
      %vm1946 = vcmp.eq.f32.partialorder %v1945, 8.507059e+37
      %v1947 = vand.u32 %v1935, 2147483648
      %v1948 = vor.u32 1.1754944e-38, %v1947
      %v1949 = vsel %vm1946, %v1948, %v1944
      %v1950 = vmul.f32 1.0, %v1949
      %v1951 = vmul.f32 %v1930, %v1950
      %v1952 = vld [vmem:[%s57] sm:$0xff]
      %v1953 = vld [vmem:[%s57 + $0x8] sm:$0xff]
      %v1954 = vld [vmem:[%s57 + $0x10] sm:$0xff]
      %v1955 = vld [vmem:[%s57 + $0x18] sm:$0xff]
      %v1956 = vld [vmem:[%s57 + $0x20] sm:$0xff]
      %v1957 = vld [vmem:[%s57 + $0x28] sm:$0xff]
      %v1958 = vld [vmem:[%s57 + $0x30] sm:$0xff]
      %v1959 = vld [vmem:[%s57 + $0x38] sm:$0xff]
      %v1960 = vld [vmem:[%s57 + $0x40] sm:$0xff]
      %v1961 = vld [vmem:[%s57 + $0x48] sm:$0xff]
      %v1962 = vld [vmem:[%s57 + $0x50] sm:$0xff]
      %v1963 = vld [vmem:[%s57 + $0x58] sm:$0xff]
      %v1964 = vld [vmem:[%s57 + $0x60] sm:$0xff]
      %v1965 = vld [vmem:[%s57 + $0x68] sm:$0xff]
      %v1966 = vld [vmem:[%s57 + $0x70] sm:$0xff]
      %v1967 = vld [vmem:[%s57 + $0x78] sm:$0xff]
      %v1968 = vld [vmem:[%s59] sm:$0x1]
      %v1970 = vperm.slane %v1968, 0
      %1972 = vmatpush.msra.mxu0 %v1967
      %1973 = vmatpush.msra.mxu0 %v1966
      %1974 = vmatpush.msra.mxu0 %v1965
      %1975 = vmatpush.msra.mxu0 %v1964
      %1976 = vmatpush.msra.mxu0 %v1963
      %1977 = vmatpush.msra.mxu0 %v1962
      %1978 = vmatpush.msra.mxu0 %v1961
      %1979 = vmatpush.msra.mxu0 %v1960
      %1980 = vmatpush.msra.mxu0 %v1959
      %1981 = vmatpush.msra.mxu0 %v1958
      %1982 = vmatpush.msra.mxu0 %v1957
      %1983 = vmatpush.msra.mxu0 %v1956
      %1984 = vmatpush.msra.mxu0 %v1955
      %1985 = vmatpush.msra.mxu0 %v1954
      %1986 = vmatpush.msra.mxu0 %v1953
      %1987 = vmatpush.msra.mxu0 %v1952
      %1988 = vmatmul.f32.gmra.mxu0 %v1951
      %v1989 = vpop.f32.mrf.mxu0
      %v1990 = vadd.f32 %v1970, %v1989
      %1991 = vdwg.mxu0
      %v1992 = vmul.f32 %v1990, 0.5
      %v1993 = vadd.f32 %v1868, %v1992
      %v1994 = vld [vmem:[%s61] sm:$0x1]
      %v1995 = vld [vmem:[%s63] sm:$0x1]
      %v1996 = vsel %vm1043, %v1993, 0.0
      %1997 = vadd.xlane.f32.xlu0 %v1996
      %v1998 = vpop.xlane.xlu0 %1997
      %v1999 = vmul.f32 %v1998, %v1053
      %v2000 = vsub.f32 %v1993, %v1999
      %v2001 = vmul.f32 %v2000, %v2000
      %v2002 = vsel %vm1043, %v2001, 0.0
      %2003 = vadd.xlane.f32.xlu0 %v2002
      %v2004 = vpop.xlane.xlu0 %2003
      %v2005 = vmul.f32 %v2004, %v1053
      %v2006 = vadd.f32 %v2005, 1e-05
      %v2007 = vrsqrt.pop %v2006
      %v2008 = vmul.f32 %v2007, %v2006
      %v2009 = vmul.f32 %v2008, %v2007
      %v2010 = vmul.f32 0.5, %v2009
      %v2011 = vsub.f32 1.5, %v2010
      %v2012 = vmul.f32 %v2007, %v2011
      %vm2013 = vweird.f32 %v2006
      %vm2014 = vweird.f32 %v2007
      %vm2015 = vmor %vm2013, %vm2014
      %v2016 = vsel %vm2015, %v2007, %v2012
      %v2017 = vmul.f32 %v2000, %v2016
      %v2019 = vperm.slane %v1994, 0
      %v2021 = vmul.f32 %v2017, %v2019
      %v2023 = vperm.slane %v1995, 0
      %v2025 = vadd.f32 %v2021, %v2023
      %s2026 = scalar_lea.vmem %s9, 1
      %v2027 = vld [vmem:[%s2026] sm:$0x1]
      %s2028 = scalar_lea.vmem %s11, 1
      %v2029 = vld [vmem:[%s2028] sm:$0x1]
      %v2030 = vsel %vm1043, %v2025, 0.0
      %2031 = vadd.xlane.f32.xlu0 %v2030
      %v2032 = vpop.xlane.xlu0 %2031
      %v2033 = vmul.f32 %v2032, %v1053
      %v2034 = vsub.f32 %v2025, %v2033
      %v2035 = vmul.f32 %v2034, %v2034
      %v2036 = vsel %vm1043, %v2035, 0.0
      %2037 = vadd.xlane.f32.xlu0 %v2036
      %v2038 = vpop.xlane.xlu0 %2037
      %v2039 = vmul.f32 %v2038, %v1053
      %v2040 = vadd.f32 %v2039, 1e-05
      %v2041 = vrsqrt.pop %v2040
      %v2042 = vmul.f32 %v2041, %v2040
      %v2043 = vmul.f32 %v2042, %v2041
      %v2044 = vmul.f32 0.5, %v2043
      %v2045 = vsub.f32 1.5, %v2044
      %v2046 = vmul.f32 %v2041, %v2045
      %vm2047 = vweird.f32 %v2040
      %vm2048 = vweird.f32 %v2041
      %vm2049 = vmor %vm2047, %vm2048
      %v2050 = vsel %vm2049, %v2041, %v2046
      %v2051 = vmul.f32 %v2034, %v2050
      %v2053 = vperm.slane %v2027, 0
      %v2055 = vmul.f32 %v2051, %v2053
      %v2057 = vperm.slane %v2029, 0
      %v2059 = vadd.f32 %v2055, %v2057
      %s2060 = scalar_lea.vmem %s13, 32
      %v2061 = vld [vmem:[%s2060] sm:$0xff]
      %v2062 = vld [vmem:[%s2060 + $0x8] sm:$0xff]
      %v2063 = vld [vmem:[%s2060 + $0x10] sm:$0xff]
      %v2064 = vld [vmem:[%s2060 + $0x18] sm:$0xff]
      %s2065 = scalar_lea.vmem %s15, 1
      %v2066 = vld [vmem:[%s2065] sm:$0x1]
      %v2068 = vperm.slane %v2066, 0
      %v2071 = vsel %vm1043, %v2059, 0
      %2073 = vmatpush.msra.mxu0 0.0
      %2074 = vmatpush.msra.mxu0 0.0
      %2075 = vmatpush.msra.mxu0 0.0
      %2076 = vmatpush.msra.mxu0 0.0
      %2077 = vmatpush.msra.mxu0 0.0
      %2078 = vmatpush.msra.mxu0 0.0
      %2079 = vmatpush.msra.mxu0 0.0
      %2080 = vmatpush.msra.mxu0 0.0
      %2081 = vmatpush.msra.mxu0 0.0
      %2082 = vmatpush.msra.mxu0 0.0
      %2083 = vmatpush.msra.mxu0 0.0
      %2084 = vmatpush.msra.mxu0 0.0
      %2085 = vmatpush.msra.mxu0 %v2064
      %2086 = vmatpush.msra.mxu0 %v2063
      %2087 = vmatpush.msra.mxu0 %v2062
      %2088 = vmatpush.msra.mxu0 %v2061
      %2089 = vmatmul.f32.gmra.mxu0 %v2071
      %v2090 = vpop.f32.mrf.mxu0
      %v2091 = vadd.f32 %v2068, %v2090
      %2092 = vdwg.mxu0
      %v2093 = vxor.u32 %v2091, 2147483648
      %v2094 = vmul.f32 %v2093, 1.442695
      %v2095 = vpow.pop %v2094
      %v2096 = vadd.f32 %v2095, 1.0
      %v2097 = vrcp.pop %v2096
      %v2098 = vmul.f32 %v2096, %v2097
      %v2099 = vsub.f32 1.0, %v2098
      %v2100 = vmul.f32 %v2097, %v2099
      %v2101 = vadd.f32 %v2097, %v2100
      %vm2102 = vweird.f32 %v2096
      %vm2103 = vweird.f32 %v2097
      %vm2104 = vmor %vm2102, %vm2103
      %v2105 = vsel %vm2104, %v2097, %v2101
      %v2106 = vand.u32 2147483647, %v2096
      %vm2107 = vcmp.eq.f32.partialorder %v2106, 8.507059e+37
      %v2108 = vand.u32 %v2096, 2147483648
      %v2109 = vor.u32 1.1754944e-38, %v2108
      %v2110 = vsel %vm2107, %v2109, %v2105
      %v2111 = vmul.f32 1.0, %v2110
      %v2112 = vmul.f32 %v2091, %v2111
      %s2113 = scalar_lea.vmem %s17, 128
      %v2114 = vld [vmem:[%s2113] sm:$0xff]
      %v2115 = vld [vmem:[%s2113 + $0x8] sm:$0xff]
      %v2116 = vld [vmem:[%s2113 + $0x10] sm:$0xff]
      %v2117 = vld [vmem:[%s2113 + $0x18] sm:$0xff]
      %v2118 = vld [vmem:[%s2113 + $0x20] sm:$0xff]
      %v2119 = vld [vmem:[%s2113 + $0x28] sm:$0xff]
      %v2120 = vld [vmem:[%s2113 + $0x30] sm:$0xff]
      %v2121 = vld [vmem:[%s2113 + $0x38] sm:$0xff]
      %v2122 = vld [vmem:[%s2113 + $0x40] sm:$0xff]
      %v2123 = vld [vmem:[%s2113 + $0x48] sm:$0xff]
      %v2124 = vld [vmem:[%s2113 + $0x50] sm:$0xff]
      %v2125 = vld [vmem:[%s2113 + $0x58] sm:$0xff]
      %v2126 = vld [vmem:[%s2113 + $0x60] sm:$0xff]
      %v2127 = vld [vmem:[%s2113 + $0x68] sm:$0xff]
      %v2128 = vld [vmem:[%s2113 + $0x70] sm:$0xff]
      %v2129 = vld [vmem:[%s2113 + $0x78] sm:$0xff]
      %s2130 = scalar_lea.vmem %s19, 1
      %v2131 = vld [vmem:[%s2130] sm:$0x1]
      %v2133 = vperm.slane %v2131, 0
      %2135 = vmatpush.msra.mxu0 %v2129
      %2136 = vmatpush.msra.mxu0 %v2128
      %2137 = vmatpush.msra.mxu0 %v2127
      %2138 = vmatpush.msra.mxu0 %v2126
      %2139 = vmatpush.msra.mxu0 %v2125
      %2140 = vmatpush.msra.mxu0 %v2124
      %2141 = vmatpush.msra.mxu0 %v2123
      %2142 = vmatpush.msra.mxu0 %v2122
      %2143 = vmatpush.msra.mxu0 %v2121
      %2144 = vmatpush.msra.mxu0 %v2120
      %2145 = vmatpush.msra.mxu0 %v2119
      %2146 = vmatpush.msra.mxu0 %v2118
      %2147 = vmatpush.msra.mxu0 %v2117
      %2148 = vmatpush.msra.mxu0 %v2116
      %2149 = vmatpush.msra.mxu0 %v2115
      %2150 = vmatpush.msra.mxu0 %v2114
      %2151 = vmatmul.f32.gmra.mxu0 %v2112
      %v2152 = vpop.f32.mrf.mxu0
      %v2153 = vadd.f32 %v2133, %v2152
      %2154 = vdwg.mxu0
      %v2155 = vmul.f32 %v2153, 0.5
      %v2156 = vadd.f32 %v2025, %v2155
      %s2157 = scalar_lea.vmem %s21, 1
      %v2158 = vld [vmem:[%s2157] sm:$0x1]
      %s2159 = scalar_lea.vmem %s23, 1
      %v2160 = vld [vmem:[%s2159] sm:$0x1]
      %v2161 = vsel %vm1043, %v2156, 0.0
      %2162 = vadd.xlane.f32.xlu0 %v2161
      %v2163 = vpop.xlane.xlu0 %2162
      %v2164 = vmul.f32 %v2163, %v1053
      %v2165 = vsub.f32 %v2156, %v2164
      %v2166 = vmul.f32 %v2165, %v2165
      %v2167 = vsel %vm1043, %v2166, 0.0
      %2168 = vadd.xlane.f32.xlu0 %v2167
      %v2169 = vpop.xlane.xlu0 %2168
      %v2170 = vmul.f32 %v2169, %v1053
      %v2171 = vadd.f32 %v2170, 1e-05
      %v2172 = vrsqrt.pop %v2171
      %v2173 = vmul.f32 %v2172, %v2171
      %v2174 = vmul.f32 %v2173, %v2172
      %v2175 = vmul.f32 0.5, %v2174
      %v2176 = vsub.f32 1.5, %v2175
      %v2177 = vmul.f32 %v2172, %v2176
      %vm2178 = vweird.f32 %v2171
      %vm2179 = vweird.f32 %v2172
      %vm2180 = vmor %vm2178, %vm2179
      %v2181 = vsel %vm2180, %v2172, %v2177
      %v2182 = vmul.f32 %v2165, %v2181
      %v2184 = vperm.slane %v2158, 0
      %v2186 = vmul.f32 %v2182, %v2184
      %v2188 = vperm.slane %v2160, 0
      %v2190 = vadd.f32 %v2186, %v2188
      %s2191 = scalar_lea.vmem %s25, 32
      %v2192 = vld [vmem:[%s2191] sm:$0xff]
      %v2193 = vld [vmem:[%s2191 + $0x8] sm:$0xff]
      %v2194 = vld [vmem:[%s2191 + $0x10] sm:$0xff]
      %v2195 = vld [vmem:[%s2191 + $0x18] sm:$0xff]
      %v2197 = vsel %vm1043, %v2190, 0
      %2199 = vmatpush.msra.mxu0 0.0
      %2200 = vmatpush.msra.mxu0 0.0
      %2201 = vmatpush.msra.mxu0 0.0
      %2202 = vmatpush.msra.mxu0 0.0
      %2203 = vmatpush.msra.mxu0 0.0
      %2204 = vmatpush.msra.mxu0 0.0
      %2205 = vmatpush.msra.mxu0 0.0
      %2206 = vmatpush.msra.mxu0 0.0
      %2207 = vmatpush.msra.mxu0 0.0
      %2208 = vmatpush.msra.mxu0 0.0
      %2209 = vmatpush.msra.mxu0 0.0
      %2210 = vmatpush.msra.mxu0 0.0
      %2211 = vmatpush.msra.mxu0 %v2195
      %2212 = vmatpush.msra.mxu0 %v2194
      %2213 = vmatpush.msra.mxu0 %v2193
      %2214 = vmatpush.msra.mxu0 %v2192
      %2215 = vmatmul.f32.gmra.mxu0 %v2197
      %v2216 = vpop.f32.mrf.mxu0
      %v2217 = vadd.f32 0.0, %v2216
      %2218 = vdwg.mxu0
      %s2219 = scalar_lea.vmem %s27, 32
      %v2220 = vld [vmem:[%s2219] sm:$0xff]
      %v2221 = vld [vmem:[%s2219 + $0x8] sm:$0xff]
      %v2222 = vld [vmem:[%s2219 + $0x10] sm:$0xff]
      %v2223 = vld [vmem:[%s2219 + $0x18] sm:$0xff]
      %s2224 = scalar_lea.vmem %s29, 1
      %v2225 = vld [vmem:[%s2224] sm:$0x1]
      %v2226 = vxor.u32 %v2217, 2147483648
      %v2227 = vmul.f32 %v2226, 1.442695
      %v2228 = vpow.pop %v2227
      %v2229 = vadd.f32 %v2228, 1.0
      %v2230 = vrcp.pop %v2229
      %v2231 = vmul.f32 %v2229, %v2230
      %v2232 = vsub.f32 1.0, %v2231
      %v2233 = vmul.f32 %v2230, %v2232
      %v2234 = vadd.f32 %v2230, %v2233
      %vm2235 = vweird.f32 %v2229
      %vm2236 = vweird.f32 %v2230
      %vm2237 = vmor %vm2235, %vm2236
      %v2238 = vsel %vm2237, %v2230, %v2234
      %v2239 = vand.u32 2147483647, %v2229
      %vm2240 = vcmp.eq.f32.partialorder %v2239, 8.507059e+37
      %v2241 = vand.u32 %v2229, 2147483648
      %v2242 = vor.u32 1.1754944e-38, %v2241
      %v2243 = vsel %vm2240, %v2242, %v2238
      %v2244 = vmul.f32 1.0, %v2243
      %v2245 = vsub.f32 %v1231, %v2217
      %2247 = vrot.lane.b32.xlu0 %v2245, 32
      %v2248 = vpop.permute.xlu0 %2247
      %v2250 = vmul.f32 %v2244, %v2248
      %2252 = vrot.lane.b32.xlu0 %v2250, 96
      %v2253 = vpop.permute.xlu0 %2252
      %v2255 = vadd.f32 %v2217, %v2253
      %v2256 = vsub.f32 0.0, %v2217
      %2258 = vrot.lane.b32.xlu0 %v2256, 120
      %v2259 = vpop.permute.xlu0 %2258
      %2262 = vrot.lane.b32.xlu0 %v2217, 8
      %v2263 = vpop.permute.xlu0 %2262
      %v2265 = vsel %vm1247, %v2259, %v2263
      %v2266 = vmul.f32 %v2217, %v1039
      %v2267 = vmul.f32 %v2265, %v1040
      %v2268 = vadd.f32 %v2266, %v2267
      %2269 = vrot.lane.b32.xlu0 %v2256, 88
      %v2270 = vpop.permute.xlu0 %2269
      %2272 = vrot.lane.b32.xlu0 %v2217, 104
      %v2273 = vpop.permute.xlu0 %2272
      %v2275 = vsel %vm1247, %v2270, %v2273
      %v2276 = vmul.f32 %v2217, %v1261
      %v2277 = vmul.f32 %v2275, %v1040
      %2279 = vrot.lane.b32.xlu0 %v2277, 32
      %v2280 = vpop.permute.xlu0 %2279
      %v2282 = vadd.f32 %v2276, %v2280
      %2284 = vrot.lane.b32.xlu0 %v2282, 96
      %v2285 = vpop.permute.xlu0 %2284
      %v2287 = vsel %vm1273, %v2268, 0
      %v2289 = vsel %vm1273, %v2285, 0
      %2291 = vmatpush.xpose.msra.mxu0 0.0
      %2292 = vmatpush.xpose.msra.mxu0 0.0
      %2293 = vmatpush.xpose.msra.mxu0 0.0
      %2294 = vmatpush.xpose.msra.mxu0 0.0
      %2295 = vmatpush.xpose.msra.mxu0 0.0
      %2296 = vmatpush.xpose.msra.mxu0 0.0
      %2297 = vmatpush.xpose.msra.mxu0 0.0
      %2298 = vmatpush.xpose.msra.mxu0 0.0
      %2299 = vmatpush.xpose.msra.mxu0 0.0
      %2300 = vmatpush.xpose.msra.mxu0 0.0
      %2301 = vmatpush.xpose.msra.mxu0 0.0
      %2302 = vmatpush.xpose.msra.mxu0 0.0
      %2303 = vmatpush.xpose.msra.mxu0 0.0
      %2304 = vmatpush.xpose.msra.mxu0 0.0
      %2305 = vmatpush.xpose.msra.mxu0 0.0
      %2306 = vmatpush.xpose.msra.mxu0 %v2289
      %2307 = vmatmul.f32.gmra.mxu0 %v2287
      %v2308 = vpop.f32.mrf.mxu0
      %v2309 = vadd.f32 0.0, %v2308
      %2310 = vdwg.mxu0
      %v2311 = vmul.f32 %v2309, 0.25
      %v2312 = vsel %vm1247, %v2311, -inf
      %2313 = vmax.xlane.f32.xlu0 %v2312
      %v2314 = vpop.xlane.xlu0 %2313
      %v2315 = vsub.f32 %v2311, %v2314
      %v2316 = vmul.f32 %v2315, 1.442695
      %v2317 = vpow.pop %v2316
      %v2318 = vsel %vm1247, %v2317, 0.0
      %2319 = vadd.xlane.f32.xlu0 %v2318
      %v2320 = vpop.xlane.xlu0 %2319
      %v2321 = vrcp.pop %v2320
      %v2322 = vmul.f32 %v2317, %v2321
      %2324 = vrot.lane.b32.xlu0 %v2255, 64
      %v2325 = vpop.permute.xlu0 %2324
      %v2328 = vsel %vm1247, %v2322, 0
      %2330 = vmatpush.msra.mxu0 0.0
      %2331 = vmatpush.msra.mxu0 0.0
      %2332 = vmatpush.msra.mxu0 0.0
      %2333 = vmatpush.msra.mxu0 0.0
      %2334 = vmatpush.msra.mxu0 0.0
      %2335 = vmatpush.msra.mxu0 0.0
      %2336 = vmatpush.msra.mxu0 0.0
      %2337 = vmatpush.msra.mxu0 0.0
      %2338 = vmatpush.msra.mxu0 0.0
      %2339 = vmatpush.msra.mxu0 0.0
      %2340 = vmatpush.msra.mxu0 0.0
      %2341 = vmatpush.msra.mxu0 0.0
      %2342 = vmatpush.msra.mxu0 0.0
      %2343 = vmatpush.msra.mxu0 0.0
      %2344 = vmatpush.msra.mxu0 0.0
      %2345 = vmatpush.msra.mxu0 %v2325
      %2346 = vmatmul.f32.gmra.mxu0 %v2328
      %v2347 = vpop.f32.mrf.mxu0
      %v2348 = vadd.f32 0.0, %v2347
      %2349 = vdwg.mxu0
      %v2351 = vsel %vm1273, %v2348, 0
      %2353 = vmatpush.msra.mxu0 0.0
      %2354 = vmatpush.msra.mxu0 0.0
      %2355 = vmatpush.msra.mxu0 0.0
      %2356 = vmatpush.msra.mxu0 0.0
      %2357 = vmatpush.msra.mxu0 0.0
      %2358 = vmatpush.msra.mxu0 0.0
      %2359 = vmatpush.msra.mxu0 0.0
      %2360 = vmatpush.msra.mxu0 0.0
      %2361 = vmatpush.msra.mxu0 0.0
      %2362 = vmatpush.msra.mxu0 0.0
      %2363 = vmatpush.msra.mxu0 0.0
      %2364 = vmatpush.msra.mxu0 0.0
      %2365 = vmatpush.msra.mxu0 0.0
      %2366 = vmatpush.msra.mxu0 0.0
      %2367 = vmatpush.msra.mxu0 %v2221
      %2368 = vmatpush.msra.mxu0 %v2220
      %2369 = vmatmul.f32.gmra.mxu0 %v2351
      %v2370 = vpop.f32.mrf.mxu0
      %v2371 = vadd.f32 0.0, %v2370
      %2372 = vdwg.mxu0
      %v2374 = vperm.slane %v2225, 0
      %v2376 = vadd.f32 %v2374, %v2371
      %2377 = vrot.lane.b32.xlu0 %v2256, 104
      %v2378 = vpop.permute.xlu0 %2377
      %2380 = vrot.lane.b32.xlu0 %v2217, 120
      %v2381 = vpop.permute.xlu0 %2380
      %v2383 = vsel %vm1247, %v2378, %v2381
      %v2384 = vmul.f32 %v2217, %v1372
      %v2385 = vmul.f32 %v2383, %v1040
      %2387 = vrot.lane.b32.xlu0 %v2385, 16
      %v2388 = vpop.permute.xlu0 %2387
      %v2390 = vadd.f32 %v2384, %v2388
      %2391 = vrot.lane.b32.xlu0 %v2256, 72
      %v2392 = vpop.permute.xlu0 %2391
      %2394 = vrot.lane.b32.xlu0 %v2217, 88
      %v2395 = vpop.permute.xlu0 %2394
      %v2397 = vsel %vm1247, %v2392, %v2395
      %v2398 = vmul.f32 %v2217, %v1389
      %v2399 = vmul.f32 %v2397, %v1040
      %2401 = vrot.lane.b32.xlu0 %v2399, 48
      %v2402 = vpop.permute.xlu0 %2401
      %v2404 = vadd.f32 %v2398, %v2402
      %2406 = vrot.lane.b32.xlu0 %v2390, 112
      %v2407 = vpop.permute.xlu0 %2406
      %2409 = vrot.lane.b32.xlu0 %v2404, 80
      %v2410 = vpop.permute.xlu0 %2409
      %v2411 = vsel %vm1273, %v2407, 0
      %v2413 = vsel %vm1273, %v2410, 0
      %2415 = vmatpush.xpose.msra.mxu0 0.0
      %2416 = vmatpush.xpose.msra.mxu0 0.0
      %2417 = vmatpush.xpose.msra.mxu0 0.0
      %2418 = vmatpush.xpose.msra.mxu0 0.0
      %2419 = vmatpush.xpose.msra.mxu0 0.0
      %2420 = vmatpush.xpose.msra.mxu0 0.0
      %2421 = vmatpush.xpose.msra.mxu0 0.0
      %2422 = vmatpush.xpose.msra.mxu0 0.0
      %2423 = vmatpush.xpose.msra.mxu0 0.0
      %2424 = vmatpush.xpose.msra.mxu0 0.0
      %2425 = vmatpush.xpose.msra.mxu0 0.0
      %2426 = vmatpush.xpose.msra.mxu0 0.0
      %2427 = vmatpush.xpose.msra.mxu0 0.0
      %2428 = vmatpush.xpose.msra.mxu0 0.0
      %2429 = vmatpush.xpose.msra.mxu0 0.0
      %2430 = vmatpush.xpose.msra.mxu0 %v2413
      %2431 = vmatmul.f32.gmra.mxu0 %v2411
      %v2432 = vpop.f32.mrf.mxu0
      %v2433 = vadd.f32 0.0, %v2432
      %2434 = vdwg.mxu0
      %v2435 = vmul.f32 %v2433, 0.25
      %v2436 = vsel %vm1247, %v2435, -inf
      %2437 = vmax.xlane.f32.xlu0 %v2436
      %v2438 = vpop.xlane.xlu0 %2437
      %v2439 = vsub.f32 %v2435, %v2438
      %v2440 = vmul.f32 %v2439, 1.442695
      %v2441 = vpow.pop %v2440
      %v2442 = vsel %vm1247, %v2441, 0.0
      %2443 = vadd.xlane.f32.xlu0 %v2442
      %v2444 = vpop.xlane.xlu0 %2443
      %v2445 = vrcp.pop %v2444
      %v2446 = vmul.f32 %v2441, %v2445
      %2447 = vrot.lane.b32.xlu0 %v2255, 48
      %v2448 = vpop.permute.xlu0 %2447
      %v2451 = vsel %vm1247, %v2446, 0
      %2453 = vmatpush.msra.mxu0 0.0
      %2454 = vmatpush.msra.mxu0 0.0
      %2455 = vmatpush.msra.mxu0 0.0
      %2456 = vmatpush.msra.mxu0 0.0
      %2457 = vmatpush.msra.mxu0 0.0
      %2458 = vmatpush.msra.mxu0 0.0
      %2459 = vmatpush.msra.mxu0 0.0
      %2460 = vmatpush.msra.mxu0 0.0
      %2461 = vmatpush.msra.mxu0 0.0
      %2462 = vmatpush.msra.mxu0 0.0
      %2463 = vmatpush.msra.mxu0 0.0
      %2464 = vmatpush.msra.mxu0 0.0
      %2465 = vmatpush.msra.mxu0 0.0
      %2466 = vmatpush.msra.mxu0 0.0
      %2467 = vmatpush.msra.mxu0 0.0
      %2468 = vmatpush.msra.mxu0 %v2448
      %2469 = vmatmul.f32.gmra.mxu0 %v2451
      %v2470 = vpop.f32.mrf.mxu0
      %v2471 = vadd.f32 0.0, %v2470
      %2472 = vdwg.mxu0
      %v2474 = vsel %vm1273, %v2471, 0
      %2476 = vmatpush.msra.mxu0 0.0
      %2477 = vmatpush.msra.mxu0 0.0
      %2478 = vmatpush.msra.mxu0 0.0
      %2479 = vmatpush.msra.mxu0 0.0
      %2480 = vmatpush.msra.mxu0 0.0
      %2481 = vmatpush.msra.mxu0 0.0
      %2482 = vmatpush.msra.mxu0 0.0
      %2483 = vmatpush.msra.mxu0 0.0
      %2484 = vmatpush.msra.mxu0 0.0
      %2485 = vmatpush.msra.mxu0 0.0
      %2486 = vmatpush.msra.mxu0 0.0
      %2487 = vmatpush.msra.mxu0 0.0
      %2488 = vmatpush.msra.mxu0 0.0
      %2489 = vmatpush.msra.mxu0 0.0
      %2490 = vmatpush.msra.mxu0 %v2223
      %2491 = vmatpush.msra.mxu0 %v2222
      %2492 = vmatmul.f32.gmra.mxu0 %v2474
      %v2493 = vpop.f32.mrf.mxu0
      %v2494 = vadd.f32 0.0, %v2493
      %2495 = vdwg.mxu0
      %v2496 = vadd.f32 %v2376, %v2494
      %v2497 = vadd.f32 %v2156, %v2496
      %s2498 = scalar_lea.vmem %s31, 1
      %v2499 = vld [vmem:[%s2498] sm:$0x1]
      %s2500 = scalar_lea.vmem %s33, 1
      %v2501 = vld [vmem:[%s2500] sm:$0x1]
      %v2502 = vsel %vm1043, %v2497, 0.0
      %2503 = vadd.xlane.f32.xlu0 %v2502
      %v2504 = vpop.xlane.xlu0 %2503
      %v2505 = vmul.f32 %v2504, %v1053
      %v2506 = vsub.f32 %v2497, %v2505
      %v2507 = vmul.f32 %v2506, %v2506
      %v2508 = vsel %vm1043, %v2507, 0.0
      %2509 = vadd.xlane.f32.xlu0 %v2508
      %v2510 = vpop.xlane.xlu0 %2509
      %v2511 = vmul.f32 %v2510, %v1053
      %v2512 = vadd.f32 %v2511, 1e-05
      %v2513 = vrsqrt.pop %v2512
      %v2514 = vmul.f32 %v2513, %v2512
      %v2515 = vmul.f32 %v2514, %v2513
      %v2516 = vmul.f32 0.5, %v2515
      %v2517 = vsub.f32 1.5, %v2516
      %v2518 = vmul.f32 %v2513, %v2517
      %vm2519 = vweird.f32 %v2512
      %vm2520 = vweird.f32 %v2513
      %vm2521 = vmor %vm2519, %vm2520
      %v2522 = vsel %vm2521, %v2513, %v2518
      %v2523 = vmul.f32 %v2506, %v2522
      %v2525 = vperm.slane %v2499, 0
      %v2527 = vmul.f32 %v2523, %v2525
      %v2529 = vperm.slane %v2501, 0
      %v2531 = vadd.f32 %v2527, %v2529
      %s2532 = scalar_lea.vmem %s35, 32
      %v2533 = vld [vmem:[%s2532] sm:$0xff]
      %v2534 = vld [vmem:[%s2532 + $0x8] sm:$0xff]
      %v2535 = vld [vmem:[%s2532 + $0x10] sm:$0xff]
      %v2536 = vld [vmem:[%s2532 + $0x18] sm:$0xff]
      %s2537 = scalar_lea.vmem %s37, 1
      %v2538 = vld [vmem:[%s2537] sm:$0x1]
      %v2540 = vperm.slane %v2538, 0
      %v2543 = vsel %vm1043, %v2531, 0
      %2545 = vmatpush.msra.mxu0 0.0
      %2546 = vmatpush.msra.mxu0 0.0
      %2547 = vmatpush.msra.mxu0 0.0
      %2548 = vmatpush.msra.mxu0 0.0
      %2549 = vmatpush.msra.mxu0 0.0
      %2550 = vmatpush.msra.mxu0 0.0
      %2551 = vmatpush.msra.mxu0 0.0
      %2552 = vmatpush.msra.mxu0 0.0
      %2553 = vmatpush.msra.mxu0 0.0
      %2554 = vmatpush.msra.mxu0 0.0
      %2555 = vmatpush.msra.mxu0 0.0
      %2556 = vmatpush.msra.mxu0 0.0
      %2557 = vmatpush.msra.mxu0 %v2536
      %2558 = vmatpush.msra.mxu0 %v2535
      %2559 = vmatpush.msra.mxu0 %v2534
      %2560 = vmatpush.msra.mxu0 %v2533
      %2561 = vmatmul.f32.gmra.mxu0 %v2543
      %v2562 = vpop.f32.mrf.mxu0
      %v2563 = vadd.f32 %v2540, %v2562
      %2564 = vdwg.mxu0
      %v2565 = vxor.u32 %v2563, 2147483648
      %v2566 = vmul.f32 %v2565, 1.442695
      %v2567 = vpow.pop %v2566
      %v2568 = vadd.f32 %v2567, 1.0
      %v2569 = vrcp.pop %v2568
      %v2570 = vmul.f32 %v2568, %v2569
      %v2571 = vsub.f32 1.0, %v2570
      %v2572 = vmul.f32 %v2569, %v2571
      %v2573 = vadd.f32 %v2569, %v2572
      %vm2574 = vweird.f32 %v2568
      %vm2575 = vweird.f32 %v2569
      %vm2576 = vmor %vm2574, %vm2575
      %v2577 = vsel %vm2576, %v2569, %v2573
      %v2578 = vand.u32 2147483647, %v2568
      %vm2579 = vcmp.eq.f32.partialorder %v2578, 8.507059e+37
      %v2580 = vand.u32 %v2568, 2147483648
      %v2581 = vor.u32 1.1754944e-38, %v2580
      %v2582 = vsel %vm2579, %v2581, %v2577
      %v2583 = vmul.f32 1.0, %v2582
      %2585 = vrot.lane.b32.xlu0 %v2583, 64
      %v2586 = vpop.permute.xlu0 %2585
      %v2588 = vmul.f32 %v2563, %v2586
      %s2589 = scalar_lea.vmem %s39, 8
      %v2590 = vld [vmem:[%s2589] sm:$0x7f]
      %2591 = vmatpush.msra.mxu0 0.0
      %2592 = vmatpush.msra.mxu0 0.0
      %2593 = vmatpush.msra.mxu0 0.0
      %2594 = vmatpush.msra.mxu0 0.0
      %2595 = vmatpush.msra.mxu0 0.0
      %2596 = vmatpush.msra.mxu0 0.0
      %2597 = vmatpush.msra.mxu0 0.0
      %2598 = vmatpush.msra.mxu0 0.0
      %2599 = vmatpush.msra.mxu0 0.0
      %2600 = vmatpush.msra.mxu0 0.0
      %2601 = vmatpush.msra.mxu0 0.0
      %2602 = vmatpush.msra.mxu0 0.0
      %2603 = vmatpush.msra.mxu0 0.0
      %2604 = vmatpush.msra.mxu0 0.0
      %2605 = vmatpush.msra.mxu0 0.0
      %2606 = vmatpush.msra.mxu0 %v2588
      %2607 = vmatmul.f32.gmra.mxu0 %v1581
      %v2608 = vpop.f32.mrf.mxu0
      %v2609 = vadd.f32 0.0, %v2608
      %2610 = vdwg.mxu0
      %v2611 = vperm.slane %v2590, 0
      %v2612 = vmul.f32 %v2609, %v2611
      %2613 = vmatpush.msra.mxu0 0.0
      %2614 = vmatpush.msra.mxu0 0.0
      %2615 = vmatpush.msra.mxu0 0.0
      %2616 = vmatpush.msra.mxu0 0.0
      %2617 = vmatpush.msra.mxu0 0.0
      %2618 = vmatpush.msra.mxu0 0.0
      %2619 = vmatpush.msra.mxu0 0.0
      %2620 = vmatpush.msra.mxu0 0.0
      %2621 = vmatpush.msra.mxu0 0.0
      %2622 = vmatpush.msra.mxu0 0.0
      %2623 = vmatpush.msra.mxu0 0.0
      %2624 = vmatpush.msra.mxu0 0.0
      %2625 = vmatpush.msra.mxu0 0.0
      %2626 = vmatpush.msra.mxu0 0.0
      %2627 = vmatpush.msra.mxu0 0.0
      %2628 = vmatpush.msra.mxu0 %v2588
      %2629 = vmatmul.f32.gmra.mxu0 %v1608
      %v2630 = vpop.f32.mrf.mxu0
      %v2631 = vadd.f32 0.0, %v2630
      %2632 = vdwg.mxu0
      %v2633 = vperm.slane %v2590, 1
      %v2634 = vmul.f32 %v2631, %v2633
      %v2635 = vadd.f32 %v2612, %v2634
      %2636 = vmatpush.msra.mxu0 0.0
      %2637 = vmatpush.msra.mxu0 0.0
      %2638 = vmatpush.msra.mxu0 0.0
      %2639 = vmatpush.msra.mxu0 0.0
      %2640 = vmatpush.msra.mxu0 0.0
      %2641 = vmatpush.msra.mxu0 0.0
      %2642 = vmatpush.msra.mxu0 0.0
      %2643 = vmatpush.msra.mxu0 0.0
      %2644 = vmatpush.msra.mxu0 0.0
      %2645 = vmatpush.msra.mxu0 0.0
      %2646 = vmatpush.msra.mxu0 0.0
      %2647 = vmatpush.msra.mxu0 0.0
      %2648 = vmatpush.msra.mxu0 0.0
      %2649 = vmatpush.msra.mxu0 0.0
      %2650 = vmatpush.msra.mxu0 0.0
      %2651 = vmatpush.msra.mxu0 %v2588
      %2652 = vmatmul.f32.gmra.mxu0 %v1636
      %v2653 = vpop.f32.mrf.mxu0
      %v2654 = vadd.f32 0.0, %v2653
      %2655 = vdwg.mxu0
      %v2656 = vperm.slane %v2590, 2
      %v2657 = vmul.f32 %v2654, %v2656
      %v2658 = vadd.f32 %v2635, %v2657
      %2659 = vmatpush.msra.mxu0 0.0
      %2660 = vmatpush.msra.mxu0 0.0
      %2661 = vmatpush.msra.mxu0 0.0
      %2662 = vmatpush.msra.mxu0 0.0
      %2663 = vmatpush.msra.mxu0 0.0
      %2664 = vmatpush.msra.mxu0 0.0
      %2665 = vmatpush.msra.mxu0 0.0
      %2666 = vmatpush.msra.mxu0 0.0
      %2667 = vmatpush.msra.mxu0 0.0
      %2668 = vmatpush.msra.mxu0 0.0
      %2669 = vmatpush.msra.mxu0 0.0
      %2670 = vmatpush.msra.mxu0 0.0
      %2671 = vmatpush.msra.mxu0 0.0
      %2672 = vmatpush.msra.mxu0 0.0
      %2673 = vmatpush.msra.mxu0 0.0
      %2674 = vmatpush.msra.mxu0 %v2588
      %2675 = vmatmul.f32.gmra.mxu0 %v1664
      %v2676 = vpop.f32.mrf.mxu0
      %v2677 = vadd.f32 0.0, %v2676
      %2678 = vdwg.mxu0
      %v2679 = vperm.slane %v2590, 3
      %v2680 = vmul.f32 %v2677, %v2679
      %v2681 = vadd.f32 %v2658, %v2680
      %2682 = vmatpush.msra.mxu0 0.0
      %2683 = vmatpush.msra.mxu0 0.0
      %2684 = vmatpush.msra.mxu0 0.0
      %2685 = vmatpush.msra.mxu0 0.0
      %2686 = vmatpush.msra.mxu0 0.0
      %2687 = vmatpush.msra.mxu0 0.0
      %2688 = vmatpush.msra.mxu0 0.0
      %2689 = vmatpush.msra.mxu0 0.0
      %2690 = vmatpush.msra.mxu0 0.0
      %2691 = vmatpush.msra.mxu0 0.0
      %2692 = vmatpush.msra.mxu0 0.0
      %2693 = vmatpush.msra.mxu0 0.0
      %2694 = vmatpush.msra.mxu0 0.0
      %2695 = vmatpush.msra.mxu0 0.0
      %2696 = vmatpush.msra.mxu0 0.0
      %2697 = vmatpush.msra.mxu0 %v2588
      %2698 = vmatmul.f32.gmra.mxu0 %v1692
      %v2699 = vpop.f32.mrf.mxu0
      %v2700 = vadd.f32 0.0, %v2699
      %2701 = vdwg.mxu0
      %v2702 = vperm.slane %v2590, 4
      %v2703 = vmul.f32 %v2700, %v2702
      %v2704 = vadd.f32 %v2681, %v2703
      %2705 = vmatpush.msra.mxu0 0.0
      %2706 = vmatpush.msra.mxu0 0.0
      %2707 = vmatpush.msra.mxu0 0.0
      %2708 = vmatpush.msra.mxu0 0.0
      %2709 = vmatpush.msra.mxu0 0.0
      %2710 = vmatpush.msra.mxu0 0.0
      %2711 = vmatpush.msra.mxu0 0.0
      %2712 = vmatpush.msra.mxu0 0.0
      %2713 = vmatpush.msra.mxu0 0.0
      %2714 = vmatpush.msra.mxu0 0.0
      %2715 = vmatpush.msra.mxu0 0.0
      %2716 = vmatpush.msra.mxu0 0.0
      %2717 = vmatpush.msra.mxu0 0.0
      %2718 = vmatpush.msra.mxu0 0.0
      %2719 = vmatpush.msra.mxu0 0.0
      %2720 = vmatpush.msra.mxu0 %v2588
      %2721 = vmatmul.f32.gmra.mxu0 %v1720
      %v2722 = vpop.f32.mrf.mxu0
      %v2723 = vadd.f32 0.0, %v2722
      %2724 = vdwg.mxu0
      %v2725 = vperm.slane %v2590, 5
      %v2726 = vmul.f32 %v2723, %v2725
      %v2727 = vadd.f32 %v2704, %v2726
      %2728 = vmatpush.msra.mxu0 0.0
      %2729 = vmatpush.msra.mxu0 0.0
      %2730 = vmatpush.msra.mxu0 0.0
      %2731 = vmatpush.msra.mxu0 0.0
      %2732 = vmatpush.msra.mxu0 0.0
      %2733 = vmatpush.msra.mxu0 0.0
      %2734 = vmatpush.msra.mxu0 0.0
      %2735 = vmatpush.msra.mxu0 0.0
      %2736 = vmatpush.msra.mxu0 0.0
      %2737 = vmatpush.msra.mxu0 0.0
      %2738 = vmatpush.msra.mxu0 0.0
      %2739 = vmatpush.msra.mxu0 0.0
      %2740 = vmatpush.msra.mxu0 0.0
      %2741 = vmatpush.msra.mxu0 0.0
      %2742 = vmatpush.msra.mxu0 0.0
      %2743 = vmatpush.msra.mxu0 %v2588
      %2744 = vmatmul.f32.gmra.mxu0 %v1748
      %v2745 = vpop.f32.mrf.mxu0
      %v2746 = vadd.f32 0.0, %v2745
      %2747 = vdwg.mxu0
      %v2748 = vperm.slane %v2590, 6
      %v2749 = vmul.f32 %v2746, %v2748
      %v2750 = vadd.f32 %v2727, %v2749
      %s2751 = scalar_lea.vmem %s41, 1
      %v2752 = vld [vmem:[%s2751] sm:$0x1]
      %v2754 = vperm.slane %v2752, 0
      %v2756 = vadd.f32 %v2750, %v2754
      %v2757 = vxor.u32 %v2756, 2147483648
      %v2758 = vmul.f32 %v2757, 1.442695
      %v2759 = vpow.pop %v2758
      %v2760 = vadd.f32 %v2759, 1.0
      %v2761 = vrcp.pop %v2760
      %v2762 = vmul.f32 %v2760, %v2761
      %v2763 = vsub.f32 1.0, %v2762
      %v2764 = vmul.f32 %v2761, %v2763
      %v2765 = vadd.f32 %v2761, %v2764
      %vm2766 = vweird.f32 %v2760
      %vm2767 = vweird.f32 %v2761
      %vm2768 = vmor %vm2766, %vm2767
      %v2769 = vsel %vm2768, %v2761, %v2765
      %v2770 = vand.u32 2147483647, %v2760
      %vm2771 = vcmp.eq.f32.partialorder %v2770, 8.507059e+37
      %v2772 = vand.u32 %v2760, 2147483648
      %v2773 = vor.u32 1.1754944e-38, %v2772
      %v2774 = vsel %vm2771, %v2773, %v2769
      %v2775 = vmul.f32 1.0, %v2774
      %v2776 = vmul.f32 %v2756, %v2775
      %v2777 = vsel %vm1798, %v2776, 0.0
      %2778 = vadd.xlane.f32.xlu0 %v2777
      %v2779 = vpop.xlane.xlu0 %2778
      %v2780 = vmul.f32 %v2779, %v1808
      %v2781 = vsub.f32 %v2776, %v2780
      %v2782 = vmul.f32 %v2781, %v2781
      %v2783 = vsel %vm1798, %v2782, 0.0
      %2784 = vadd.xlane.f32.xlu0 %v2783
      %v2785 = vpop.xlane.xlu0 %2784
      %v2786 = vmul.f32 %v2785, %v1808
      %v2787 = vmax.f32 %v2786, 1e-06
      %v2788 = vrsqrt.pop %v2787
      %v2789 = vmul.f32 %v2788, %v2787
      %v2790 = vmul.f32 %v2789, %v2788
      %v2791 = vmul.f32 0.5, %v2790
      %v2792 = vsub.f32 1.5, %v2791
      %v2793 = vmul.f32 %v2788, %v2792
      %vm2794 = vweird.f32 %v2787
      %vm2795 = vweird.f32 %v2788
      %vm2796 = vmor %vm2794, %vm2795
      %v2797 = vsel %vm2796, %v2788, %v2793
      %v2798 = vmul.f32 %v2781, %v2797
      %s2799 = scalar_lea.vmem %s43, 1
      %v2800 = vld [vmem:[%s2799] sm:$0x1]
      %v2802 = vperm.slane %v2800, 0
      %v2804 = vmul.f32 %v2798, %v2802
      %s2805 = scalar_lea.vmem %s45, 64
      %v2806 = vld [vmem:[%s2805] sm:$0xff]
      %v2807 = vld [vmem:[%s2805 + $0x8] sm:$0xff]
      %v2808 = vld [vmem:[%s2805 + $0x10] sm:$0xff]
      %v2809 = vld [vmem:[%s2805 + $0x18] sm:$0xff]
      %v2810 = vld [vmem:[%s2805 + $0x20] sm:$0xff]
      %v2811 = vld [vmem:[%s2805 + $0x28] sm:$0xff]
      %v2812 = vld [vmem:[%s2805 + $0x30] sm:$0xff]
      %v2813 = vld [vmem:[%s2805 + $0x38] sm:$0xff]
      %s2814 = scalar_lea.vmem %s47, 1
      %v2815 = vld [vmem:[%s2814] sm:$0x1]
      %v2817 = vperm.slane %v2815, 0
      %v2820 = vsel %vm1798, %v2804, 0
      %2822 = vmatpush.msra.mxu0 0.0
      %2823 = vmatpush.msra.mxu0 0.0
      %2824 = vmatpush.msra.mxu0 0.0
      %2825 = vmatpush.msra.mxu0 0.0
      %2826 = vmatpush.msra.mxu0 0.0
      %2827 = vmatpush.msra.mxu0 0.0
      %2828 = vmatpush.msra.mxu0 0.0
      %2829 = vmatpush.msra.mxu0 0.0
      %2830 = vmatpush.msra.mxu0 %v2813
      %2831 = vmatpush.msra.mxu0 %v2812
      %2832 = vmatpush.msra.mxu0 %v2811
      %2833 = vmatpush.msra.mxu0 %v2810
      %2834 = vmatpush.msra.mxu0 %v2809
      %2835 = vmatpush.msra.mxu0 %v2808
      %2836 = vmatpush.msra.mxu0 %v2807
      %2837 = vmatpush.msra.mxu0 %v2806
      %2838 = vmatmul.f32.gmra.mxu0 %v2820
      %v2839 = vpop.f32.mrf.mxu0
      %v2840 = vadd.f32 %v2817, %v2839
      %2841 = vdwg.mxu0
      %v2842 = vadd.f32 %v2497, %v2840
      %s2843 = scalar_lea.vmem %s49, 1
      %v2844 = vld [vmem:[%s2843] sm:$0x1]
      %s2845 = scalar_lea.vmem %s51, 1
      %v2846 = vld [vmem:[%s2845] sm:$0x1]
      %v2847 = vsel %vm1043, %v2842, 0.0
      %2848 = vadd.xlane.f32.xlu0 %v2847
      %v2849 = vpop.xlane.xlu0 %2848
      %v2850 = vmul.f32 %v2849, %v1053
      %v2851 = vsub.f32 %v2842, %v2850
      %v2852 = vmul.f32 %v2851, %v2851
      %v2853 = vsel %vm1043, %v2852, 0.0
      %2854 = vadd.xlane.f32.xlu0 %v2853
      %v2855 = vpop.xlane.xlu0 %2854
      %v2856 = vmul.f32 %v2855, %v1053
      %v2857 = vadd.f32 %v2856, 1e-05
      %v2858 = vrsqrt.pop %v2857
      %v2859 = vmul.f32 %v2858, %v2857
      %v2860 = vmul.f32 %v2859, %v2858
      %v2861 = vmul.f32 0.5, %v2860
      %v2862 = vsub.f32 1.5, %v2861
      %v2863 = vmul.f32 %v2858, %v2862
      %vm2864 = vweird.f32 %v2857
      %vm2865 = vweird.f32 %v2858
      %vm2866 = vmor %vm2864, %vm2865
      %v2867 = vsel %vm2866, %v2858, %v2863
      %v2868 = vmul.f32 %v2851, %v2867
      %v2870 = vperm.slane %v2844, 0
      %v2872 = vmul.f32 %v2868, %v2870
      %v2874 = vperm.slane %v2846, 0
      %v2876 = vadd.f32 %v2872, %v2874
      %s2877 = scalar_lea.vmem %s53, 32
      %v2878 = vld [vmem:[%s2877] sm:$0xff]
      %v2879 = vld [vmem:[%s2877 + $0x8] sm:$0xff]
      %v2880 = vld [vmem:[%s2877 + $0x10] sm:$0xff]
      %v2881 = vld [vmem:[%s2877 + $0x18] sm:$0xff]
      %s2882 = scalar_lea.vmem %s55, 1
      %v2883 = vld [vmem:[%s2882] sm:$0x1]
      %v2885 = vperm.slane %v2883, 0
      %v2888 = vsel %vm1043, %v2876, 0
      %2890 = vmatpush.msra.mxu0 0.0
      %2891 = vmatpush.msra.mxu0 0.0
      %2892 = vmatpush.msra.mxu0 0.0
      %2893 = vmatpush.msra.mxu0 0.0
      %2894 = vmatpush.msra.mxu0 0.0
      %2895 = vmatpush.msra.mxu0 0.0
      %2896 = vmatpush.msra.mxu0 0.0
      %2897 = vmatpush.msra.mxu0 0.0
      %2898 = vmatpush.msra.mxu0 0.0
      %2899 = vmatpush.msra.mxu0 0.0
      %2900 = vmatpush.msra.mxu0 0.0
      %2901 = vmatpush.msra.mxu0 0.0
      %2902 = vmatpush.msra.mxu0 %v2881
      %2903 = vmatpush.msra.mxu0 %v2880
      %2904 = vmatpush.msra.mxu0 %v2879
      %2905 = vmatpush.msra.mxu0 %v2878
      %2906 = vmatmul.f32.gmra.mxu0 %v2888
      %v2907 = vpop.f32.mrf.mxu0
      %v2908 = vadd.f32 %v2885, %v2907
      %2909 = vdwg.mxu0
      %v2910 = vxor.u32 %v2908, 2147483648
      %v2911 = vmul.f32 %v2910, 1.442695
      %v2912 = vpow.pop %v2911
      %v2913 = vadd.f32 %v2912, 1.0
      %v2914 = vrcp.pop %v2913
      %v2915 = vmul.f32 %v2913, %v2914
      %v2916 = vsub.f32 1.0, %v2915
      %v2917 = vmul.f32 %v2914, %v2916
      %v2918 = vadd.f32 %v2914, %v2917
      %vm2919 = vweird.f32 %v2913
      %vm2920 = vweird.f32 %v2914
      %vm2921 = vmor %vm2919, %vm2920
      %v2922 = vsel %vm2921, %v2914, %v2918
      %v2923 = vand.u32 2147483647, %v2913
      %vm2924 = vcmp.eq.f32.partialorder %v2923, 8.507059e+37
      %v2925 = vand.u32 %v2913, 2147483648
      %v2926 = vor.u32 1.1754944e-38, %v2925
      %v2927 = vsel %vm2924, %v2926, %v2922
      %v2928 = vmul.f32 1.0, %v2927
      %v2929 = vmul.f32 %v2908, %v2928
      %s2930 = scalar_lea.vmem %s57, 128
      %v2931 = vld [vmem:[%s2930] sm:$0xff]
      %v2932 = vld [vmem:[%s2930 + $0x8] sm:$0xff]
      %v2933 = vld [vmem:[%s2930 + $0x10] sm:$0xff]
      %v2934 = vld [vmem:[%s2930 + $0x18] sm:$0xff]
      %v2935 = vld [vmem:[%s2930 + $0x20] sm:$0xff]
      %v2936 = vld [vmem:[%s2930 + $0x28] sm:$0xff]
      %v2937 = vld [vmem:[%s2930 + $0x30] sm:$0xff]
      %v2938 = vld [vmem:[%s2930 + $0x38] sm:$0xff]
      %v2939 = vld [vmem:[%s2930 + $0x40] sm:$0xff]
      %v2940 = vld [vmem:[%s2930 + $0x48] sm:$0xff]
      %v2941 = vld [vmem:[%s2930 + $0x50] sm:$0xff]
      %v2942 = vld [vmem:[%s2930 + $0x58] sm:$0xff]
      %v2943 = vld [vmem:[%s2930 + $0x60] sm:$0xff]
      %v2944 = vld [vmem:[%s2930 + $0x68] sm:$0xff]
      %v2945 = vld [vmem:[%s2930 + $0x70] sm:$0xff]
      %v2946 = vld [vmem:[%s2930 + $0x78] sm:$0xff]
      %s2947 = scalar_lea.vmem %s59, 1
      %v2948 = vld [vmem:[%s2947] sm:$0x1]
      %v2950 = vperm.slane %v2948, 0
      %2952 = vmatpush.msra.mxu0 %v2946
      %2953 = vmatpush.msra.mxu0 %v2945
      %2954 = vmatpush.msra.mxu0 %v2944
      %2955 = vmatpush.msra.mxu0 %v2943
      %2956 = vmatpush.msra.mxu0 %v2942
      %2957 = vmatpush.msra.mxu0 %v2941
      %2958 = vmatpush.msra.mxu0 %v2940
      %2959 = vmatpush.msra.mxu0 %v2939
      %2960 = vmatpush.msra.mxu0 %v2938
      %2961 = vmatpush.msra.mxu0 %v2937
      %2962 = vmatpush.msra.mxu0 %v2936
      %2963 = vmatpush.msra.mxu0 %v2935
      %2964 = vmatpush.msra.mxu0 %v2934
      %2965 = vmatpush.msra.mxu0 %v2933
      %2966 = vmatpush.msra.mxu0 %v2932
      %2967 = vmatpush.msra.mxu0 %v2931
      %2968 = vmatmul.f32.gmra.mxu0 %v2929
      %v2969 = vpop.f32.mrf.mxu0
      %v2970 = vadd.f32 %v2950, %v2969
      %2971 = vdwg.mxu0
      %v2972 = vmul.f32 %v2970, 0.5
      %v2973 = vadd.f32 %v2842, %v2972
      %s2974 = scalar_lea.vmem %s61, 1
      %v2975 = vld [vmem:[%s2974] sm:$0x1]
      %s2976 = scalar_lea.vmem %s63, 1
      %v2977 = vld [vmem:[%s2976] sm:$0x1]
      %v2978 = vsel %vm1043, %v2973, 0.0
      %2979 = vadd.xlane.f32.xlu0 %v2978
      %v2980 = vpop.xlane.xlu0 %2979
      %v2981 = vmul.f32 %v2980, %v1053
      %v2982 = vsub.f32 %v2973, %v2981
      %v2983 = vmul.f32 %v2982, %v2982
      %v2984 = vsel %vm1043, %v2983, 0.0
      %2985 = vadd.xlane.f32.xlu0 %v2984
      %v2986 = vpop.xlane.xlu0 %2985
      %v2987 = vmul.f32 %v2986, %v1053
      %v2988 = vadd.f32 %v2987, 1e-05
      %v2989 = vrsqrt.pop %v2988
      %v2990 = vmul.f32 %v2989, %v2988
      %v2991 = vmul.f32 %v2990, %v2989
      %v2992 = vmul.f32 0.5, %v2991
      %v2993 = vsub.f32 1.5, %v2992
      %v2994 = vmul.f32 %v2989, %v2993
      %vm2995 = vweird.f32 %v2988
      %vm2996 = vweird.f32 %v2989
      %vm2997 = vmor %vm2995, %vm2996
      %v2998 = vsel %vm2997, %v2989, %v2994
      %v2999 = vmul.f32 %v2982, %v2998
      %v3001 = vperm.slane %v2975, 0
      %v3003 = vmul.f32 %v2999, %v3001
      %v3005 = vperm.slane %v2977, 0
      %v3007 = vadd.f32 %v3003, %v3005
      %v3008 = vld [vmem:[%s65] sm:$0xff]
      %v3009 = vld [vmem:[%s65 + $0x8] sm:$0xff]
      %v3010 = vld [vmem:[%s65 + $0x10] sm:$0xff]
      %v3011 = vld [vmem:[%s65 + $0x18] sm:$0xff]
      %v3012 = vld [vmem:[%s67] sm:$0x1]
      %v3014 = vperm.slane %v3012, 0
      %v3017 = vsel %vm1043, %v3007, 0
      %3019 = vmatpush.msra.mxu0 0.0
      %3020 = vmatpush.msra.mxu0 0.0
      %3021 = vmatpush.msra.mxu0 0.0
      %3022 = vmatpush.msra.mxu0 0.0
      %3023 = vmatpush.msra.mxu0 0.0
      %3024 = vmatpush.msra.mxu0 0.0
      %3025 = vmatpush.msra.mxu0 0.0
      %3026 = vmatpush.msra.mxu0 0.0
      %3027 = vmatpush.msra.mxu0 0.0
      %3028 = vmatpush.msra.mxu0 0.0
      %3029 = vmatpush.msra.mxu0 0.0
      %3030 = vmatpush.msra.mxu0 0.0
      %3031 = vmatpush.msra.mxu0 %v3011
      %3032 = vmatpush.msra.mxu0 %v3010
      %3033 = vmatpush.msra.mxu0 %v3009
      %3034 = vmatpush.msra.mxu0 %v3008
      %3035 = vmatmul.f32.gmra.mxu0 %v3017
      %v3036 = vpop.f32.mrf.mxu0
      %v3037 = vadd.f32 %v3014, %v3036
      %3038 = vdwg.mxu0
      %3039 = vst [vmem:[%s1037] sm:$0xff] %v3037
      %p3040 = scmp.lt.s32.totalorder %s80, 1
      %s3041 = scalar_select %p3040, %s80, 1
      %s3042 = smul.addr %s3041, 8
      %s3043 = scalar_lea.vmem %s69, %s3042
      // Predicated region
      $region157: #{logit_head_forward.1} parent=155 // pred_check
        %p3044 = pneg %p817
      $region158: #{logit_head_forward.1} parent=155 // pred_check_branch
        %3046 = sbr.rel (%p3044) target = $region160
      $region159: #{logit_head_forward.1} parent=155 // pred_region
        _
      $region160: #{logit_head_forward.1} parent=155 // pred_fallthru
        _
    $region156: #{logit_head_forward.1} parent=5 // pred_fallthru
      _
    %p3047 = scmp.le.s32.totalorder 2, %s75
    // Predicated region
    $region161: #{logit_head_forward.1} parent=5 // pred_check
      %p3048 = pneg %p3047
    $region162: #{logit_head_forward.1} parent=5 // pred_check_branch
      %3050 = sbr.rel (%p3048) target = $region164
    $region163: #{logit_head_forward.1} parent=5 // pred_region
      %s3051 = ssub.s32 %s75, 2
      // Predicated region
      $region165: #{logit_head_forward.1} parent=163 // pred_check
        %p3052 = pneg %p823
      $region166: #{logit_head_forward.1} parent=163 // pred_check_branch
        %3054 = sbr.rel (%p3052) target = $region168
      $region167: #{logit_head_forward.1} parent=163 // pred_region
        %p3055 = scmp.lt.s32.totalorder %s81, 1
        %s3056 = scalar_select %p3055, %s81, 1
        %s3057 = smul.addr %s3056, 8
        %s3058 = scalar_lea.vmem %s69, %s3057
      $region168: #{logit_head_forward.1} parent=163 // pred_fallthru
        _
    $region164: #{logit_head_forward.1} parent=5 // pred_fallthru
      _
  $region6: #{logit_head_forward.1} parent=0 // loop_footer
    %s79 = sadd.s32 1, %s75
  $region7: #{logit_head_forward.1} parent=0 // loop_footer_branch
    %74 = sbr.rel target = $region3
  $region8: #{logit_head_forward.1} parent=0 // loop_exit
    _

</llo_original>
